<compile_context>
chip_gen: v7x
topology: tpu7x:2x2x1
jax: 0.10.0
libtpu: 0.0.40
codegen_flags: <defaults>
</compile_context>

<pallas_src>
import jax
import jax.numpy as jnp
from jax.experimental import pallas as pl
from jax.experimental.pallas import tpu as pltpu


def rrcnn_kernel(x_ref, w1_ref, b1_ref, w3a_ref, b3a_ref, w3b_ref, b3b_ref,
                 out_ref):
    """One batch element per grid step, fully resident in VMEM.

    x_ref  : (H, W, Cin)        input tile (NHWC, batch squeezed by BlockSpec)
    w1_ref : (Cin, Cout)        1x1 conv weight
    b1_ref : (1, Cout)          1x1 conv bias
    w3*_ref: (9*Cout, Cout)     3x3 conv weights, tap-major ((ky*3+kx)*Cin + ci), BN-folded
    b3*_ref: (1, Cout)          3x3 conv bias (BN-folded)
    out_ref: (H, W, Cout)
    """
    H, W, Cin = x_ref.shape
    Cout = w1_ref.shape[1]
    HW = H * W

    # Hoisted zero slabs for the edge padding (created once per grid step).
    zero_col = jnp.zeros((H, 1, Cout), jnp.float32)        # dx = +-1 edge
    zero_row = jnp.zeros((1, W, 3 * Cout), jnp.float32)    # dy = +-1 edge

    # ---- 1x1 conv: pure channel matmul + bias ------------------------------
    x2d = x_ref[...].reshape(HW, Cin)                       # free merge (W % 8 == 0)
    y0 = (jnp.dot(x2d, w1_ref[...], preferred_element_type=jnp.float32)
          + b1_ref[...]).reshape(H, W, Cout)

    def cbr(z, w3, bias):
        """conv3x3 + (folded) BN + ReLU via a single fused im2col matmul.

        z: (H, W, Cout) value.  The 3x3 neighbourhood is assembled with
        value-level shifts (no padded scratch, no misaligned ref slices):
          dx taps : sublane (W) shift + zero edge column
          dy taps : leading-dim (H) shift + zero edge row
        """
        zl = jnp.concatenate([zero_col, z[:, :W - 1, :]], axis=1)   # reads w-1
        zr = jnp.concatenate([z[:, 1:, :], zero_col], axis=1)       # reads w+1
        zcat = jnp.concatenate([zl, z, zr], axis=-1)                # (H, W, 3C)
        up = jnp.concatenate([zero_row, zcat[:H - 1]], axis=0)      # reads h-1
        dn = jnp.concatenate([zcat[1:], zero_row], axis=0)          # reads h+1
        patches = jnp.concatenate([up, zcat, dn], axis=-1)          # (H, W, 9C)
        acc = jnp.dot(patches.reshape(HW, 9 * Cout), w3,            # one MXU matmul
                      preferred_element_type=jnp.float32) + bias
        return jnp.maximum(acc, 0.0).reshape(H, W, Cout)

    cur = y0
    for w3_ref, b3_ref in ((w3a_ref, b3a_ref), (w3b_ref, b3b_ref)):
        w3 = w3_ref[...]                                     # load once per block
        bias = jnp.broadcast_to(b3_ref[...], (HW, Cout))     # broadcast once per block
        # Recurrent_block(t=2): conv applied 3 times with recurrent residual input.
        x1 = cbr(cur, w3, bias)            # i == 0 : conv(x)
        x1 = cbr(cur + x1, w3, bias)       # i == 0 : conv(x + x1)
        x1 = cbr(cur + x1, w3, bias)       # i == 1 : conv(x + x1)
        cur = x1

    out_ref[...] = (y0 + cur).astype(out_ref.dtype)


def rrcnn_forward_nhwc(x_nhwc, w1, b1, w3a, b3a, w3b, b3b):
    """Primary NHWC entry point (keep activations NHWC end-to-end in a network)."""
    N, H, W, Cin = x_nhwc.shape
    Cout = w1.shape[1]

    flops = 2 * N * H * W * (Cin * Cout + 6 * 9 * Cout * Cout)
    bytes_accessed = 4 * (x_nhwc.size + N * H * W * Cout + w1.size + b1.size
                          + w3a.size + b3a.size + w3b.size + b3b.size)
    cost = pl.CostEstimate(flops=flops, transcendentals=0,
                           bytes_accessed=bytes_accessed)

    grid_spec = pltpu.PrefetchScalarGridSpec(
        num_scalar_prefetch=0,
        grid=(N,),
        in_specs=[
            # batch-tiled activation (last two dims = full array dims)
            pl.BlockSpec((None, H, W, Cin), lambda n: (n, 0, 0, 0)),
            # weights: full-array blocks with constant index_map -> DMA'd once,
            # kept resident across the grid.
            pl.BlockSpec(w1.shape, lambda n: (0, 0)),
            pl.BlockSpec(b1.shape, lambda n: (0, 0)),
            pl.BlockSpec(w3a.shape, lambda n: (0, 0)),
            pl.BlockSpec(b3a.shape, lambda n: (0, 0)),
            pl.BlockSpec(w3b.shape, lambda n: (0, 0)),
            pl.BlockSpec(b3b.shape, lambda n: (0, 0)),
        ],
        out_specs=pl.BlockSpec((None, H, W, Cout), lambda n: (n, 0, 0, 0)),
    )

    return pl.pallas_call(
        rrcnn_kernel,
        out_shape=jax.ShapeDtypeStruct((N, H, W, Cout), jnp.float32),
        grid_spec=grid_spec,
        compiler_params=pltpu.CompilerParams(
            dimension_semantics=("parallel",),      # batch is independent -> megacore
            vmem_limit_bytes=32 * 1024 * 1024),     # safe on v5e/v6e/v7x
        cost_estimate=cost,
    )(x_nhwc, w1, b1, w3a, b3a, w3b, b3b)


def rrcnn_forward_nchw(x_nchw, params):
    """PyTorch-layout wrapper.  In an NHWC end-to-end network call
    rrcnn_forward_nhwc directly and avoid these HBM transposes."""
    x_nhwc = jnp.transpose(x_nchw, (0, 2, 3, 1))
    out = rrcnn_forward_nhwc(x_nhwc, *params)
    return jnp.transpose(out, (0, 3, 1, 2))


# ------------------------- parameter construction ---------------------------
def make_params(key, ch_in, ch_out, eps=1e-5):
    keys = jax.random.split(key, 14)
    # Conv_1x1 (ch_in -> ch_out) with bias.
    w1 = 0.2 * jax.random.normal(keys[0], (ch_in, ch_out), jnp.float32)
    b1 = 0.1 * jax.random.normal(keys[1], (1, ch_out), jnp.float32)

    def conv_block(k0, k1, k2, k3, k4, k5):
        # conv3x3 weight in HWIO, bias, plus BN (gamma, beta, running mean/var).
        w = 0.2 * jax.random.normal(k0, (3, 3, ch_out, ch_out), jnp.float32)
        b = 0.1 * jax.random.normal(k1, (ch_out,), jnp.float32)
        gamma = 1.0 + 0.1 * jax.random.normal(k2, (ch_out,), jnp.float32)
        beta = 0.1 * jax.random.normal(k3, (ch_out,), jnp.float32)
        mean = 0.1 * jax.random.normal(k4, (ch_out,), jnp.float32)
        var = jnp.abs(jax.random.normal(k5, (ch_out,), jnp.float32)) + 0.5
        s = gamma / jnp.sqrt(var + eps)           # fold BN into conv (eval semantics)
        w_eff = w * s[None, None, None, :]
        b_eff = (b - mean) * s + beta
        # tap-major flat layout: row index = (ky*3 + kx)*ch_out + cin
        return w_eff.reshape(9 * ch_out, ch_out), b_eff.reshape(1, ch_out)

    w3a, b3a = conv_block(*keys[2:8])
    w3b, b3b = conv_block(*keys[8:14])
    return w1, b1, w3a, b3a, w3b, b3b


# ------------------------------- reference ----------------------------------
def ref_forward_nhwc(x, w1, b1, w3a, b3a, w3b, b3b):
    Cout = w1.shape[1]
    y0 = jnp.einsum('nhwc,co->nhwo', x, w1) + b1.reshape(1, 1, 1, Cout)

    def cbr(z, w3, b3):
        w = w3.reshape(3, 3, Cout, Cout)
        out = jax.lax.conv_general_dilated(
            z, w, window_strides=(1, 1), padding='SAME',
            dimension_numbers=('NHWC', 'HWIO', 'NHWC'))
        return jnp.maximum(out + b3.reshape(1, 1, 1, Cout), 0.0)

    cur = y0
    for (w3, b3) in ((w3a, b3a), (w3b, b3b)):
        x1 = cbr(cur, w3, b3)
        x1 = cbr(cur + x1, w3, b3)
        x1 = cbr(cur + x1, w3, b3)
        cur = x1
    return y0 + cur


if __name__ == "__main__":
    N, CH_IN, CH_OUT, H, W = 2, 4, 8, 16, 16

    key = jax.random.PRNGKey(0)
    kx, kp = jax.random.split(key)
    x_nchw = jax.random.normal(kx, (N, CH_IN, H, W), jnp.float32)  # PyTorch-style input
    params = make_params(kp, CH_IN, CH_OUT)

    # Primary NHWC path (no transposes around the kernel).
    x_nhwc = jnp.transpose(x_nchw, (0, 2, 3, 1))
    out_nhwc = jax.block_until_ready(rrcnn_forward_nhwc(x_nhwc, *params))
    ref_nhwc = ref_forward_nhwc(x_nhwc, *params)
    assert out_nhwc.shape == (N, H, W, CH_OUT)
    assert jnp.allclose(out_nhwc, ref_nhwc, atol=1e-3, rtol=1e-3), (
        float(jnp.max(jnp.abs(out_nhwc - ref_nhwc))))

    # PyTorch-layout parity check through the NCHW wrapper.
    out_nchw = jax.block_until_ready(rrcnn_forward_nchw(x_nchw, params))
    ref_nchw = jnp.transpose(ref_nhwc, (0, 3, 1, 2))
    assert out_nchw.shape == (N, CH_OUT, H, W)
    assert jnp.allclose(out_nchw, ref_nchw, atol=1e-3, rtol=1e-3), (
        float(jnp.max(jnp.abs(out_nchw - ref_nchw))))

    print("KERNEL_OK")
</pallas_src>

<mosaic_0001>
module attributes {stable_mosaic.version = 11 : i64} {
  func.func @rrcnn_kernel(%arg0: i32, %arg1: memref<1x16x16x4xf32, #tpu.memory_space<vmem>>, %arg2: memref<4x8xf32, #tpu.memory_space<vmem>>, %arg3: memref<1x8xf32, #tpu.memory_space<vmem>>, %arg4: memref<72x8xf32, #tpu.memory_space<vmem>>, %arg5: memref<1x8xf32, #tpu.memory_space<vmem>>, %arg6: memref<72x8xf32, #tpu.memory_space<vmem>>, %arg7: memref<1x8xf32, #tpu.memory_space<vmem>>, %arg8: memref<1x16x16x8xf32, #tpu.memory_space<vmem>>) attributes {dimension_semantics = [#tpu.dimension_semantics<parallel>], iteration_bounds = array<i64: 2>, scalar_prefetch = 0 : i64, scratch_operands = 0 : i64, tpu.core_type = #tpu.core_type<tc>, window_params = [{transform_indices = @transform_0, window_bounds = array<i64: 1, 16, 16, 4>}, {pipeline_mode = #tpu.pipeline_mode<synchronous>, transform_indices = @transform_1, window_bounds = array<i64: 4, 8>}, {pipeline_mode = #tpu.pipeline_mode<synchronous>, transform_indices = @transform_2, window_bounds = array<i64: 1, 8>}, {pipeline_mode = #tpu.pipeline_mode<synchronous>, transform_indices = @transform_3, window_bounds = array<i64: 72, 8>}, {pipeline_mode = #tpu.pipeline_mode<synchronous>, transform_indices = @transform_4, window_bounds = array<i64: 1, 8>}, {pipeline_mode = #tpu.pipeline_mode<synchronous>, transform_indices = @transform_5, window_bounds = array<i64: 72, 8>}, {pipeline_mode = #tpu.pipeline_mode<synchronous>, transform_indices = @transform_6, window_bounds = array<i64: 1, 8>}, {transform_indices = @transform_7, window_bounds = array<i64: 1, 16, 16, 8>}]} {
    %cst = arith.constant 0.000000e+00 : f32
    %0 = vector.broadcast %cst : f32 to vector<16x1x8xf32>
    %cst_0 = arith.constant 0.000000e+00 : f32
    %1 = vector.broadcast %cst_0 : f32 to vector<1x16x24xf32>
    %c0 = arith.constant 0 : index
    %c0_1 = arith.constant 0 : index
    %c0_2 = arith.constant 0 : index
    %c0_3 = arith.constant 0 : index
    %2 = vector.load %arg1[%c0, %c0_1, %c0_2, %c0_3] : memref<1x16x16x4xf32, #tpu.memory_space<vmem>>, vector<1x16x16x4xf32>
    %3 = vector.shape_cast %2 : vector<1x16x16x4xf32> to vector<16x16x4xf32>
    %4 = vector.shape_cast %3 : vector<16x16x4xf32> to vector<256x4xf32>
    %c0_4 = arith.constant 0 : index
    %c0_5 = arith.constant 0 : index
    %5 = vector.load %arg2[%c0_4, %c0_5] : memref<4x8xf32, #tpu.memory_space<vmem>>, vector<4x8xf32>
    %cst_6 = arith.constant dense<0.000000e+00> : vector<256x8xf32>
    %6 = tpu.matmul %4, %5, %cst_6 {dimension_numbers = #tpu.dot_dimension_numbers<[1], [0], [0], [1], [0, 0, 1, 1], [], []>} : vector<256x4xf32>, vector<4x8xf32>, vector<256x8xf32> -> vector<256x8xf32>
    %c0_7 = arith.constant 0 : index
    %c0_8 = arith.constant 0 : index
    %7 = vector.load %arg3[%c0_7, %c0_8] : memref<1x8xf32, #tpu.memory_space<vmem>>, vector<1x8xf32>
    %8 = vector.broadcast %7 : vector<1x8xf32> to vector<256x8xf32>
    %9 = arith.addf %6, %8 : vector<256x8xf32>
    %10 = vector.shape_cast %9 : vector<256x8xf32> to vector<16x16x8xf32>
    %c0_9 = arith.constant 0 : index
    %c0_10 = arith.constant 0 : index
    %11 = vector.load %arg4[%c0_9, %c0_10] : memref<72x8xf32, #tpu.memory_space<vmem>>, vector<72x8xf32>
    %c0_11 = arith.constant 0 : index
    %c0_12 = arith.constant 0 : index
    %12 = vector.load %arg5[%c0_11, %c0_12] : memref<1x8xf32, #tpu.memory_space<vmem>>, vector<1x8xf32>
    %13 = vector.shape_cast %12 : vector<1x8xf32> to vector<1x8xf32>
    %14 = vector.broadcast %13 : vector<1x8xf32> to vector<256x8xf32>
    %15 = vector.extract_strided_slice %10 {offsets = [0, 0, 0], sizes = [16, 15, 8], strides = [1, 1, 1]} : vector<16x16x8xf32> to vector<16x15x8xf32>
    %16 = tpu.concatenate %0, %15 in 1 : vector<16x1x8xf32>, vector<16x15x8xf32> -> vector<16x16x8xf32>
    %17 = vector.extract_strided_slice %10 {offsets = [0, 1, 0], sizes = [16, 15, 8], strides = [1, 1, 1]} : vector<16x16x8xf32> to vector<16x15x8xf32>
    %18 = tpu.concatenate %17, %0 in 1 : vector<16x15x8xf32>, vector<16x1x8xf32> -> vector<16x16x8xf32>
    %19 = tpu.concatenate %16, %10, %18 in 2 : vector<16x16x8xf32>, vector<16x16x8xf32>, vector<16x16x8xf32> -> vector<16x16x24xf32>
    %20 = vector.extract_strided_slice %19 {offsets = [0, 0, 0], sizes = [15, 16, 24], strides = [1, 1, 1]} : vector<16x16x24xf32> to vector<15x16x24xf32>
    %21 = tpu.concatenate %1, %20 in 0 : vector<1x16x24xf32>, vector<15x16x24xf32> -> vector<16x16x24xf32>
    %22 = vector.extract_strided_slice %19 {offsets = [1, 0, 0], sizes = [15, 16, 24], strides = [1, 1, 1]} : vector<16x16x24xf32> to vector<15x16x24xf32>
    %23 = tpu.concatenate %22, %1 in 0 : vector<15x16x24xf32>, vector<1x16x24xf32> -> vector<16x16x24xf32>
    %24 = tpu.concatenate %21, %19, %23 in 2 : vector<16x16x24xf32>, vector<16x16x24xf32>, vector<16x16x24xf32> -> vector<16x16x72xf32>
    %25 = vector.shape_cast %24 : vector<16x16x72xf32> to vector<256x72xf32>
    %cst_13 = arith.constant dense<0.000000e+00> : vector<256x8xf32>
    %26 = tpu.matmul %25, %11, %cst_13 {dimension_numbers = #tpu.dot_dimension_numbers<[1], [0], [0], [1], [0, 0, 1, 1], [], []>} : vector<256x72xf32>, vector<72x8xf32>, vector<256x8xf32> -> vector<256x8xf32>
    %27 = arith.addf %26, %14 : vector<256x8xf32>
    %cst_14 = arith.constant 0.000000e+00 : f32
    %28 = vector.broadcast %cst_14 : f32 to vector<256x8xf32>
    %29 = arith.maximumf %27, %28 : vector<256x8xf32>
    %30 = vector.shape_cast %29 : vector<256x8xf32> to vector<16x16x8xf32>
    %31 = arith.addf %10, %30 : vector<16x16x8xf32>
    %32 = vector.extract_strided_slice %31 {offsets = [0, 0, 0], sizes = [16, 15, 8], strides = [1, 1, 1]} : vector<16x16x8xf32> to vector<16x15x8xf32>
    %33 = tpu.concatenate %0, %32 in 1 : vector<16x1x8xf32>, vector<16x15x8xf32> -> vector<16x16x8xf32>
    %34 = vector.extract_strided_slice %31 {offsets = [0, 1, 0], sizes = [16, 15, 8], strides = [1, 1, 1]} : vector<16x16x8xf32> to vector<16x15x8xf32>
    %35 = tpu.concatenate %34, %0 in 1 : vector<16x15x8xf32>, vector<16x1x8xf32> -> vector<16x16x8xf32>
    %36 = tpu.concatenate %33, %31, %35 in 2 : vector<16x16x8xf32>, vector<16x16x8xf32>, vector<16x16x8xf32> -> vector<16x16x24xf32>
    %37 = vector.extract_strided_slice %36 {offsets = [0, 0, 0], sizes = [15, 16, 24], strides = [1, 1, 1]} : vector<16x16x24xf32> to vector<15x16x24xf32>
    %38 = tpu.concatenate %1, %37 in 0 : vector<1x16x24xf32>, vector<15x16x24xf32> -> vector<16x16x24xf32>
    %39 = vector.extract_strided_slice %36 {offsets = [1, 0, 0], sizes = [15, 16, 24], strides = [1, 1, 1]} : vector<16x16x24xf32> to vector<15x16x24xf32>
    %40 = tpu.concatenate %39, %1 in 0 : vector<15x16x24xf32>, vector<1x16x24xf32> -> vector<16x16x24xf32>
    %41 = tpu.concatenate %38, %36, %40 in 2 : vector<16x16x24xf32>, vector<16x16x24xf32>, vector<16x16x24xf32> -> vector<16x16x72xf32>
    %42 = vector.shape_cast %41 : vector<16x16x72xf32> to vector<256x72xf32>
    %cst_15 = arith.constant dense<0.000000e+00> : vector<256x8xf32>
    %43 = tpu.matmul %42, %11, %cst_15 {dimension_numbers = #tpu.dot_dimension_numbers<[1], [0], [0], [1], [0, 0, 1, 1], [], []>} : vector<256x72xf32>, vector<72x8xf32>, vector<256x8xf32> -> vector<256x8xf32>
    %44 = arith.addf %43, %14 : vector<256x8xf32>
    %cst_16 = arith.constant 0.000000e+00 : f32
    %45 = vector.broadcast %cst_16 : f32 to vector<256x8xf32>
    %46 = arith.maximumf %44, %45 : vector<256x8xf32>
    %47 = vector.shape_cast %46 : vector<256x8xf32> to vector<16x16x8xf32>
    %48 = arith.addf %10, %47 : vector<16x16x8xf32>
    %49 = vector.extract_strided_slice %48 {offsets = [0, 0, 0], sizes = [16, 15, 8], strides = [1, 1, 1]} : vector<16x16x8xf32> to vector<16x15x8xf32>
    %50 = tpu.concatenate %0, %49 in 1 : vector<16x1x8xf32>, vector<16x15x8xf32> -> vector<16x16x8xf32>
    %51 = vector.extract_strided_slice %48 {offsets = [0, 1, 0], sizes = [16, 15, 8], strides = [1, 1, 1]} : vector<16x16x8xf32> to vector<16x15x8xf32>
    %52 = tpu.concatenate %51, %0 in 1 : vector<16x15x8xf32>, vector<16x1x8xf32> -> vector<16x16x8xf32>
    %53 = tpu.concatenate %50, %48, %52 in 2 : vector<16x16x8xf32>, vector<16x16x8xf32>, vector<16x16x8xf32> -> vector<16x16x24xf32>
    %54 = vector.extract_strided_slice %53 {offsets = [0, 0, 0], sizes = [15, 16, 24], strides = [1, 1, 1]} : vector<16x16x24xf32> to vector<15x16x24xf32>
    %55 = tpu.concatenate %1, %54 in 0 : vector<1x16x24xf32>, vector<15x16x24xf32> -> vector<16x16x24xf32>
    %56 = vector.extract_strided_slice %53 {offsets = [1, 0, 0], sizes = [15, 16, 24], strides = [1, 1, 1]} : vector<16x16x24xf32> to vector<15x16x24xf32>
    %57 = tpu.concatenate %56, %1 in 0 : vector<15x16x24xf32>, vector<1x16x24xf32> -> vector<16x16x24xf32>
    %58 = tpu.concatenate %55, %53, %57 in 2 : vector<16x16x24xf32>, vector<16x16x24xf32>, vector<16x16x24xf32> -> vector<16x16x72xf32>
    %59 = vector.shape_cast %58 : vector<16x16x72xf32> to vector<256x72xf32>
    %cst_17 = arith.constant dense<0.000000e+00> : vector<256x8xf32>
    %60 = tpu.matmul %59, %11, %cst_17 {dimension_numbers = #tpu.dot_dimension_numbers<[1], [0], [0], [1], [0, 0, 1, 1], [], []>} : vector<256x72xf32>, vector<72x8xf32>, vector<256x8xf32> -> vector<256x8xf32>
    %61 = arith.addf %60, %14 : vector<256x8xf32>
    %cst_18 = arith.constant 0.000000e+00 : f32
    %62 = vector.broadcast %cst_18 : f32 to vector<256x8xf32>
    %63 = arith.maximumf %61, %62 : vector<256x8xf32>
    %64 = vector.shape_cast %63 : vector<256x8xf32> to vector<16x16x8xf32>
    %c0_19 = arith.constant 0 : index
    %c0_20 = arith.constant 0 : index
    %65 = vector.load %arg6[%c0_19, %c0_20] : memref<72x8xf32, #tpu.memory_space<vmem>>, vector<72x8xf32>
    %c0_21 = arith.constant 0 : index
    %c0_22 = arith.constant 0 : index
    %66 = vector.load %arg7[%c0_21, %c0_22] : memref<1x8xf32, #tpu.memory_space<vmem>>, vector<1x8xf32>
    %67 = vector.shape_cast %66 : vector<1x8xf32> to vector<1x8xf32>
    %68 = vector.broadcast %67 : vector<1x8xf32> to vector<256x8xf32>
    %69 = vector.extract_strided_slice %64 {offsets = [0, 0, 0], sizes = [16, 15, 8], strides = [1, 1, 1]} : vector<16x16x8xf32> to vector<16x15x8xf32>
    %70 = tpu.concatenate %0, %69 in 1 : vector<16x1x8xf32>, vector<16x15x8xf32> -> vector<16x16x8xf32>
    %71 = vector.extract_strided_slice %64 {offsets = [0, 1, 0], sizes = [16, 15, 8], strides = [1, 1, 1]} : vector<16x16x8xf32> to vector<16x15x8xf32>
    %72 = tpu.concatenate %71, %0 in 1 : vector<16x15x8xf32>, vector<16x1x8xf32> -> vector<16x16x8xf32>
    %73 = tpu.concatenate %70, %64, %72 in 2 : vector<16x16x8xf32>, vector<16x16x8xf32>, vector<16x16x8xf32> -> vector<16x16x24xf32>
    %74 = vector.extract_strided_slice %73 {offsets = [0, 0, 0], sizes = [15, 16, 24], strides = [1, 1, 1]} : vector<16x16x24xf32> to vector<15x16x24xf32>
    %75 = tpu.concatenate %1, %74 in 0 : vector<1x16x24xf32>, vector<15x16x24xf32> -> vector<16x16x24xf32>
    %76 = vector.extract_strided_slice %73 {offsets = [1, 0, 0], sizes = [15, 16, 24], strides = [1, 1, 1]} : vector<16x16x24xf32> to vector<15x16x24xf32>
    %77 = tpu.concatenate %76, %1 in 0 : vector<15x16x24xf32>, vector<1x16x24xf32> -> vector<16x16x24xf32>
    %78 = tpu.concatenate %75, %73, %77 in 2 : vector<16x16x24xf32>, vector<16x16x24xf32>, vector<16x16x24xf32> -> vector<16x16x72xf32>
    %79 = vector.shape_cast %78 : vector<16x16x72xf32> to vector<256x72xf32>
    %cst_23 = arith.constant dense<0.000000e+00> : vector<256x8xf32>
    %80 = tpu.matmul %79, %65, %cst_23 {dimension_numbers = #tpu.dot_dimension_numbers<[1], [0], [0], [1], [0, 0, 1, 1], [], []>} : vector<256x72xf32>, vector<72x8xf32>, vector<256x8xf32> -> vector<256x8xf32>
    %81 = arith.addf %80, %68 : vector<256x8xf32>
    %cst_24 = arith.constant 0.000000e+00 : f32
    %82 = vector.broadcast %cst_24 : f32 to vector<256x8xf32>
    %83 = arith.maximumf %81, %82 : vector<256x8xf32>
    %84 = vector.shape_cast %83 : vector<256x8xf32> to vector<16x16x8xf32>
    %85 = arith.addf %64, %84 : vector<16x16x8xf32>
    %86 = vector.extract_strided_slice %85 {offsets = [0, 0, 0], sizes = [16, 15, 8], strides = [1, 1, 1]} : vector<16x16x8xf32> to vector<16x15x8xf32>
    %87 = tpu.concatenate %0, %86 in 1 : vector<16x1x8xf32>, vector<16x15x8xf32> -> vector<16x16x8xf32>
    %88 = vector.extract_strided_slice %85 {offsets = [0, 1, 0], sizes = [16, 15, 8], strides = [1, 1, 1]} : vector<16x16x8xf32> to vector<16x15x8xf32>
    %89 = tpu.concatenate %88, %0 in 1 : vector<16x15x8xf32>, vector<16x1x8xf32> -> vector<16x16x8xf32>
    %90 = tpu.concatenate %87, %85, %89 in 2 : vector<16x16x8xf32>, vector<16x16x8xf32>, vector<16x16x8xf32> -> vector<16x16x24xf32>
    %91 = vector.extract_strided_slice %90 {offsets = [0, 0, 0], sizes = [15, 16, 24], strides = [1, 1, 1]} : vector<16x16x24xf32> to vector<15x16x24xf32>
    %92 = tpu.concatenate %1, %91 in 0 : vector<1x16x24xf32>, vector<15x16x24xf32> -> vector<16x16x24xf32>
    %93 = vector.extract_strided_slice %90 {offsets = [1, 0, 0], sizes = [15, 16, 24], strides = [1, 1, 1]} : vector<16x16x24xf32> to vector<15x16x24xf32>
    %94 = tpu.concatenate %93, %1 in 0 : vector<15x16x24xf32>, vector<1x16x24xf32> -> vector<16x16x24xf32>
    %95 = tpu.concatenate %92, %90, %94 in 2 : vector<16x16x24xf32>, vector<16x16x24xf32>, vector<16x16x24xf32> -> vector<16x16x72xf32>
    %96 = vector.shape_cast %95 : vector<16x16x72xf32> to vector<256x72xf32>
    %cst_25 = arith.constant dense<0.000000e+00> : vector<256x8xf32>
    %97 = tpu.matmul %96, %65, %cst_25 {dimension_numbers = #tpu.dot_dimension_numbers<[1], [0], [0], [1], [0, 0, 1, 1], [], []>} : vector<256x72xf32>, vector<72x8xf32>, vector<256x8xf32> -> vector<256x8xf32>
    %98 = arith.addf %97, %68 : vector<256x8xf32>
    %cst_26 = arith.constant 0.000000e+00 : f32
    %99 = vector.broadcast %cst_26 : f32 to vector<256x8xf32>
    %100 = arith.maximumf %98, %99 : vector<256x8xf32>
    %101 = vector.shape_cast %100 : vector<256x8xf32> to vector<16x16x8xf32>
    %102 = arith.addf %64, %101 : vector<16x16x8xf32>
    %103 = vector.extract_strided_slice %102 {offsets = [0, 0, 0], sizes = [16, 15, 8], strides = [1, 1, 1]} : vector<16x16x8xf32> to vector<16x15x8xf32>
    %104 = tpu.concatenate %0, %103 in 1 : vector<16x1x8xf32>, vector<16x15x8xf32> -> vector<16x16x8xf32>
    %105 = vector.extract_strided_slice %102 {offsets = [0, 1, 0], sizes = [16, 15, 8], strides = [1, 1, 1]} : vector<16x16x8xf32> to vector<16x15x8xf32>
    %106 = tpu.concatenate %105, %0 in 1 : vector<16x15x8xf32>, vector<16x1x8xf32> -> vector<16x16x8xf32>
    %107 = tpu.concatenate %104, %102, %106 in 2 : vector<16x16x8xf32>, vector<16x16x8xf32>, vector<16x16x8xf32> -> vector<16x16x24xf32>
    %108 = vector.extract_strided_slice %107 {offsets = [0, 0, 0], sizes = [15, 16, 24], strides = [1, 1, 1]} : vector<16x16x24xf32> to vector<15x16x24xf32>
    %109 = tpu.concatenate %1, %108 in 0 : vector<1x16x24xf32>, vector<15x16x24xf32> -> vector<16x16x24xf32>
    %110 = vector.extract_strided_slice %107 {offsets = [1, 0, 0], sizes = [15, 16, 24], strides = [1, 1, 1]} : vector<16x16x24xf32> to vector<15x16x24xf32>
    %111 = tpu.concatenate %110, %1 in 0 : vector<15x16x24xf32>, vector<1x16x24xf32> -> vector<16x16x24xf32>
    %112 = tpu.concatenate %109, %107, %111 in 2 : vector<16x16x24xf32>, vector<16x16x24xf32>, vector<16x16x24xf32> -> vector<16x16x72xf32>
    %113 = vector.shape_cast %112 : vector<16x16x72xf32> to vector<256x72xf32>
    %cst_27 = arith.constant dense<0.000000e+00> : vector<256x8xf32>
    %114 = tpu.matmul %113, %65, %cst_27 {dimension_numbers = #tpu.dot_dimension_numbers<[1], [0], [0], [1], [0, 0, 1, 1], [], []>} : vector<256x72xf32>, vector<72x8xf32>, vector<256x8xf32> -> vector<256x8xf32>
    %115 = arith.addf %114, %68 : vector<256x8xf32>
    %cst_28 = arith.constant 0.000000e+00 : f32
    %116 = vector.broadcast %cst_28 : f32 to vector<256x8xf32>
    %117 = arith.maximumf %115, %116 : vector<256x8xf32>
    %118 = vector.shape_cast %117 : vector<256x8xf32> to vector<16x16x8xf32>
    %119 = arith.addf %10, %118 : vector<16x16x8xf32>
    %c0_29 = arith.constant 0 : index
    %c0_30 = arith.constant 0 : index
    %c0_31 = arith.constant 0 : index
    %c0_32 = arith.constant 0 : index
    %120 = vector.load %arg8[%c0_29, %c0_30, %c0_31, %c0_32] : memref<1x16x16x8xf32, #tpu.memory_space<vmem>>, vector<1x16x16x8xf32>
    %121 = vector.shape_cast %120 : vector<1x16x16x8xf32> to vector<16x16x8xf32>
    %122 = vector.shape_cast %119 : vector<16x16x8xf32> to vector<1x16x16x8xf32>
    tpu.vector_store %arg8[%c0_29, %c0_30, %c0_31, %c0_32], %122 {strides = array<i32>} : memref<1x16x16x8xf32, #tpu.memory_space<vmem>>, vector<1x16x16x8xf32>,
    return
  }
  func.func @transform_0(%arg0: i32) -> (i32, i32, i32, i32) {
    %c0_i32 = arith.constant 0 : i32
    %c0_i32_0 = arith.constant 0 : i32
    %c0_i32_1 = arith.constant 0 : i32
    %c0_i32_2 = arith.constant 0 : i32
    return %arg0, %c0_i32, %c0_i32_0, %c0_i32_1 : i32, i32, i32, i32
  }
  func.func @transform_1(%arg0: i32) -> (i32, i32) {
    %c0_i32 = arith.constant 0 : i32
    %c0_i32_0 = arith.constant 0 : i32
    %c0_i32_1 = arith.constant 0 : i32
    return %c0_i32, %c0_i32_0 : i32, i32
  }
  func.func @transform_2(%arg0: i32) -> (i32, i32) {
    %c0_i32 = arith.constant 0 : i32
    %c0_i32_0 = arith.constant 0 : i32
    %c0_i32_1 = arith.constant 0 : i32
    return %c0_i32, %c0_i32_0 : i32, i32
  }
  func.func @transform_3(%arg0: i32) -> (i32, i32) {
    %c0_i32 = arith.constant 0 : i32
    %c0_i32_0 = arith.constant 0 : i32
    %c0_i32_1 = arith.constant 0 : i32
    return %c0_i32, %c0_i32_0 : i32, i32
  }
  func.func @transform_4(%arg0: i32) -> (i32, i32) {
    %c0_i32 = arith.constant 0 : i32
    %c0_i32_0 = arith.constant 0 : i32
    %c0_i32_1 = arith.constant 0 : i32
    return %c0_i32, %c0_i32_0 : i32, i32
  }
  func.func @transform_5(%arg0: i32) -> (i32, i32) {
    %c0_i32 = arith.constant 0 : i32
    %c0_i32_0 = arith.constant 0 : i32
    %c0_i32_1 = arith.constant 0 : i32
    return %c0_i32, %c0_i32_0 : i32, i32
  }
  func.func @transform_6(%arg0: i32) -> (i32, i32) {
    %c0_i32 = arith.constant 0 : i32
    %c0_i32_0 = arith.constant 0 : i32
    %c0_i32_1 = arith.constant 0 : i32
    return %c0_i32, %c0_i32_0 : i32, i32
  }
  func.func @transform_7(%arg0: i32) -> (i32, i32, i32, i32) {
    %c0_i32 = arith.constant 0 : i32
    %c0_i32_0 = arith.constant 0 : i32
    %c0_i32_1 = arith.constant 0 : i32
    %c0_i32_2 = arith.constant 0 : i32
    return %arg0, %c0_i32, %c0_i32_0, %c0_i32_1 : i32, i32, i32, i32
  }
}

</mosaic_0001>

<llo_original>
// kernel: tpu_custom_call.1
$region0: #{tpu_custom_call.1}
  #allocation0 [shape = 'u32[]', space=smem, size = 0x4, offset = 0x4, fixed_abs, tag = 'smem constant byte address 0x4 - core index']
  #allocation1 [shape = 'u32[144,128]{1,0:T(1,128)}', space=vmem, size = 0x12000, scoped, tag = 'internal scratch']
  %s0 = inlined_call_operand.vmem [shape: f32[2,16,16,4], index: 0, kind: input, shape index: {}]
  %s1 = inlined_call_operand.vmem [shape: f32[4,8], index: 1, kind: input, shape index: {}]
  %s2 = inlined_call_operand.vmem [shape: f32[1,8], index: 2, kind: input, shape index: {}]
  %s3 = inlined_call_operand.vmem [shape: f32[72,8], index: 3, kind: input, shape index: {}]
  %s4 = inlined_call_operand.vmem [shape: f32[1,8], index: 4, kind: input, shape index: {}]
  %s5 = inlined_call_operand.vmem [shape: f32[72,8], index: 5, kind: input, shape index: {}]
  %s6 = inlined_call_operand.vmem [shape: f32[1,8], index: 6, kind: input, shape index: {}]
  %s7 = inlined_call_operand.vmem [shape: f32[2,16,16,8], index: 7, kind: output, shape index: {}]
  %s8 = sld [smem:[#allocation0]]
  $region61: #{tpu_custom_call.1} parent=0
    _
  %s10 = ssub.s32 1, %s8
  %s11 = scalar_select 0, %s10, %s8
  loop: start=0, step=1, limit=4
  $region2: #{tpu_custom_call.1} parent=0 // loop_pre_header
    _
  $region3: #{tpu_custom_call.1} parent=0 // loop_header
    %s13 = sphi 0, %s17
    %p14 = scmp.ge.s32.totalorder %s13, 4
    %s23 = sphi 0, %s25
    %s26 = sphi 0, %s23
    %s27 = sphi 0, %s26
    %s43 = sphi 0, %s27
    %s47 = sphi 0, %s47
    %s49 = sphi 0, %s47
    %s50 = sphi 0, %s49
    %s64 = sphi 0, %s50
    %s68 = sphi 0, %s68
    %s70 = sphi 0, %s68
    %s71 = sphi 0, %s70
    %s85 = sphi 0, %s71
    %s89 = sphi 0, %s89
    %s91 = sphi 0, %s89
    %s92 = sphi 0, %s91
    %s106 = sphi 0, %s92
    %s110 = sphi 0, %s110
    %s112 = sphi 0, %s110
    %s113 = sphi 0, %s112
    %s127 = sphi 0, %s113
    %s131 = sphi 0, %s131
    %s133 = sphi 0, %s131
    %s134 = sphi 0, %s133
    %s148 = sphi 0, %s134
    %s152 = sphi 0, %s152
    %s154 = sphi 0, %s152
    %s155 = sphi 0, %s154
    %s169 = sphi 0, %s155
    %s175 = sphi 0, %s177
    %s178 = sphi 0, %s175
    %s179 = sphi 0, %s178
    %s195 = sphi 0, %s179
  $region4: #{tpu_custom_call.1} parent=0 // loop_header_branch
    %16 = sbr.rel (%p14) target = $region8
  $region5: #{tpu_custom_call.1} parent=0 // loop_body
    %s18 = ssub.s32 %s13, 1
    %s19 = ssub.s32 %s13, 2
    %s20 = sadd.s32 %s13, 1
    %s21 = ssub.s32 %s13, %s20
    %p22 = scmp.eq.s32.totalorder %s21, 0
    %s24 = sadd.s32 %s23, 1
    %s25 = scalar_select %p22, %s23, %s24
    %p28 = pneg %p22
    %p29 = scmp.eq.s32.totalorder %s13, 1
    %p30 = por %p28, %p29
    %p31 = scmp.ne.s32.totalorder %s23, %s26
    %p32 = scmp.eq.s32.totalorder %s13, 0
    %p33 = por %p31, %p32
    %p34 = scmp.ne.s32.totalorder %s23, %s26
    %p35 = scmp.eq.s32.totalorder %s18, 1
    %p36 = por %p34, %p35
    %p37 = scmp.ne.s32.totalorder %s26, %s27
    %p38 = scmp.eq.s32.totalorder %s18, 0
    %p39 = por %p37, %p38
    %p40 = scmp.ne.s32.totalorder %s26, %s27
    %p41 = scmp.eq.s32.totalorder %s19, 1
    %p42 = por %p40, %p41
    %p44 = scmp.ne.s32.totalorder %s27, %s43
    %p45 = scmp.eq.s32.totalorder %s19, 0
    %p46 = por %p44, %p45
    %s48 = sadd.s32 %s47, 1
    %p51 = scmp.eq.s32.totalorder %s13, 1
    %p52 = scmp.ne.s32.totalorder %s47, %s49
    %p53 = scmp.eq.s32.totalorder %s13, 0
    %p54 = por %p52, %p53
    %p55 = scmp.ne.s32.totalorder %s47, %s49
    %p56 = scmp.eq.s32.totalorder %s18, 1
    %p57 = por %p55, %p56
    %p58 = scmp.ne.s32.totalorder %s49, %s50
    %p59 = scmp.eq.s32.totalorder %s18, 0
    %p60 = por %p58, %p59
    %p61 = scmp.ne.s32.totalorder %s49, %s50
    %p62 = scmp.eq.s32.totalorder %s19, 1
    %p63 = por %p61, %p62
    %p65 = scmp.ne.s32.totalorder %s50, %s64
    %p66 = scmp.eq.s32.totalorder %s19, 0
    %p67 = por %p65, %p66
    %s69 = sadd.s32 %s68, 1
    %p72 = scmp.eq.s32.totalorder %s13, 1
    %p73 = scmp.ne.s32.totalorder %s68, %s70
    %p74 = scmp.eq.s32.totalorder %s13, 0
    %p75 = por %p73, %p74
    %p76 = scmp.ne.s32.totalorder %s68, %s70
    %p77 = scmp.eq.s32.totalorder %s18, 1
    %p78 = por %p76, %p77
    %p79 = scmp.ne.s32.totalorder %s70, %s71
    %p80 = scmp.eq.s32.totalorder %s18, 0
    %p81 = por %p79, %p80
    %p82 = scmp.ne.s32.totalorder %s70, %s71
    %p83 = scmp.eq.s32.totalorder %s19, 1
    %p84 = por %p82, %p83
    %p86 = scmp.ne.s32.totalorder %s71, %s85
    %p87 = scmp.eq.s32.totalorder %s19, 0
    %p88 = por %p86, %p87
    %s90 = sadd.s32 %s89, 1
    %p93 = scmp.eq.s32.totalorder %s13, 1
    %p94 = scmp.ne.s32.totalorder %s89, %s91
    %p95 = scmp.eq.s32.totalorder %s13, 0
    %p96 = por %p94, %p95
    %p97 = scmp.ne.s32.totalorder %s89, %s91
    %p98 = scmp.eq.s32.totalorder %s18, 1
    %p99 = por %p97, %p98
    %p100 = scmp.ne.s32.totalorder %s91, %s92
    %p101 = scmp.eq.s32.totalorder %s18, 0
    %p102 = por %p100, %p101
    %p103 = scmp.ne.s32.totalorder %s91, %s92
    %p104 = scmp.eq.s32.totalorder %s19, 1
    %p105 = por %p103, %p104
    %p107 = scmp.ne.s32.totalorder %s92, %s106
    %p108 = scmp.eq.s32.totalorder %s19, 0
    %p109 = por %p107, %p108
    %s111 = sadd.s32 %s110, 1
    %p114 = scmp.eq.s32.totalorder %s13, 1
    %p115 = scmp.ne.s32.totalorder %s110, %s112
    %p116 = scmp.eq.s32.totalorder %s13, 0
    %p117 = por %p115, %p116
    %p118 = scmp.ne.s32.totalorder %s110, %s112
    %p119 = scmp.eq.s32.totalorder %s18, 1
    %p120 = por %p118, %p119
    %p121 = scmp.ne.s32.totalorder %s112, %s113
    %p122 = scmp.eq.s32.totalorder %s18, 0
    %p123 = por %p121, %p122
    %p124 = scmp.ne.s32.totalorder %s112, %s113
    %p125 = scmp.eq.s32.totalorder %s19, 1
    %p126 = por %p124, %p125
    %p128 = scmp.ne.s32.totalorder %s113, %s127
    %p129 = scmp.eq.s32.totalorder %s19, 0
    %p130 = por %p128, %p129
    %s132 = sadd.s32 %s131, 1
    %p135 = scmp.eq.s32.totalorder %s13, 1
    %p136 = scmp.ne.s32.totalorder %s131, %s133
    %p137 = scmp.eq.s32.totalorder %s13, 0
    %p138 = por %p136, %p137
    %p139 = scmp.ne.s32.totalorder %s131, %s133
    %p140 = scmp.eq.s32.totalorder %s18, 1
    %p141 = por %p139, %p140
    %p142 = scmp.ne.s32.totalorder %s133, %s134
    %p143 = scmp.eq.s32.totalorder %s18, 0
    %p144 = por %p142, %p143
    %p145 = scmp.ne.s32.totalorder %s133, %s134
    %p146 = scmp.eq.s32.totalorder %s19, 1
    %p147 = por %p145, %p146
    %p149 = scmp.ne.s32.totalorder %s134, %s148
    %p150 = scmp.eq.s32.totalorder %s19, 0
    %p151 = por %p149, %p150
    %s153 = sadd.s32 %s152, 1
    %p156 = scmp.eq.s32.totalorder %s13, 1
    %p157 = scmp.ne.s32.totalorder %s152, %s154
    %p158 = scmp.eq.s32.totalorder %s13, 0
    %p159 = por %p157, %p158
    %p160 = scmp.ne.s32.totalorder %s152, %s154
    %p161 = scmp.eq.s32.totalorder %s18, 1
    %p162 = por %p160, %p161
    %p163 = scmp.ne.s32.totalorder %s154, %s155
    %p164 = scmp.eq.s32.totalorder %s18, 0
    %p165 = por %p163, %p164
    %p166 = scmp.ne.s32.totalorder %s154, %s155
    %p167 = scmp.eq.s32.totalorder %s19, 1
    %p168 = por %p166, %p167
    %p170 = scmp.ne.s32.totalorder %s155, %s169
    %p171 = scmp.eq.s32.totalorder %s19, 0
    %p172 = por %p170, %p171
    %s173 = ssub.s32 %s13, %s20
    %p174 = scmp.eq.s32.totalorder %s173, 0
    %s176 = sadd.s32 %s175, 1
    %s177 = scalar_select %p174, %s175, %s176
    %p180 = pneg %p174
    %p181 = scmp.eq.s32.totalorder %s13, 1
    %p182 = por %p180, %p181
    %p183 = scmp.ne.s32.totalorder %s175, %s178
    %p184 = scmp.eq.s32.totalorder %s13, 0
    %p185 = por %p183, %p184
    %p186 = scmp.ne.s32.totalorder %s175, %s178
    %p187 = scmp.eq.s32.totalorder %s18, 1
    %p188 = por %p186, %p187
    %p189 = scmp.ne.s32.totalorder %s178, %s179
    %p190 = scmp.eq.s32.totalorder %s18, 0
    %p191 = por %p189, %p190
    %p192 = scmp.ne.s32.totalorder %s178, %s179
    %p193 = scmp.eq.s32.totalorder %s19, 1
    %p194 = por %p192, %p193
    %p196 = scmp.ne.s32.totalorder %s179, %s195
    %p197 = scmp.eq.s32.totalorder %s19, 0
    %p198 = por %p196, %p197
    %p199 = scmp.le.s32.totalorder 1, %s13
    %p200 = scmp.lt.s32.totalorder %s13, 3
    %p201 = pnand %p199, %p200
    %p202 = pneg %p201
    // Predicated region
    $region9: #{tpu_custom_call.1} parent=5 // pred_check
      _
    $region10: #{tpu_custom_call.1} parent=5 // pred_check_branch
      %204 = sbr.rel (%p201) target = $region12
    $region11: #{tpu_custom_call.1} parent=5 // pred_region
      %s205 = ssub.s32 %s13, 1
      // Predicated region
      $region13: #{tpu_custom_call.1} parent=11 // pred_check
        %p206 = pneg %p60
      $region14: #{tpu_custom_call.1} parent=11 // pred_check_branch
        %208 = sbr.rel (%p206) target = $region16
      $region15: #{tpu_custom_call.1} parent=11 // pred_region
        _
      $region16: #{tpu_custom_call.1} parent=11 // pred_fallthru
        _
      // Predicated region
      $region17: #{tpu_custom_call.1} parent=11 // pred_check
        %p209 = pneg %p81
      $region18: #{tpu_custom_call.1} parent=11 // pred_check_branch
        %211 = sbr.rel (%p209) target = $region20
      $region19: #{tpu_custom_call.1} parent=11 // pred_region
        _
      $region20: #{tpu_custom_call.1} parent=11 // pred_fallthru
        _
      // Predicated region
      $region21: #{tpu_custom_call.1} parent=11 // pred_check
        %p212 = pneg %p102
      $region22: #{tpu_custom_call.1} parent=11 // pred_check_branch
        %214 = sbr.rel (%p212) target = $region24
      $region23: #{tpu_custom_call.1} parent=11 // pred_region
        _
      $region24: #{tpu_custom_call.1} parent=11 // pred_fallthru
        _
      // Predicated region
      $region25: #{tpu_custom_call.1} parent=11 // pred_check
        %p215 = pneg %p123
      $region26: #{tpu_custom_call.1} parent=11 // pred_check_branch
        %217 = sbr.rel (%p215) target = $region28
      $region27: #{tpu_custom_call.1} parent=11 // pred_region
        _
      $region28: #{tpu_custom_call.1} parent=11 // pred_fallthru
        _
      // Predicated region
      $region29: #{tpu_custom_call.1} parent=11 // pred_check
        %p218 = pneg %p144
      $region30: #{tpu_custom_call.1} parent=11 // pred_check_branch
        %220 = sbr.rel (%p218) target = $region32
      $region31: #{tpu_custom_call.1} parent=11 // pred_region
        _
      $region32: #{tpu_custom_call.1} parent=11 // pred_fallthru
        _
      // Predicated region
      $region33: #{tpu_custom_call.1} parent=11 // pred_check
        %p221 = pneg %p165
      $region34: #{tpu_custom_call.1} parent=11 // pred_check_branch
        %223 = sbr.rel (%p221) target = $region36
      $region35: #{tpu_custom_call.1} parent=11 // pred_region
        _
      $region36: #{tpu_custom_call.1} parent=11 // pred_fallthru
        _
    $region12: #{tpu_custom_call.1} parent=5 // pred_fallthru
      _
    %p224 = scmp.lt.s32.totalorder %s13, 2
    // Predicated region
    $region37: #{tpu_custom_call.1} parent=5 // pred_check
      %p225 = pneg %p224
    $region38: #{tpu_custom_call.1} parent=5 // pred_check_branch
      %227 = sbr.rel (%p225) target = $region40
    $region39: #{tpu_custom_call.1} parent=5 // pred_region
      // Predicated region
      $region41: #{tpu_custom_call.1} parent=39 // pred_check
        %p228 = pneg %p33
      $region42: #{tpu_custom_call.1} parent=39 // pred_check_branch
        %230 = sbr.rel (%p228) target = $region44
      $region43: #{tpu_custom_call.1} parent=39 // pred_region
        %p231 = scmp.lt.s32.totalorder %s13, 1
        %s232 = scalar_select %p231, %s13, 1
        %s233 = smul.addr %s232, 32
        %s234 = smul.addr %s233, 8
        %s235 = scalar_lea.vmem %s0, %s234
      $region44: #{tpu_custom_call.1} parent=39 // pred_fallthru
        _
    $region40: #{tpu_custom_call.1} parent=5 // pred_fallthru
      _
    %p236 = scmp.le.s32.totalorder 1, %s13
    %p237 = scmp.lt.s32.totalorder %s13, 3
    %p238 = pnand %p236, %p237
    %p239 = pneg %p238
    // Predicated region
    $region45: #{tpu_custom_call.1} parent=5 // pred_check
      _
    $region46: #{tpu_custom_call.1} parent=5 // pred_check_branch
      %241 = sbr.rel (%p238) target = $region48
    $region47: #{tpu_custom_call.1} parent=5 // pred_region
      %s242 = ssub.s32 %s13, 1
      %p243 = scmp.lt.s32.totalorder %s18, 1
      %s244 = scalar_select %p243, %s18, 1
      %s245 = smul.addr %s244, 32
      %s246 = smul.addr %s245, 8
      %s247 = scalar_lea.vmem %s0, %s246
      %p248 = pneg %p39
      %p249 = pneg %p36
      %p250 = pneg %p60
      %p251 = pneg %p57
      %p252 = pneg %p81
      %p253 = pneg %p78
      %p254 = pneg %p102
      %p255 = pneg %p99
      %p256 = pneg %p123
      %p257 = pneg %p120
      %p258 = pneg %p144
      %p259 = pneg %p141
      %p260 = pneg %p165
      %p261 = pneg %p162
      %p262 = pneg %p191
      %p263 = pneg %p188
      %p264 = scmp.lt.s32.totalorder %s18, 1
      %s265 = scalar_select %p264, %s18, 1
      %s266 = smul.addr %s265, 32
      %s267 = smul.addr %s266, 8
      %s268 = scalar_lea.vmem %s7, %s267
      %p269 = scmp.lt.s32.totalorder %s18, 1
      %s270 = scalar_select %p269, %s18, 1
      %s271 = smul.addr %s270, 32
      %s272 = smul.addr %s271, 8
      %s273 = scalar_lea.vmem %s0, %s272
      %p274 = scmp.lt.s32.totalorder %s18, 1
      %s275 = scalar_select %p274, %s18, 1
      %s276 = smul.addr %s275, 32
      %s277 = smul.addr %s276, 8
      %s278 = scalar_lea.vmem %s7, %s277
      %v279 = vld [vmem:[%s273] sm:$0xff]
      %v280 = vld [vmem:[%s273 + $0x8] sm:$0xff]
      %v281 = vld [vmem:[%s273 + $0x10] sm:$0xff]
      %v282 = vld [vmem:[%s273 + $0x18] sm:$0xff]
      %v283 = vld [vmem:[%s273 + $0x20] sm:$0xff]
      %v284 = vld [vmem:[%s273 + $0x28] sm:$0xff]
      %v285 = vld [vmem:[%s273 + $0x30] sm:$0xff]
      %v286 = vld [vmem:[%s273 + $0x38] sm:$0xff]
      %v287 = vld [vmem:[%s273 + $0x40] sm:$0xff]
      %v288 = vld [vmem:[%s273 + $0x48] sm:$0xff]
      %v289 = vld [vmem:[%s273 + $0x50] sm:$0xff]
      %v290 = vld [vmem:[%s273 + $0x58] sm:$0xff]
      %v291 = vld [vmem:[%s273 + $0x60] sm:$0xff]
      %v292 = vld [vmem:[%s273 + $0x68] sm:$0xff]
      %v293 = vld [vmem:[%s273 + $0x70] sm:$0xff]
      %v294 = vld [vmem:[%s273 + $0x78] sm:$0xff]
      %v295 = vld [vmem:[%s273 + $0x80] sm:$0xff]
      %v296 = vld [vmem:[%s273 + $0x88] sm:$0xff]
      %v297 = vld [vmem:[%s273 + $0x90] sm:$0xff]
      %v298 = vld [vmem:[%s273 + $0x98] sm:$0xff]
      %v299 = vld [vmem:[%s273 + $0xa0] sm:$0xff]
      %v300 = vld [vmem:[%s273 + $0xa8] sm:$0xff]
      %v301 = vld [vmem:[%s273 + $0xb0] sm:$0xff]
      %v302 = vld [vmem:[%s273 + $0xb8] sm:$0xff]
      %v303 = vld [vmem:[%s273 + $0xc0] sm:$0xff]
      %v304 = vld [vmem:[%s273 + $0xc8] sm:$0xff]
      %v305 = vld [vmem:[%s273 + $0xd0] sm:$0xff]
      %v306 = vld [vmem:[%s273 + $0xd8] sm:$0xff]
      %v307 = vld [vmem:[%s273 + $0xe0] sm:$0xff]
      %v308 = vld [vmem:[%s273 + $0xe8] sm:$0xff]
      %v309 = vld [vmem:[%s273 + $0xf0] sm:$0xff]
      %v310 = vld [vmem:[%s273 + $0xf8] sm:$0xff]
      %v311 = vld [vmem:[%s1] sm:$0xf]
      %v312 = vld [vmem:[%s2] sm:$0x1]
      %v314 = vlaneseq
      %v315 = vshrl.u32 %v314, 7
      %v316 = vsub.s32 0, %v315
      %v317 = vrot.slane %v312, %v316
      %vm319 = vcmask 31744
      %v321 = vsel %vm319, %v279, 0
      %v324 = vsel %vm319, %v280, 0
      %v327 = vsel %vm319, %v281, 0
      %v330 = vsel %vm319, %v282, 0
      %v333 = vsel %vm319, %v283, 0
      %v336 = vsel %vm319, %v284, 0
      %v339 = vsel %vm319, %v285, 0
      %v342 = vsel %vm319, %v286, 0
      %v345 = vsel %vm319, %v287, 0
      %v348 = vsel %vm319, %v288, 0
      %v351 = vsel %vm319, %v289, 0
      %v354 = vsel %vm319, %v290, 0
      %v357 = vsel %vm319, %v291, 0
      %v360 = vsel %vm319, %v292, 0
      %v363 = vsel %vm319, %v293, 0
      %v366 = vsel %vm319, %v294, 0
      %v369 = vsel %vm319, %v295, 0
      %v372 = vsel %vm319, %v296, 0
      %v375 = vsel %vm319, %v297, 0
      %v378 = vsel %vm319, %v298, 0
      %v381 = vsel %vm319, %v299, 0
      %v384 = vsel %vm319, %v300, 0
      %v387 = vsel %vm319, %v301, 0
      %v390 = vsel %vm319, %v302, 0
      %v393 = vsel %vm319, %v303, 0
      %v396 = vsel %vm319, %v304, 0
      %v399 = vsel %vm319, %v305, 0
      %v402 = vsel %vm319, %v306, 0
      %v405 = vsel %vm319, %v307, 0
      %v408 = vsel %vm319, %v308, 0
      %v411 = vsel %vm319, %v309, 0
      %v414 = vsel %vm319, %v310, 0
      %vm416 = vcmask 1043456
      %v418 = vsel %vm416, %v311, 0
      %420 = vmatprep.subr.mxu0 0.0
      %421 = vmatpush1.msra.mxu0 %v418
      %422 = vmatprep.subr.mxu0 0.0
      %423 = vmatpush1.msra.mxu0 0.0
      %424 = vmatprep.subr.mxu0 0.0
      %425 = vmatpush1.msra.mxu0 0.0
      %426 = vmatprep.subr.mxu0 0.0
      %427 = vmatpush1.msra.mxu0 0.0
      %428 = vmatprep.subr.mxu0 0.0
      %429 = vmatpush1.msra.mxu0 0.0
      %430 = vmatprep.subr.mxu0 0.0
      %431 = vmatpush1.msra.mxu0 0.0
      %432 = vmatprep.subr.mxu0 0.0
      %433 = vmatpush1.msra.mxu0 0.0
      %434 = vmatprep.subr.mxu0 0.0
      %435 = vmatpush1.msra.mxu0 0.0
      %436 = vmatprep.subr.mxu0 0.0
      %437 = vmatpush1.msra.mxu0 0.0
      %438 = vmatprep.subr.mxu0 0.0
      %439 = vmatpush1.msra.mxu0 0.0
      %440 = vmatprep.subr.mxu0 0.0
      %441 = vmatpush1.msra.mxu0 0.0
      %442 = vmatprep.subr.mxu0 0.0
      %443 = vmatpush1.msra.mxu0 0.0
      %444 = vmatprep.subr.mxu0 0.0
      %445 = vmatpush1.msra.mxu0 0.0
      %446 = vmatprep.subr.mxu0 0.0
      %447 = vmatpush1.msra.mxu0 0.0
      %448 = vmatprep.subr.mxu0 0.0
      %449 = vmatpush1.msra.mxu0 0.0
      %450 = vmatprep.subr.mxu0 0.0
      %451 = vmatpush1.msra.mxu0 0.0
      %452 = vmatprep.subr.mxu0 0.0
      %453 = vmatpush1.msra.mxu0 0.0
      %454 = vmatprep.subr.mxu0 0.0
      %455 = vmatpush1.msra.mxu0 0.0
      %456 = vmatprep.subr.mxu0 0.0
      %457 = vmatpush1.msra.mxu0 0.0
      %458 = vmatprep.subr.mxu0 0.0
      %459 = vmatpush1.msra.mxu0 0.0
      %460 = vmatprep.subr.mxu0 0.0
      %461 = vmatpush1.msra.mxu0 0.0
      %462 = vmatprep.subr.mxu0 0.0
      %463 = vmatpush1.msra.mxu0 0.0
      %464 = vmatprep.subr.mxu0 0.0
      %465 = vmatpush1.msra.mxu0 0.0
      %466 = vmatprep.subr.mxu0 0.0
      %467 = vmatpush1.msra.mxu0 0.0
      %468 = vmatprep.subr.mxu0 0.0
      %469 = vmatpush1.msra.mxu0 0.0
      %470 = vmatprep.subr.mxu0 0.0
      %471 = vmatpush1.msra.mxu0 0.0
      %472 = vmatprep.subr.mxu0 0.0
      %473 = vmatpush1.msra.mxu0 0.0
      %474 = vmatprep.subr.mxu0 0.0
      %475 = vmatpush1.msra.mxu0 0.0
      %476 = vmatprep.subr.mxu0 0.0
      %477 = vmatpush1.msra.mxu0 0.0
      %478 = vmatprep.subr.mxu0 0.0
      %479 = vmatpush1.msra.mxu0 0.0
      %480 = vmatprep.subr.mxu0 0.0
      %481 = vmatpush1.msra.mxu0 0.0
      %482 = vmatprep.subr.mxu0 0.0
      %483 = vmatpush1.msra.mxu0 0.0
      %484 = vmatprep.mubr.f32.mxu0 0.0
      %485 = vmatmul.mubr.f32.gmra.mrb[0].mxu0 %v321
      %v486 = vpop.f32.mrb[0].mxu0
      %v487 = vadd.f32 %v317, %v486
      %v488 = vpop.f32.mrb[0].mxu0
      %489 = vmatprep.mubr.f32.mxu0 0.0
      %490 = vmatmul.mubr.f32.gmra.mrb[0].mxu0 %v324
      %v491 = vpop.f32.mrb[0].mxu0
      %v492 = vadd.f32 %v317, %v491
      %v493 = vpop.f32.mrb[0].mxu0
      %494 = vmatprep.mubr.f32.mxu0 0.0
      %495 = vmatmul.mubr.f32.gmra.mrb[0].mxu0 %v327
      %v496 = vpop.f32.mrb[0].mxu0
      %v497 = vadd.f32 %v317, %v496
      %v498 = vpop.f32.mrb[0].mxu0
      %499 = vmatprep.mubr.f32.mxu0 0.0
      %500 = vmatmul.mubr.f32.gmra.mrb[0].mxu0 %v330
      %v501 = vpop.f32.mrb[0].mxu0
      %v502 = vadd.f32 %v317, %v501
      %v503 = vpop.f32.mrb[0].mxu0
      %504 = vmatprep.mubr.f32.mxu0 0.0
      %505 = vmatmul.mubr.f32.gmra.mrb[0].mxu0 %v333
      %v506 = vpop.f32.mrb[0].mxu0
      %v507 = vadd.f32 %v317, %v506
      %v508 = vpop.f32.mrb[0].mxu0
      %509 = vmatprep.mubr.f32.mxu0 0.0
      %510 = vmatmul.mubr.f32.gmra.mrb[0].mxu0 %v336
      %v511 = vpop.f32.mrb[0].mxu0
      %v512 = vadd.f32 %v317, %v511
      %v513 = vpop.f32.mrb[0].mxu0
      %514 = vmatprep.mubr.f32.mxu0 0.0
      %515 = vmatmul.mubr.f32.gmra.mrb[0].mxu0 %v339
      %v516 = vpop.f32.mrb[0].mxu0
      %v517 = vadd.f32 %v317, %v516
      %v518 = vpop.f32.mrb[0].mxu0
      %519 = vmatprep.mubr.f32.mxu0 0.0
      %520 = vmatmul.mubr.f32.gmra.mrb[0].mxu0 %v342
      %v521 = vpop.f32.mrb[0].mxu0
      %v522 = vadd.f32 %v317, %v521
      %v523 = vpop.f32.mrb[0].mxu0
      %524 = vmatprep.mubr.f32.mxu0 0.0
      %525 = vmatmul.mubr.f32.gmra.mrb[0].mxu0 %v345
      %v526 = vpop.f32.mrb[0].mxu0
      %v527 = vadd.f32 %v317, %v526
      %v528 = vpop.f32.mrb[0].mxu0
      %529 = vmatprep.mubr.f32.mxu0 0.0
      %530 = vmatmul.mubr.f32.gmra.mrb[0].mxu0 %v348
      %v531 = vpop.f32.mrb[0].mxu0
      %v532 = vadd.f32 %v317, %v531
      %v533 = vpop.f32.mrb[0].mxu0
      %534 = vmatprep.mubr.f32.mxu0 0.0
      %535 = vmatmul.mubr.f32.gmra.mrb[0].mxu0 %v351
      %v536 = vpop.f32.mrb[0].mxu0
      %v537 = vadd.f32 %v317, %v536
      %v538 = vpop.f32.mrb[0].mxu0
      %539 = vmatprep.mubr.f32.mxu0 0.0
      %540 = vmatmul.mubr.f32.gmra.mrb[0].mxu0 %v354
      %v541 = vpop.f32.mrb[0].mxu0
      %v542 = vadd.f32 %v317, %v541
      %v543 = vpop.f32.mrb[0].mxu0
      %544 = vmatprep.mubr.f32.mxu0 0.0
      %545 = vmatmul.mubr.f32.gmra.mrb[0].mxu0 %v357
      %v546 = vpop.f32.mrb[0].mxu0
      %v547 = vadd.f32 %v317, %v546
      %v548 = vpop.f32.mrb[0].mxu0
      %549 = vmatprep.mubr.f32.mxu0 0.0
      %550 = vmatmul.mubr.f32.gmra.mrb[0].mxu0 %v360
      %v551 = vpop.f32.mrb[0].mxu0
      %v552 = vadd.f32 %v317, %v551
      %v553 = vpop.f32.mrb[0].mxu0
      %554 = vmatprep.mubr.f32.mxu0 0.0
      %555 = vmatmul.mubr.f32.gmra.mrb[0].mxu0 %v363
      %v556 = vpop.f32.mrb[0].mxu0
      %v557 = vadd.f32 %v317, %v556
      %v558 = vpop.f32.mrb[0].mxu0
      %559 = vmatprep.mubr.f32.mxu0 0.0
      %560 = vmatmul.mubr.f32.gmra.mrb[0].mxu0 %v366
      %v561 = vpop.f32.mrb[0].mxu0
      %v562 = vadd.f32 %v317, %v561
      %v563 = vpop.f32.mrb[0].mxu0
      %564 = vmatprep.mubr.f32.mxu0 0.0
      %565 = vmatmul.mubr.f32.gmra.mrb[0].mxu0 %v369
      %v566 = vpop.f32.mrb[0].mxu0
      %v567 = vadd.f32 %v317, %v566
      %v568 = vpop.f32.mrb[0].mxu0
      %569 = vmatprep.mubr.f32.mxu0 0.0
      %570 = vmatmul.mubr.f32.gmra.mrb[0].mxu0 %v372
      %v571 = vpop.f32.mrb[0].mxu0
      %v572 = vadd.f32 %v317, %v571
      %v573 = vpop.f32.mrb[0].mxu0
      %574 = vmatprep.mubr.f32.mxu0 0.0
      %575 = vmatmul.mubr.f32.gmra.mrb[0].mxu0 %v375
      %v576 = vpop.f32.mrb[0].mxu0
      %v577 = vadd.f32 %v317, %v576
      %v578 = vpop.f32.mrb[0].mxu0
      %579 = vmatprep.mubr.f32.mxu0 0.0
      %580 = vmatmul.mubr.f32.gmra.mrb[0].mxu0 %v378
      %v581 = vpop.f32.mrb[0].mxu0
      %v582 = vadd.f32 %v317, %v581
      %v583 = vpop.f32.mrb[0].mxu0
      %584 = vmatprep.mubr.f32.mxu0 0.0
      %585 = vmatmul.mubr.f32.gmra.mrb[0].mxu0 %v381
      %v586 = vpop.f32.mrb[0].mxu0
      %v587 = vadd.f32 %v317, %v586
      %v588 = vpop.f32.mrb[0].mxu0
      %589 = vmatprep.mubr.f32.mxu0 0.0
      %590 = vmatmul.mubr.f32.gmra.mrb[0].mxu0 %v384
      %v591 = vpop.f32.mrb[0].mxu0
      %v592 = vadd.f32 %v317, %v591
      %v593 = vpop.f32.mrb[0].mxu0
      %594 = vmatprep.mubr.f32.mxu0 0.0
      %595 = vmatmul.mubr.f32.gmra.mrb[0].mxu0 %v387
      %v596 = vpop.f32.mrb[0].mxu0
      %v597 = vadd.f32 %v317, %v596
      %v598 = vpop.f32.mrb[0].mxu0
      %599 = vmatprep.mubr.f32.mxu0 0.0
      %600 = vmatmul.mubr.f32.gmra.mrb[0].mxu0 %v390
      %v601 = vpop.f32.mrb[0].mxu0
      %v602 = vadd.f32 %v317, %v601
      %v603 = vpop.f32.mrb[0].mxu0
      %604 = vmatprep.mubr.f32.mxu0 0.0
      %605 = vmatmul.mubr.f32.gmra.mrb[0].mxu0 %v393
      %v606 = vpop.f32.mrb[0].mxu0
      %v607 = vadd.f32 %v317, %v606
      %v608 = vpop.f32.mrb[0].mxu0
      %609 = vmatprep.mubr.f32.mxu0 0.0
      %610 = vmatmul.mubr.f32.gmra.mrb[0].mxu0 %v396
      %v611 = vpop.f32.mrb[0].mxu0
      %v612 = vadd.f32 %v317, %v611
      %v613 = vpop.f32.mrb[0].mxu0
      %614 = vmatprep.mubr.f32.mxu0 0.0
      %615 = vmatmul.mubr.f32.gmra.mrb[0].mxu0 %v399
      %v616 = vpop.f32.mrb[0].mxu0
      %v617 = vadd.f32 %v317, %v616
      %v618 = vpop.f32.mrb[0].mxu0
      %619 = vmatprep.mubr.f32.mxu0 0.0
      %620 = vmatmul.mubr.f32.gmra.mrb[0].mxu0 %v402
      %v621 = vpop.f32.mrb[0].mxu0
      %v622 = vadd.f32 %v317, %v621
      %v623 = vpop.f32.mrb[0].mxu0
      %624 = vmatprep.mubr.f32.mxu0 0.0
      %625 = vmatmul.mubr.f32.gmra.mrb[0].mxu0 %v405
      %v626 = vpop.f32.mrb[0].mxu0
      %v627 = vadd.f32 %v317, %v626
      %v628 = vpop.f32.mrb[0].mxu0
      %629 = vmatprep.mubr.f32.mxu0 0.0
      %630 = vmatmul.mubr.f32.gmra.mrb[0].mxu0 %v408
      %v631 = vpop.f32.mrb[0].mxu0
      %v632 = vadd.f32 %v317, %v631
      %v633 = vpop.f32.mrb[0].mxu0
      %634 = vmatprep.mubr.f32.mxu0 0.0
      %635 = vmatmul.mubr.f32.gmra.mrb[0].mxu0 %v411
      %v636 = vpop.f32.mrb[0].mxu0
      %v637 = vadd.f32 %v317, %v636
      %v638 = vpop.f32.mrb[0].mxu0
      %639 = vmatprep.mubr.f32.mxu0 0.0
      %640 = vmatmul.mubr.f32.gmra.mrb[0].mxu0 %v414
      %v641 = vpop.f32.mrb[0].mxu0
      %v642 = vadd.f32 %v317, %v641
      %v643 = vpop.f32.mrb[0].mxu0
      %644 = vdwg.mxu0
      %v645 = vld [vmem:[%s3] sm:$0xff]
      %v646 = vld [vmem:[%s3 + $0x8] sm:$0xff]
      %v647 = vld [vmem:[%s3 + $0x10] sm:$0xff]
      %v648 = vld [vmem:[%s3 + $0x18] sm:$0xff]
      %v649 = vld [vmem:[%s3 + $0x20] sm:$0xff]
      %v650 = vld [vmem:[%s3 + $0x28] sm:$0xff]
      %v651 = vld [vmem:[%s3 + $0x30] sm:$0xff]
      %v652 = vld [vmem:[%s3 + $0x38] sm:$0xff]
      %v653 = vld [vmem:[%s3 + $0x40] sm:$0xff]
      %v654 = vld [vmem:[%s4] sm:$0x1]
      %v656 = vlaneseq
      %v657 = vshrl.u32 %v656, 7
      %v658 = vsub.s32 0, %v657
      %v659 = vrot.slane %v654, %v658
      %vm693 = vcmask 1040384
      %v694 = vrot.slane %v487, 7
      %v695 = vrot.slane %v492, 7
      %v696 = vsel %vm693, %v694, %v695
      %v697 = vrot.slane %v497, 7
      %v698 = vrot.slane %v502, 7
      %v699 = vsel %vm693, %v697, %v698
      %v700 = vrot.slane %v507, 7
      %v701 = vrot.slane %v512, 7
      %v702 = vsel %vm693, %v700, %v701
      %v703 = vrot.slane %v517, 7
      %v704 = vrot.slane %v522, 7
      %v705 = vsel %vm693, %v703, %v704
      %v706 = vrot.slane %v527, 7
      %v707 = vrot.slane %v532, 7
      %v708 = vsel %vm693, %v706, %v707
      %v709 = vrot.slane %v537, 7
      %v710 = vrot.slane %v542, 7
      %v711 = vsel %vm693, %v709, %v710
      %v712 = vrot.slane %v547, 7
      %v713 = vrot.slane %v552, 7
      %v714 = vsel %vm693, %v712, %v713
      %v715 = vrot.slane %v557, 7
      %v716 = vrot.slane %v562, 7
      %v717 = vsel %vm693, %v715, %v716
      %v718 = vrot.slane %v567, 7
      %v719 = vrot.slane %v572, 7
      %v720 = vsel %vm693, %v718, %v719
      %v721 = vrot.slane %v577, 7
      %v722 = vrot.slane %v582, 7
      %v723 = vsel %vm693, %v721, %v722
      %v724 = vrot.slane %v587, 7
      %v725 = vrot.slane %v592, 7
      %v726 = vsel %vm693, %v724, %v725
      %v727 = vrot.slane %v597, 7
      %v728 = vrot.slane %v602, 7
      %v729 = vsel %vm693, %v727, %v728
      %v730 = vrot.slane %v607, 7
      %v731 = vrot.slane %v612, 7
      %v732 = vsel %vm693, %v730, %v731
      %v733 = vrot.slane %v617, 7
      %v734 = vrot.slane %v622, 7
      %v735 = vsel %vm693, %v733, %v734
      %v736 = vrot.slane %v627, 7
      %v737 = vrot.slane %v632, 7
      %v738 = vsel %vm693, %v736, %v737
      %v739 = vrot.slane %v637, 7
      %v740 = vrot.slane %v642, 7
      %v741 = vsel %vm693, %v739, %v740
      %v774 = vsel %vm693, 0.0, %v694
      %v775 = vsel %vm693, 0.0, %v697
      %v776 = vsel %vm693, 0.0, %v700
      %v777 = vsel %vm693, 0.0, %v703
      %v778 = vsel %vm693, 0.0, %v706
      %v779 = vsel %vm693, 0.0, %v709
      %v780 = vsel %vm693, 0.0, %v712
      %v781 = vsel %vm693, 0.0, %v715
      %v782 = vsel %vm693, 0.0, %v718
      %v783 = vsel %vm693, 0.0, %v721
      %v784 = vsel %vm693, 0.0, %v724
      %v785 = vsel %vm693, 0.0, %v727
      %v786 = vsel %vm693, 0.0, %v730
      %v787 = vsel %vm693, 0.0, %v733
      %v788 = vsel %vm693, 0.0, %v736
      %v789 = vsel %vm693, 0.0, %v739
      %vm790 = vcmask 1046528
      %v791 = vrot.slane %v487, 1
      %v792 = vrot.slane %v492, 1
      %v793 = vsel %vm790, %v791, %v792
      %v794 = vrot.slane %v497, 1
      %v795 = vrot.slane %v502, 1
      %v796 = vsel %vm790, %v794, %v795
      %v797 = vrot.slane %v507, 1
      %v798 = vrot.slane %v512, 1
      %v799 = vsel %vm790, %v797, %v798
      %v800 = vrot.slane %v517, 1
      %v801 = vrot.slane %v522, 1
      %v802 = vsel %vm790, %v800, %v801
      %v803 = vrot.slane %v527, 1
      %v804 = vrot.slane %v532, 1
      %v805 = vsel %vm790, %v803, %v804
      %v806 = vrot.slane %v537, 1
      %v807 = vrot.slane %v542, 1
      %v808 = vsel %vm790, %v806, %v807
      %v809 = vrot.slane %v547, 1
      %v810 = vrot.slane %v552, 1
      %v811 = vsel %vm790, %v809, %v810
      %v812 = vrot.slane %v557, 1
      %v813 = vrot.slane %v562, 1
      %v814 = vsel %vm790, %v812, %v813
      %v815 = vrot.slane %v567, 1
      %v816 = vrot.slane %v572, 1
      %v817 = vsel %vm790, %v815, %v816
      %v818 = vrot.slane %v577, 1
      %v819 = vrot.slane %v582, 1
      %v820 = vsel %vm790, %v818, %v819
      %v821 = vrot.slane %v587, 1
      %v822 = vrot.slane %v592, 1
      %v823 = vsel %vm790, %v821, %v822
      %v824 = vrot.slane %v597, 1
      %v825 = vrot.slane %v602, 1
      %v826 = vsel %vm790, %v824, %v825
      %v827 = vrot.slane %v607, 1
      %v828 = vrot.slane %v612, 1
      %v829 = vsel %vm790, %v827, %v828
      %v830 = vrot.slane %v617, 1
      %v831 = vrot.slane %v622, 1
      %v832 = vsel %vm790, %v830, %v831
      %v833 = vrot.slane %v627, 1
      %v834 = vrot.slane %v632, 1
      %v835 = vsel %vm790, %v833, %v834
      %v836 = vrot.slane %v637, 1
      %v837 = vrot.slane %v642, 1
      %v838 = vsel %vm790, %v836, %v837
      %v855 = vsel %vm790, %v792, 0.0
      %v856 = vsel %vm790, %v795, 0.0
      %v857 = vsel %vm790, %v798, 0.0
      %v858 = vsel %vm790, %v801, 0.0
      %v859 = vsel %vm790, %v804, 0.0
      %v860 = vsel %vm790, %v807, 0.0
      %v861 = vsel %vm790, %v810, 0.0
      %v862 = vsel %vm790, %v813, 0.0
      %v863 = vsel %vm790, %v816, 0.0
      %v864 = vsel %vm790, %v819, 0.0
      %v865 = vsel %vm790, %v822, 0.0
      %v866 = vsel %vm790, %v825, 0.0
      %v867 = vsel %vm790, %v828, 0.0
      %v868 = vsel %vm790, %v831, 0.0
      %v869 = vsel %vm790, %v834, 0.0
      %v870 = vsel %vm790, %v837, 0.0
      %871 = vrot.lane.b32.xlu0 %v487, 8
      %v872 = vpop.permute.xlu0 %871
      %873 = vrot.lane.b32.xlu0 %v492, 8
      %v874 = vpop.permute.xlu0 %873
      %875 = vrot.lane.b32.xlu0 %v497, 8
      %v876 = vpop.permute.xlu0 %875
      %877 = vrot.lane.b32.xlu0 %v502, 8
      %v878 = vpop.permute.xlu0 %877
      %879 = vrot.lane.b32.xlu0 %v507, 8
      %v880 = vpop.permute.xlu0 %879
      %881 = vrot.lane.b32.xlu0 %v512, 8
      %v882 = vpop.permute.xlu0 %881
      %883 = vrot.lane.b32.xlu0 %v517, 8
      %v884 = vpop.permute.xlu0 %883
      %885 = vrot.lane.b32.xlu0 %v522, 8
      %v886 = vpop.permute.xlu0 %885
      %887 = vrot.lane.b32.xlu0 %v527, 8
      %v888 = vpop.permute.xlu0 %887
      %889 = vrot.lane.b32.xlu0 %v532, 8
      %v890 = vpop.permute.xlu0 %889
      %891 = vrot.lane.b32.xlu0 %v537, 8
      %v892 = vpop.permute.xlu0 %891
      %893 = vrot.lane.b32.xlu0 %v542, 8
      %v894 = vpop.permute.xlu0 %893
      %895 = vrot.lane.b32.xlu0 %v547, 8
      %v896 = vpop.permute.xlu0 %895
      %897 = vrot.lane.b32.xlu0 %v552, 8
      %v898 = vpop.permute.xlu0 %897
      %899 = vrot.lane.b32.xlu0 %v557, 8
      %v900 = vpop.permute.xlu0 %899
      %901 = vrot.lane.b32.xlu0 %v562, 8
      %v902 = vpop.permute.xlu0 %901
      %903 = vrot.lane.b32.xlu0 %v567, 8
      %v904 = vpop.permute.xlu0 %903
      %905 = vrot.lane.b32.xlu0 %v572, 8
      %v906 = vpop.permute.xlu0 %905
      %907 = vrot.lane.b32.xlu0 %v577, 8
      %v908 = vpop.permute.xlu0 %907
      %909 = vrot.lane.b32.xlu0 %v582, 8
      %v910 = vpop.permute.xlu0 %909
      %911 = vrot.lane.b32.xlu0 %v587, 8
      %v912 = vpop.permute.xlu0 %911
      %913 = vrot.lane.b32.xlu0 %v592, 8
      %v914 = vpop.permute.xlu0 %913
      %915 = vrot.lane.b32.xlu0 %v597, 8
      %v916 = vpop.permute.xlu0 %915
      %917 = vrot.lane.b32.xlu0 %v602, 8
      %v918 = vpop.permute.xlu0 %917
      %919 = vrot.lane.b32.xlu0 %v607, 8
      %v920 = vpop.permute.xlu0 %919
      %921 = vrot.lane.b32.xlu0 %v612, 8
      %v922 = vpop.permute.xlu0 %921
      %923 = vrot.lane.b32.xlu0 %v617, 8
      %v924 = vpop.permute.xlu0 %923
      %925 = vrot.lane.b32.xlu0 %v622, 8
      %v926 = vpop.permute.xlu0 %925
      %927 = vrot.lane.b32.xlu0 %v627, 8
      %v928 = vpop.permute.xlu0 %927
      %929 = vrot.lane.b32.xlu0 %v632, 8
      %v930 = vpop.permute.xlu0 %929
      %931 = vrot.lane.b32.xlu0 %v637, 8
      %v932 = vpop.permute.xlu0 %931
      %933 = vrot.lane.b32.xlu0 %v642, 8
      %v934 = vpop.permute.xlu0 %933
      %983 = vrot.lane.b32.xlu0 %v793, 16
      %v984 = vpop.permute.xlu0 %983
      %985 = vrot.lane.b32.xlu0 %v855, 16
      %v986 = vpop.permute.xlu0 %985
      %987 = vrot.lane.b32.xlu0 %v796, 16
      %v988 = vpop.permute.xlu0 %987
      %989 = vrot.lane.b32.xlu0 %v856, 16
      %v990 = vpop.permute.xlu0 %989
      %991 = vrot.lane.b32.xlu0 %v799, 16
      %v992 = vpop.permute.xlu0 %991
      %993 = vrot.lane.b32.xlu0 %v857, 16
      %v994 = vpop.permute.xlu0 %993
      %995 = vrot.lane.b32.xlu0 %v802, 16
      %v996 = vpop.permute.xlu0 %995
      %997 = vrot.lane.b32.xlu0 %v858, 16
      %v998 = vpop.permute.xlu0 %997
      %999 = vrot.lane.b32.xlu0 %v805, 16
      %v1000 = vpop.permute.xlu0 %999
      %1001 = vrot.lane.b32.xlu0 %v859, 16
      %v1002 = vpop.permute.xlu0 %1001
      %1003 = vrot.lane.b32.xlu0 %v808, 16
      %v1004 = vpop.permute.xlu0 %1003
      %1005 = vrot.lane.b32.xlu0 %v860, 16
      %v1006 = vpop.permute.xlu0 %1005
      %1007 = vrot.lane.b32.xlu0 %v811, 16
      %v1008 = vpop.permute.xlu0 %1007
      %1009 = vrot.lane.b32.xlu0 %v861, 16
      %v1010 = vpop.permute.xlu0 %1009
      %1011 = vrot.lane.b32.xlu0 %v814, 16
      %v1012 = vpop.permute.xlu0 %1011
      %1013 = vrot.lane.b32.xlu0 %v862, 16
      %v1014 = vpop.permute.xlu0 %1013
      %1015 = vrot.lane.b32.xlu0 %v817, 16
      %v1016 = vpop.permute.xlu0 %1015
      %1017 = vrot.lane.b32.xlu0 %v863, 16
      %v1018 = vpop.permute.xlu0 %1017
      %1019 = vrot.lane.b32.xlu0 %v820, 16
      %v1020 = vpop.permute.xlu0 %1019
      %1021 = vrot.lane.b32.xlu0 %v864, 16
      %v1022 = vpop.permute.xlu0 %1021
      %1023 = vrot.lane.b32.xlu0 %v823, 16
      %v1024 = vpop.permute.xlu0 %1023
      %1025 = vrot.lane.b32.xlu0 %v865, 16
      %v1026 = vpop.permute.xlu0 %1025
      %1027 = vrot.lane.b32.xlu0 %v826, 16
      %v1028 = vpop.permute.xlu0 %1027
      %1029 = vrot.lane.b32.xlu0 %v866, 16
      %v1030 = vpop.permute.xlu0 %1029
      %1031 = vrot.lane.b32.xlu0 %v829, 16
      %v1032 = vpop.permute.xlu0 %1031
      %1033 = vrot.lane.b32.xlu0 %v867, 16
      %v1034 = vpop.permute.xlu0 %1033
      %1035 = vrot.lane.b32.xlu0 %v832, 16
      %v1036 = vpop.permute.xlu0 %1035
      %1037 = vrot.lane.b32.xlu0 %v868, 16
      %v1038 = vpop.permute.xlu0 %1037
      %1039 = vrot.lane.b32.xlu0 %v835, 16
      %v1040 = vpop.permute.xlu0 %1039
      %1041 = vrot.lane.b32.xlu0 %v869, 16
      %v1042 = vpop.permute.xlu0 %1041
      %1043 = vrot.lane.b32.xlu0 %v838, 16
      %v1044 = vpop.permute.xlu0 %1043
      %1045 = vrot.lane.b32.xlu0 %v870, 16
      %v1046 = vpop.permute.xlu0 %1045
      %vm1079 = vcmask 64512
      %v1080 = vsel %vm1079, %v774, %v872
      %v1081 = vsel %vm1079, %v696, %v874
      %v1082 = vsel %vm1079, %v775, %v876
      %v1083 = vsel %vm1079, %v699, %v878
      %v1084 = vsel %vm1079, %v776, %v880
      %v1085 = vsel %vm1079, %v702, %v882
      %v1086 = vsel %vm1079, %v777, %v884
      %v1087 = vsel %vm1079, %v705, %v886
      %v1088 = vsel %vm1079, %v778, %v888
      %v1089 = vsel %vm1079, %v708, %v890
      %v1090 = vsel %vm1079, %v779, %v892
      %v1091 = vsel %vm1079, %v711, %v894
      %v1092 = vsel %vm1079, %v780, %v896
      %v1093 = vsel %vm1079, %v714, %v898
      %v1094 = vsel %vm1079, %v781, %v900
      %v1095 = vsel %vm1079, %v717, %v902
      %v1096 = vsel %vm1079, %v782, %v904
      %v1097 = vsel %vm1079, %v720, %v906
      %v1098 = vsel %vm1079, %v783, %v908
      %v1099 = vsel %vm1079, %v723, %v910
      %v1100 = vsel %vm1079, %v784, %v912
      %v1101 = vsel %vm1079, %v726, %v914
      %v1102 = vsel %vm1079, %v785, %v916
      %v1103 = vsel %vm1079, %v729, %v918
      %v1104 = vsel %vm1079, %v786, %v920
      %v1105 = vsel %vm1079, %v732, %v922
      %v1106 = vsel %vm1079, %v787, %v924
      %v1107 = vsel %vm1079, %v735, %v926
      %v1108 = vsel %vm1079, %v788, %v928
      %v1109 = vsel %vm1079, %v738, %v930
      %v1110 = vsel %vm1079, %v789, %v932
      %v1111 = vsel %vm1079, %v741, %v934
      %vm1112 = vcmask 130048
      %v1113 = vsel %vm1112, %v1080, %v984
      %v1114 = vsel %vm1112, %v1081, %v986
      %v1115 = vsel %vm1112, %v1082, %v988
      %v1116 = vsel %vm1112, %v1083, %v990
      %v1117 = vsel %vm1112, %v1084, %v992
      %v1118 = vsel %vm1112, %v1085, %v994
      %v1119 = vsel %vm1112, %v1086, %v996
      %v1120 = vsel %vm1112, %v1087, %v998
      %v1121 = vsel %vm1112, %v1088, %v1000
      %v1122 = vsel %vm1112, %v1089, %v1002
      %v1123 = vsel %vm1112, %v1090, %v1004
      %v1124 = vsel %vm1112, %v1091, %v1006
      %v1125 = vsel %vm1112, %v1092, %v1008
      %v1126 = vsel %vm1112, %v1093, %v1010
      %v1127 = vsel %vm1112, %v1094, %v1012
      %v1128 = vsel %vm1112, %v1095, %v1014
      %v1129 = vsel %vm1112, %v1096, %v1016
      %v1130 = vsel %vm1112, %v1097, %v1018
      %v1131 = vsel %vm1112, %v1098, %v1020
      %v1132 = vsel %vm1112, %v1099, %v1022
      %v1133 = vsel %vm1112, %v1100, %v1024
      %v1134 = vsel %vm1112, %v1101, %v1026
      %v1135 = vsel %vm1112, %v1102, %v1028
      %v1136 = vsel %vm1112, %v1103, %v1030
      %v1137 = vsel %vm1112, %v1104, %v1032
      %v1138 = vsel %vm1112, %v1105, %v1034
      %v1139 = vsel %vm1112, %v1106, %v1036
      %v1140 = vsel %vm1112, %v1107, %v1038
      %v1141 = vsel %vm1112, %v1108, %v1040
      %v1142 = vsel %vm1112, %v1109, %v1042
      %v1143 = vsel %vm1112, %v1110, %v1044
      %v1144 = vsel %vm1112, %v1111, %v1046
      %1177 = vrot.lane.b32.xlu0 %v1113, 24
      %v1178 = vpop.permute.xlu0 %1177
      %1179 = vrot.lane.b32.xlu0 %v1114, 24
      %v1180 = vpop.permute.xlu0 %1179
      %1181 = vrot.lane.b32.xlu0 %v1115, 24
      %v1182 = vpop.permute.xlu0 %1181
      %1183 = vrot.lane.b32.xlu0 %v1116, 24
      %v1184 = vpop.permute.xlu0 %1183
      %1185 = vrot.lane.b32.xlu0 %v1117, 24
      %v1186 = vpop.permute.xlu0 %1185
      %1187 = vrot.lane.b32.xlu0 %v1118, 24
      %v1188 = vpop.permute.xlu0 %1187
      %1189 = vrot.lane.b32.xlu0 %v1119, 24
      %v1190 = vpop.permute.xlu0 %1189
      %1191 = vrot.lane.b32.xlu0 %v1120, 24
      %v1192 = vpop.permute.xlu0 %1191
      %1193 = vrot.lane.b32.xlu0 %v1121, 24
      %v1194 = vpop.permute.xlu0 %1193
      %1195 = vrot.lane.b32.xlu0 %v1122, 24
      %v1196 = vpop.permute.xlu0 %1195
      %1197 = vrot.lane.b32.xlu0 %v1123, 24
      %v1198 = vpop.permute.xlu0 %1197
      %1199 = vrot.lane.b32.xlu0 %v1124, 24
      %v1200 = vpop.permute.xlu0 %1199
      %1201 = vrot.lane.b32.xlu0 %v1125, 24
      %v1202 = vpop.permute.xlu0 %1201
      %1203 = vrot.lane.b32.xlu0 %v1126, 24
      %v1204 = vpop.permute.xlu0 %1203
      %1205 = vrot.lane.b32.xlu0 %v1127, 24
      %v1206 = vpop.permute.xlu0 %1205
      %1207 = vrot.lane.b32.xlu0 %v1128, 24
      %v1208 = vpop.permute.xlu0 %1207
      %1209 = vrot.lane.b32.xlu0 %v1129, 24
      %v1210 = vpop.permute.xlu0 %1209
      %1211 = vrot.lane.b32.xlu0 %v1130, 24
      %v1212 = vpop.permute.xlu0 %1211
      %1213 = vrot.lane.b32.xlu0 %v1131, 24
      %v1214 = vpop.permute.xlu0 %1213
      %1215 = vrot.lane.b32.xlu0 %v1132, 24
      %v1216 = vpop.permute.xlu0 %1215
      %1217 = vrot.lane.b32.xlu0 %v1133, 24
      %v1218 = vpop.permute.xlu0 %1217
      %1219 = vrot.lane.b32.xlu0 %v1134, 24
      %v1220 = vpop.permute.xlu0 %1219
      %1221 = vrot.lane.b32.xlu0 %v1135, 24
      %v1222 = vpop.permute.xlu0 %1221
      %1223 = vrot.lane.b32.xlu0 %v1136, 24
      %v1224 = vpop.permute.xlu0 %1223
      %1225 = vrot.lane.b32.xlu0 %v1137, 24
      %v1226 = vpop.permute.xlu0 %1225
      %1227 = vrot.lane.b32.xlu0 %v1138, 24
      %v1228 = vpop.permute.xlu0 %1227
      %1229 = vrot.lane.b32.xlu0 %v1139, 24
      %v1230 = vpop.permute.xlu0 %1229
      %1231 = vrot.lane.b32.xlu0 %v1140, 24
      %v1232 = vpop.permute.xlu0 %1231
      %1233 = vrot.lane.b32.xlu0 %v1141, 24
      %v1234 = vpop.permute.xlu0 %1233
      %1235 = vrot.lane.b32.xlu0 %v1142, 24
      %v1236 = vpop.permute.xlu0 %1235
      %1237 = vrot.lane.b32.xlu0 %v1143, 24
      %v1238 = vpop.permute.xlu0 %1237
      %1239 = vrot.lane.b32.xlu0 %v1144, 24
      %v1240 = vpop.permute.xlu0 %1239
      %1274 = vrot.lane.b32.xlu0 %v1115, 48
      %v1275 = vpop.permute.xlu0 %1274
      %1276 = vrot.lane.b32.xlu0 %v1116, 48
      %v1277 = vpop.permute.xlu0 %1276
      %1278 = vrot.lane.b32.xlu0 %v1117, 48
      %v1279 = vpop.permute.xlu0 %1278
      %1280 = vrot.lane.b32.xlu0 %v1118, 48
      %v1281 = vpop.permute.xlu0 %1280
      %1282 = vrot.lane.b32.xlu0 %v1119, 48
      %v1283 = vpop.permute.xlu0 %1282
      %1284 = vrot.lane.b32.xlu0 %v1120, 48
      %v1285 = vpop.permute.xlu0 %1284
      %1286 = vrot.lane.b32.xlu0 %v1121, 48
      %v1287 = vpop.permute.xlu0 %1286
      %1288 = vrot.lane.b32.xlu0 %v1122, 48
      %v1289 = vpop.permute.xlu0 %1288
      %1290 = vrot.lane.b32.xlu0 %v1123, 48
      %v1291 = vpop.permute.xlu0 %1290
      %1292 = vrot.lane.b32.xlu0 %v1124, 48
      %v1293 = vpop.permute.xlu0 %1292
      %1294 = vrot.lane.b32.xlu0 %v1125, 48
      %v1295 = vpop.permute.xlu0 %1294
      %1296 = vrot.lane.b32.xlu0 %v1126, 48
      %v1297 = vpop.permute.xlu0 %1296
      %1298 = vrot.lane.b32.xlu0 %v1127, 48
      %v1299 = vpop.permute.xlu0 %1298
      %1300 = vrot.lane.b32.xlu0 %v1128, 48
      %v1301 = vpop.permute.xlu0 %1300
      %1302 = vrot.lane.b32.xlu0 %v1129, 48
      %v1303 = vpop.permute.xlu0 %1302
      %1304 = vrot.lane.b32.xlu0 %v1130, 48
      %v1305 = vpop.permute.xlu0 %1304
      %1306 = vrot.lane.b32.xlu0 %v1131, 48
      %v1307 = vpop.permute.xlu0 %1306
      %1308 = vrot.lane.b32.xlu0 %v1132, 48
      %v1309 = vpop.permute.xlu0 %1308
      %1310 = vrot.lane.b32.xlu0 %v1133, 48
      %v1311 = vpop.permute.xlu0 %1310
      %1312 = vrot.lane.b32.xlu0 %v1134, 48
      %v1313 = vpop.permute.xlu0 %1312
      %1314 = vrot.lane.b32.xlu0 %v1135, 48
      %v1315 = vpop.permute.xlu0 %1314
      %1316 = vrot.lane.b32.xlu0 %v1136, 48
      %v1317 = vpop.permute.xlu0 %1316
      %1318 = vrot.lane.b32.xlu0 %v1137, 48
      %v1319 = vpop.permute.xlu0 %1318
      %1320 = vrot.lane.b32.xlu0 %v1138, 48
      %v1321 = vpop.permute.xlu0 %1320
      %1322 = vrot.lane.b32.xlu0 %v1139, 48
      %v1323 = vpop.permute.xlu0 %1322
      %1324 = vrot.lane.b32.xlu0 %v1140, 48
      %v1325 = vpop.permute.xlu0 %1324
      %1326 = vrot.lane.b32.xlu0 %v1141, 48
      %v1327 = vpop.permute.xlu0 %1326
      %1328 = vrot.lane.b32.xlu0 %v1142, 48
      %v1329 = vpop.permute.xlu0 %1328
      %1330 = vrot.lane.b32.xlu0 %v1143, 48
      %v1331 = vpop.permute.xlu0 %1330
      %1332 = vrot.lane.b32.xlu0 %v1144, 48
      %v1333 = vpop.permute.xlu0 %1332
      %1334 = vrot.lane.b32.xlu0 0.0, 48
      %v1335 = vpop.permute.xlu0 %1334
      %vm1367 = vcmask 195584
      %v1368 = vsel %vm1367, 0.0, %v1178
      %v1369 = vsel %vm1367, 0.0, %v1180
      %v1370 = vsel %vm1367, %v1113, %v1182
      %v1371 = vsel %vm1367, %v1114, %v1184
      %v1372 = vsel %vm1367, %v1115, %v1186
      %v1373 = vsel %vm1367, %v1116, %v1188
      %v1374 = vsel %vm1367, %v1117, %v1190
      %v1375 = vsel %vm1367, %v1118, %v1192
      %v1376 = vsel %vm1367, %v1119, %v1194
      %v1377 = vsel %vm1367, %v1120, %v1196
      %v1378 = vsel %vm1367, %v1121, %v1198
      %v1379 = vsel %vm1367, %v1122, %v1200
      %v1380 = vsel %vm1367, %v1123, %v1202
      %v1381 = vsel %vm1367, %v1124, %v1204
      %v1382 = vsel %vm1367, %v1125, %v1206
      %v1383 = vsel %vm1367, %v1126, %v1208
      %v1384 = vsel %vm1367, %v1127, %v1210
      %v1385 = vsel %vm1367, %v1128, %v1212
      %v1386 = vsel %vm1367, %v1129, %v1214
      %v1387 = vsel %vm1367, %v1130, %v1216
      %v1388 = vsel %vm1367, %v1131, %v1218
      %v1389 = vsel %vm1367, %v1132, %v1220
      %v1390 = vsel %vm1367, %v1133, %v1222
      %v1391 = vsel %vm1367, %v1134, %v1224
      %v1392 = vsel %vm1367, %v1135, %v1226
      %v1393 = vsel %vm1367, %v1136, %v1228
      %v1394 = vsel %vm1367, %v1137, %v1230
      %v1395 = vsel %vm1367, %v1138, %v1232
      %v1396 = vsel %vm1367, %v1139, %v1234
      %v1397 = vsel %vm1367, %v1140, %v1236
      %v1398 = vsel %vm1367, %v1141, %v1238
      %v1399 = vsel %vm1367, %v1142, %v1240
      %vm1400 = vcmask 392192
      %v1401 = vsel %vm1400, %v1368, %v1275
      %v1402 = vsel %vm1400, %v1369, %v1277
      %v1403 = vsel %vm1400, %v1370, %v1279
      %v1404 = vsel %vm1400, %v1371, %v1281
      %v1405 = vsel %vm1400, %v1372, %v1283
      %v1406 = vsel %vm1400, %v1373, %v1285
      %v1407 = vsel %vm1400, %v1374, %v1287
      %v1408 = vsel %vm1400, %v1375, %v1289
      %v1409 = vsel %vm1400, %v1376, %v1291
      %v1410 = vsel %vm1400, %v1377, %v1293
      %v1411 = vsel %vm1400, %v1378, %v1295
      %v1412 = vsel %vm1400, %v1379, %v1297
      %v1413 = vsel %vm1400, %v1380, %v1299
      %v1414 = vsel %vm1400, %v1381, %v1301
      %v1415 = vsel %vm1400, %v1382, %v1303
      %v1416 = vsel %vm1400, %v1383, %v1305
      %v1417 = vsel %vm1400, %v1384, %v1307
      %v1418 = vsel %vm1400, %v1385, %v1309
      %v1419 = vsel %vm1400, %v1386, %v1311
      %v1420 = vsel %vm1400, %v1387, %v1313
      %v1421 = vsel %vm1400, %v1388, %v1315
      %v1422 = vsel %vm1400, %v1389, %v1317
      %v1423 = vsel %vm1400, %v1390, %v1319
      %v1424 = vsel %vm1400, %v1391, %v1321
      %v1425 = vsel %vm1400, %v1392, %v1323
      %v1426 = vsel %vm1400, %v1393, %v1325
      %v1427 = vsel %vm1400, %v1394, %v1327
      %v1428 = vsel %vm1400, %v1395, %v1329
      %v1429 = vsel %vm1400, %v1396, %v1331
      %v1430 = vsel %vm1400, %v1397, %v1333
      %v1431 = vsel %vm1400, %v1398, %v1335
      %v1432 = vsel %vm1400, %v1399, %v1335
      %vm1433 = vcmask 588800
      %v1435 = vsel %vm1433, %v1401, 0
      %v1438 = vsel %vm1433, %v1402, 0
      %v1441 = vsel %vm1433, %v1403, 0
      %v1444 = vsel %vm1433, %v1404, 0
      %v1447 = vsel %vm1433, %v1405, 0
      %v1450 = vsel %vm1433, %v1406, 0
      %v1453 = vsel %vm1433, %v1407, 0
      %v1456 = vsel %vm1433, %v1408, 0
      %v1459 = vsel %vm1433, %v1409, 0
      %v1462 = vsel %vm1433, %v1410, 0
      %v1465 = vsel %vm1433, %v1411, 0
      %v1468 = vsel %vm1433, %v1412, 0
      %v1471 = vsel %vm1433, %v1413, 0
      %v1474 = vsel %vm1433, %v1414, 0
      %v1477 = vsel %vm1433, %v1415, 0
      %v1480 = vsel %vm1433, %v1416, 0
      %v1483 = vsel %vm1433, %v1417, 0
      %v1486 = vsel %vm1433, %v1418, 0
      %v1489 = vsel %vm1433, %v1419, 0
      %v1492 = vsel %vm1433, %v1420, 0
      %v1495 = vsel %vm1433, %v1421, 0
      %v1498 = vsel %vm1433, %v1422, 0
      %v1501 = vsel %vm1433, %v1423, 0
      %v1504 = vsel %vm1433, %v1424, 0
      %v1507 = vsel %vm1433, %v1425, 0
      %v1510 = vsel %vm1433, %v1426, 0
      %v1513 = vsel %vm1433, %v1427, 0
      %v1516 = vsel %vm1433, %v1428, 0
      %v1519 = vsel %vm1433, %v1429, 0
      %v1522 = vsel %vm1433, %v1430, 0
      %v1525 = vsel %vm1433, %v1431, 0
      %v1528 = vsel %vm1433, %v1432, 0
      %1530 = vmatprep.subr.mxu0 0.0
      %1531 = vmatpush1.msra.mxu0 %v645
      %1532 = vmatprep.subr.mxu0 0.0
      %1533 = vmatpush1.msra.mxu0 %v646
      %1534 = vmatprep.subr.mxu0 0.0
      %1535 = vmatpush1.msra.mxu0 %v647
      %1536 = vmatprep.subr.mxu0 0.0
      %1537 = vmatpush1.msra.mxu0 %v648
      %1538 = vmatprep.subr.mxu0 0.0
      %1539 = vmatpush1.msra.mxu0 %v649
      %1540 = vmatprep.subr.mxu0 0.0
      %1541 = vmatpush1.msra.mxu0 %v650
      %1542 = vmatprep.subr.mxu0 0.0
      %1543 = vmatpush1.msra.mxu0 %v651
      %1544 = vmatprep.subr.mxu0 0.0
      %1545 = vmatpush1.msra.mxu0 %v652
      %1546 = vmatprep.subr.mxu0 0.0
      %1547 = vmatpush1.msra.mxu0 %v653
      %1548 = vmatprep.subr.mxu0 0.0
      %1549 = vmatpush1.msra.mxu0 0.0
      %1550 = vmatprep.subr.mxu0 0.0
      %1551 = vmatpush1.msra.mxu0 0.0
      %1552 = vmatprep.subr.mxu0 0.0
      %1553 = vmatpush1.msra.mxu0 0.0
      %1554 = vmatprep.subr.mxu0 0.0
      %1555 = vmatpush1.msra.mxu0 0.0
      %1556 = vmatprep.subr.mxu0 0.0
      %1557 = vmatpush1.msra.mxu0 0.0
      %1558 = vmatprep.subr.mxu0 0.0
      %1559 = vmatpush1.msra.mxu0 0.0
      %1560 = vmatprep.subr.mxu0 0.0
      %1561 = vmatpush1.msra.mxu0 0.0
      %1562 = vmatprep.subr.mxu0 0.0
      %1563 = vmatpush1.msra.mxu0 0.0
      %1564 = vmatprep.subr.mxu0 0.0
      %1565 = vmatpush1.msra.mxu0 0.0
      %1566 = vmatprep.subr.mxu0 0.0
      %1567 = vmatpush1.msra.mxu0 0.0
      %1568 = vmatprep.subr.mxu0 0.0
      %1569 = vmatpush1.msra.mxu0 0.0
      %1570 = vmatprep.subr.mxu0 0.0
      %1571 = vmatpush1.msra.mxu0 0.0
      %1572 = vmatprep.subr.mxu0 0.0
      %1573 = vmatpush1.msra.mxu0 0.0
      %1574 = vmatprep.subr.mxu0 0.0
      %1575 = vmatpush1.msra.mxu0 0.0
      %1576 = vmatprep.subr.mxu0 0.0
      %1577 = vmatpush1.msra.mxu0 0.0
      %1578 = vmatprep.subr.mxu0 0.0
      %1579 = vmatpush1.msra.mxu0 0.0
      %1580 = vmatprep.subr.mxu0 0.0
      %1581 = vmatpush1.msra.mxu0 0.0
      %1582 = vmatprep.subr.mxu0 0.0
      %1583 = vmatpush1.msra.mxu0 0.0
      %1584 = vmatprep.subr.mxu0 0.0
      %1585 = vmatpush1.msra.mxu0 0.0
      %1586 = vmatprep.subr.mxu0 0.0
      %1587 = vmatpush1.msra.mxu0 0.0
      %1588 = vmatprep.subr.mxu0 0.0
      %1589 = vmatpush1.msra.mxu0 0.0
      %1590 = vmatprep.subr.mxu0 0.0
      %1591 = vmatpush1.msra.mxu0 0.0
      %1592 = vmatprep.subr.mxu0 0.0
      %1593 = vmatpush1.msra.mxu0 0.0
      %1594 = vmatprep.mubr.f32.mxu0 0.0
      %1595 = vmatmul.mubr.f32.gmra.mrb[0].mxu0 %v1435
      %v1596 = vpop.f32.mrb[0].mxu0
      %v1597 = vadd.f32 %v659, %v1596
      %v1598 = vpop.f32.mrb[0].mxu0
      %1599 = vmatprep.mubr.f32.mxu0 0.0
      %1600 = vmatmul.mubr.f32.gmra.mrb[0].mxu0 %v1438
      %v1601 = vpop.f32.mrb[0].mxu0
      %v1602 = vadd.f32 %v659, %v1601
      %v1603 = vpop.f32.mrb[0].mxu0
      %1604 = vmatprep.mubr.f32.mxu0 0.0
      %1605 = vmatmul.mubr.f32.gmra.mrb[0].mxu0 %v1441
      %v1606 = vpop.f32.mrb[0].mxu0
      %v1607 = vadd.f32 %v659, %v1606
      %v1608 = vpop.f32.mrb[0].mxu0
      %1609 = vmatprep.mubr.f32.mxu0 0.0
      %1610 = vmatmul.mubr.f32.gmra.mrb[0].mxu0 %v1444
      %v1611 = vpop.f32.mrb[0].mxu0
      %v1612 = vadd.f32 %v659, %v1611
      %v1613 = vpop.f32.mrb[0].mxu0
      %1614 = vmatprep.mubr.f32.mxu0 0.0
      %1615 = vmatmul.mubr.f32.gmra.mrb[0].mxu0 %v1447
      %v1616 = vpop.f32.mrb[0].mxu0
      %v1617 = vadd.f32 %v659, %v1616
      %v1618 = vpop.f32.mrb[0].mxu0
      %1619 = vmatprep.mubr.f32.mxu0 0.0
      %1620 = vmatmul.mubr.f32.gmra.mrb[0].mxu0 %v1450
      %v1621 = vpop.f32.mrb[0].mxu0
      %v1622 = vadd.f32 %v659, %v1621
      %v1623 = vpop.f32.mrb[0].mxu0
      %1624 = vmatprep.mubr.f32.mxu0 0.0
      %1625 = vmatmul.mubr.f32.gmra.mrb[0].mxu0 %v1453
      %v1626 = vpop.f32.mrb[0].mxu0
      %v1627 = vadd.f32 %v659, %v1626
      %v1628 = vpop.f32.mrb[0].mxu0
      %1629 = vmatprep.mubr.f32.mxu0 0.0
      %1630 = vmatmul.mubr.f32.gmra.mrb[0].mxu0 %v1456
      %v1631 = vpop.f32.mrb[0].mxu0
      %v1632 = vadd.f32 %v659, %v1631
      %v1633 = vpop.f32.mrb[0].mxu0
      %1634 = vmatprep.mubr.f32.mxu0 0.0
      %1635 = vmatmul.mubr.f32.gmra.mrb[0].mxu0 %v1459
      %v1636 = vpop.f32.mrb[0].mxu0
      %v1637 = vadd.f32 %v659, %v1636
      %v1638 = vpop.f32.mrb[0].mxu0
      %1639 = vmatprep.mubr.f32.mxu0 0.0
      %1640 = vmatmul.mubr.f32.gmra.mrb[0].mxu0 %v1462
      %v1641 = vpop.f32.mrb[0].mxu0
      %v1642 = vadd.f32 %v659, %v1641
      %v1643 = vpop.f32.mrb[0].mxu0
      %1644 = vmatprep.mubr.f32.mxu0 0.0
      %1645 = vmatmul.mubr.f32.gmra.mrb[0].mxu0 %v1465
      %v1646 = vpop.f32.mrb[0].mxu0
      %v1647 = vadd.f32 %v659, %v1646
      %v1648 = vpop.f32.mrb[0].mxu0
      %1649 = vmatprep.mubr.f32.mxu0 0.0
      %1650 = vmatmul.mubr.f32.gmra.mrb[0].mxu0 %v1468
      %v1651 = vpop.f32.mrb[0].mxu0
      %v1652 = vadd.f32 %v659, %v1651
      %v1653 = vpop.f32.mrb[0].mxu0
      %1654 = vmatprep.mubr.f32.mxu0 0.0
      %1655 = vmatmul.mubr.f32.gmra.mrb[0].mxu0 %v1471
      %v1656 = vpop.f32.mrb[0].mxu0
      %v1657 = vadd.f32 %v659, %v1656
      %v1658 = vpop.f32.mrb[0].mxu0
      %1659 = vmatprep.mubr.f32.mxu0 0.0
      %1660 = vmatmul.mubr.f32.gmra.mrb[0].mxu0 %v1474
      %v1661 = vpop.f32.mrb[0].mxu0
      %v1662 = vadd.f32 %v659, %v1661
      %v1663 = vpop.f32.mrb[0].mxu0
      %1664 = vmatprep.mubr.f32.mxu0 0.0
      %1665 = vmatmul.mubr.f32.gmra.mrb[0].mxu0 %v1477
      %v1666 = vpop.f32.mrb[0].mxu0
      %v1667 = vadd.f32 %v659, %v1666
      %v1668 = vpop.f32.mrb[0].mxu0
      %1669 = vmatprep.mubr.f32.mxu0 0.0
      %1670 = vmatmul.mubr.f32.gmra.mrb[0].mxu0 %v1480
      %v1671 = vpop.f32.mrb[0].mxu0
      %v1672 = vadd.f32 %v659, %v1671
      %v1673 = vpop.f32.mrb[0].mxu0
      %1674 = vmatprep.mubr.f32.mxu0 0.0
      %1675 = vmatmul.mubr.f32.gmra.mrb[0].mxu0 %v1483
      %v1676 = vpop.f32.mrb[0].mxu0
      %v1677 = vadd.f32 %v659, %v1676
      %v1678 = vpop.f32.mrb[0].mxu0
      %1679 = vmatprep.mubr.f32.mxu0 0.0
      %1680 = vmatmul.mubr.f32.gmra.mrb[0].mxu0 %v1486
      %v1681 = vpop.f32.mrb[0].mxu0
      %v1682 = vadd.f32 %v659, %v1681
      %v1683 = vpop.f32.mrb[0].mxu0
      %1684 = vmatprep.mubr.f32.mxu0 0.0
      %1685 = vmatmul.mubr.f32.gmra.mrb[0].mxu0 %v1489
      %v1686 = vpop.f32.mrb[0].mxu0
      %v1687 = vadd.f32 %v659, %v1686
      %v1688 = vpop.f32.mrb[0].mxu0
      %1689 = vmatprep.mubr.f32.mxu0 0.0
      %1690 = vmatmul.mubr.f32.gmra.mrb[0].mxu0 %v1492
      %v1691 = vpop.f32.mrb[0].mxu0
      %v1692 = vadd.f32 %v659, %v1691
      %v1693 = vpop.f32.mrb[0].mxu0
      %1694 = vmatprep.mubr.f32.mxu0 0.0
      %1695 = vmatmul.mubr.f32.gmra.mrb[0].mxu0 %v1495
      %v1696 = vpop.f32.mrb[0].mxu0
      %v1697 = vadd.f32 %v659, %v1696
      %v1698 = vpop.f32.mrb[0].mxu0
      %1699 = vmatprep.mubr.f32.mxu0 0.0
      %1700 = vmatmul.mubr.f32.gmra.mrb[0].mxu0 %v1498
      %v1701 = vpop.f32.mrb[0].mxu0
      %v1702 = vadd.f32 %v659, %v1701
      %v1703 = vpop.f32.mrb[0].mxu0
      %1704 = vmatprep.mubr.f32.mxu0 0.0
      %1705 = vmatmul.mubr.f32.gmra.mrb[0].mxu0 %v1501
      %v1706 = vpop.f32.mrb[0].mxu0
      %v1707 = vadd.f32 %v659, %v1706
      %v1708 = vpop.f32.mrb[0].mxu0
      %1709 = vmatprep.mubr.f32.mxu0 0.0
      %1710 = vmatmul.mubr.f32.gmra.mrb[0].mxu0 %v1504
      %v1711 = vpop.f32.mrb[0].mxu0
      %v1712 = vadd.f32 %v659, %v1711
      %v1713 = vpop.f32.mrb[0].mxu0
      %1714 = vmatprep.mubr.f32.mxu0 0.0
      %1715 = vmatmul.mubr.f32.gmra.mrb[0].mxu0 %v1507
      %v1716 = vpop.f32.mrb[0].mxu0
      %v1717 = vadd.f32 %v659, %v1716
      %v1718 = vpop.f32.mrb[0].mxu0
      %1719 = vmatprep.mubr.f32.mxu0 0.0
      %1720 = vmatmul.mubr.f32.gmra.mrb[0].mxu0 %v1510
      %v1721 = vpop.f32.mrb[0].mxu0
      %v1722 = vadd.f32 %v659, %v1721
      %v1723 = vpop.f32.mrb[0].mxu0
      %1724 = vmatprep.mubr.f32.mxu0 0.0
      %1725 = vmatmul.mubr.f32.gmra.mrb[0].mxu0 %v1513
      %v1726 = vpop.f32.mrb[0].mxu0
      %v1727 = vadd.f32 %v659, %v1726
      %v1728 = vpop.f32.mrb[0].mxu0
      %1729 = vmatprep.mubr.f32.mxu0 0.0
      %1730 = vmatmul.mubr.f32.gmra.mrb[0].mxu0 %v1516
      %v1731 = vpop.f32.mrb[0].mxu0
      %v1732 = vadd.f32 %v659, %v1731
      %v1733 = vpop.f32.mrb[0].mxu0
      %1734 = vmatprep.mubr.f32.mxu0 0.0
      %1735 = vmatmul.mubr.f32.gmra.mrb[0].mxu0 %v1519
      %v1736 = vpop.f32.mrb[0].mxu0
      %v1737 = vadd.f32 %v659, %v1736
      %v1738 = vpop.f32.mrb[0].mxu0
      %1739 = vmatprep.mubr.f32.mxu0 0.0
      %1740 = vmatmul.mubr.f32.gmra.mrb[0].mxu0 %v1522
      %v1741 = vpop.f32.mrb[0].mxu0
      %v1742 = vadd.f32 %v659, %v1741
      %v1743 = vpop.f32.mrb[0].mxu0
      %1744 = vmatprep.mubr.f32.mxu0 0.0
      %1745 = vmatmul.mubr.f32.gmra.mrb[0].mxu0 %v1525
      %v1746 = vpop.f32.mrb[0].mxu0
      %v1747 = vadd.f32 %v659, %v1746
      %v1748 = vpop.f32.mrb[0].mxu0
      %1749 = vmatprep.mubr.f32.mxu0 0.0
      %1750 = vmatmul.mubr.f32.gmra.mrb[0].mxu0 %v1528
      %v1751 = vpop.f32.mrb[0].mxu0
      %v1752 = vadd.f32 %v659, %v1751
      %v1753 = vpop.f32.mrb[0].mxu0
      %1754 = vdwg.mxu0
      %v1755 = vmax.f32 %v1597, 0.0
      %v1756 = vmax.f32 %v1602, 0.0
      %v1757 = vmax.f32 %v1607, 0.0
      %v1758 = vmax.f32 %v1612, 0.0
      %v1759 = vmax.f32 %v1617, 0.0
      %v1760 = vmax.f32 %v1622, 0.0
      %v1761 = vmax.f32 %v1627, 0.0
      %v1762 = vmax.f32 %v1632, 0.0
      %v1763 = vmax.f32 %v1637, 0.0
      %v1764 = vmax.f32 %v1642, 0.0
      %v1765 = vmax.f32 %v1647, 0.0
      %v1766 = vmax.f32 %v1652, 0.0
      %v1767 = vmax.f32 %v1657, 0.0
      %v1768 = vmax.f32 %v1662, 0.0
      %v1769 = vmax.f32 %v1667, 0.0
      %v1770 = vmax.f32 %v1672, 0.0
      %v1771 = vmax.f32 %v1677, 0.0
      %v1772 = vmax.f32 %v1682, 0.0
      %v1773 = vmax.f32 %v1687, 0.0
      %v1774 = vmax.f32 %v1692, 0.0
      %v1775 = vmax.f32 %v1697, 0.0
      %v1776 = vmax.f32 %v1702, 0.0
      %v1777 = vmax.f32 %v1707, 0.0
      %v1778 = vmax.f32 %v1712, 0.0
      %v1779 = vmax.f32 %v1717, 0.0
      %v1780 = vmax.f32 %v1722, 0.0
      %v1781 = vmax.f32 %v1727, 0.0
      %v1782 = vmax.f32 %v1732, 0.0
      %v1783 = vmax.f32 %v1737, 0.0
      %v1784 = vmax.f32 %v1742, 0.0
      %v1785 = vmax.f32 %v1747, 0.0
      %v1786 = vmax.f32 %v1752, 0.0
      %v1787 = vadd.f32 %v487, %v1755
      %v1788 = vadd.f32 %v492, %v1756
      %v1789 = vadd.f32 %v497, %v1757
      %v1790 = vadd.f32 %v502, %v1758
      %v1791 = vadd.f32 %v507, %v1759
      %v1792 = vadd.f32 %v512, %v1760
      %v1793 = vadd.f32 %v517, %v1761
      %v1794 = vadd.f32 %v522, %v1762
      %v1795 = vadd.f32 %v527, %v1763
      %v1796 = vadd.f32 %v532, %v1764
      %v1797 = vadd.f32 %v537, %v1765
      %v1798 = vadd.f32 %v542, %v1766
      %v1799 = vadd.f32 %v547, %v1767
      %v1800 = vadd.f32 %v552, %v1768
      %v1801 = vadd.f32 %v557, %v1769
      %v1802 = vadd.f32 %v562, %v1770
      %v1803 = vadd.f32 %v567, %v1771
      %v1804 = vadd.f32 %v572, %v1772
      %v1805 = vadd.f32 %v577, %v1773
      %v1806 = vadd.f32 %v582, %v1774
      %v1807 = vadd.f32 %v587, %v1775
      %v1808 = vadd.f32 %v592, %v1776
      %v1809 = vadd.f32 %v597, %v1777
      %v1810 = vadd.f32 %v602, %v1778
      %v1811 = vadd.f32 %v607, %v1779
      %v1812 = vadd.f32 %v612, %v1780
      %v1813 = vadd.f32 %v617, %v1781
      %v1814 = vadd.f32 %v622, %v1782
      %v1815 = vadd.f32 %v627, %v1783
      %v1816 = vadd.f32 %v632, %v1784
      %v1817 = vadd.f32 %v637, %v1785
      %v1818 = vadd.f32 %v642, %v1786
      %v1851 = vrot.slane %v1787, 7
      %v1852 = vrot.slane %v1788, 7
      %v1853 = vsel %vm693, %v1851, %v1852
      %v1854 = vrot.slane %v1789, 7
      %v1855 = vrot.slane %v1790, 7
      %v1856 = vsel %vm693, %v1854, %v1855
      %v1857 = vrot.slane %v1791, 7
      %v1858 = vrot.slane %v1792, 7
      %v1859 = vsel %vm693, %v1857, %v1858
      %v1860 = vrot.slane %v1793, 7
      %v1861 = vrot.slane %v1794, 7
      %v1862 = vsel %vm693, %v1860, %v1861
      %v1863 = vrot.slane %v1795, 7
      %v1864 = vrot.slane %v1796, 7
      %v1865 = vsel %vm693, %v1863, %v1864
      %v1866 = vrot.slane %v1797, 7
      %v1867 = vrot.slane %v1798, 7
      %v1868 = vsel %vm693, %v1866, %v1867
      %v1869 = vrot.slane %v1799, 7
      %v1870 = vrot.slane %v1800, 7
      %v1871 = vsel %vm693, %v1869, %v1870
      %v1872 = vrot.slane %v1801, 7
      %v1873 = vrot.slane %v1802, 7
      %v1874 = vsel %vm693, %v1872, %v1873
      %v1875 = vrot.slane %v1803, 7
      %v1876 = vrot.slane %v1804, 7
      %v1877 = vsel %vm693, %v1875, %v1876
      %v1878 = vrot.slane %v1805, 7
      %v1879 = vrot.slane %v1806, 7
      %v1880 = vsel %vm693, %v1878, %v1879
      %v1881 = vrot.slane %v1807, 7
      %v1882 = vrot.slane %v1808, 7
      %v1883 = vsel %vm693, %v1881, %v1882
      %v1884 = vrot.slane %v1809, 7
      %v1885 = vrot.slane %v1810, 7
      %v1886 = vsel %vm693, %v1884, %v1885
      %v1887 = vrot.slane %v1811, 7
      %v1888 = vrot.slane %v1812, 7
      %v1889 = vsel %vm693, %v1887, %v1888
      %v1890 = vrot.slane %v1813, 7
      %v1891 = vrot.slane %v1814, 7
      %v1892 = vsel %vm693, %v1890, %v1891
      %v1893 = vrot.slane %v1815, 7
      %v1894 = vrot.slane %v1816, 7
      %v1895 = vsel %vm693, %v1893, %v1894
      %v1896 = vrot.slane %v1817, 7
      %v1897 = vrot.slane %v1818, 7
      %v1898 = vsel %vm693, %v1896, %v1897
      %v1931 = vsel %vm693, 0.0, %v1851
      %v1932 = vsel %vm693, 0.0, %v1854
      %v1933 = vsel %vm693, 0.0, %v1857
      %v1934 = vsel %vm693, 0.0, %v1860
      %v1935 = vsel %vm693, 0.0, %v1863
      %v1936 = vsel %vm693, 0.0, %v1866
      %v1937 = vsel %vm693, 0.0, %v1869
      %v1938 = vsel %vm693, 0.0, %v1872
      %v1939 = vsel %vm693, 0.0, %v1875
      %v1940 = vsel %vm693, 0.0, %v1878
      %v1941 = vsel %vm693, 0.0, %v1881
      %v1942 = vsel %vm693, 0.0, %v1884
      %v1943 = vsel %vm693, 0.0, %v1887
      %v1944 = vsel %vm693, 0.0, %v1890
      %v1945 = vsel %vm693, 0.0, %v1893
      %v1946 = vsel %vm693, 0.0, %v1896
      %v1947 = vrot.slane %v1787, 1
      %v1948 = vrot.slane %v1788, 1
      %v1949 = vsel %vm790, %v1947, %v1948
      %v1950 = vrot.slane %v1789, 1
      %v1951 = vrot.slane %v1790, 1
      %v1952 = vsel %vm790, %v1950, %v1951
      %v1953 = vrot.slane %v1791, 1
      %v1954 = vrot.slane %v1792, 1
      %v1955 = vsel %vm790, %v1953, %v1954
      %v1956 = vrot.slane %v1793, 1
      %v1957 = vrot.slane %v1794, 1
      %v1958 = vsel %vm790, %v1956, %v1957
      %v1959 = vrot.slane %v1795, 1
      %v1960 = vrot.slane %v1796, 1
      %v1961 = vsel %vm790, %v1959, %v1960
      %v1962 = vrot.slane %v1797, 1
      %v1963 = vrot.slane %v1798, 1
      %v1964 = vsel %vm790, %v1962, %v1963
      %v1965 = vrot.slane %v1799, 1
      %v1966 = vrot.slane %v1800, 1
      %v1967 = vsel %vm790, %v1965, %v1966
      %v1968 = vrot.slane %v1801, 1
      %v1969 = vrot.slane %v1802, 1
      %v1970 = vsel %vm790, %v1968, %v1969
      %v1971 = vrot.slane %v1803, 1
      %v1972 = vrot.slane %v1804, 1
      %v1973 = vsel %vm790, %v1971, %v1972
      %v1974 = vrot.slane %v1805, 1
      %v1975 = vrot.slane %v1806, 1
      %v1976 = vsel %vm790, %v1974, %v1975
      %v1977 = vrot.slane %v1807, 1
      %v1978 = vrot.slane %v1808, 1
      %v1979 = vsel %vm790, %v1977, %v1978
      %v1980 = vrot.slane %v1809, 1
      %v1981 = vrot.slane %v1810, 1
      %v1982 = vsel %vm790, %v1980, %v1981
      %v1983 = vrot.slane %v1811, 1
      %v1984 = vrot.slane %v1812, 1
      %v1985 = vsel %vm790, %v1983, %v1984
      %v1986 = vrot.slane %v1813, 1
      %v1987 = vrot.slane %v1814, 1
      %v1988 = vsel %vm790, %v1986, %v1987
      %v1989 = vrot.slane %v1815, 1
      %v1990 = vrot.slane %v1816, 1
      %v1991 = vsel %vm790, %v1989, %v1990
      %v1992 = vrot.slane %v1817, 1
      %v1993 = vrot.slane %v1818, 1
      %v1994 = vsel %vm790, %v1992, %v1993
      %v2011 = vsel %vm790, %v1948, 0.0
      %v2012 = vsel %vm790, %v1951, 0.0
      %v2013 = vsel %vm790, %v1954, 0.0
      %v2014 = vsel %vm790, %v1957, 0.0
      %v2015 = vsel %vm790, %v1960, 0.0
      %v2016 = vsel %vm790, %v1963, 0.0
      %v2017 = vsel %vm790, %v1966, 0.0
      %v2018 = vsel %vm790, %v1969, 0.0
      %v2019 = vsel %vm790, %v1972, 0.0
      %v2020 = vsel %vm790, %v1975, 0.0
      %v2021 = vsel %vm790, %v1978, 0.0
      %v2022 = vsel %vm790, %v1981, 0.0
      %v2023 = vsel %vm790, %v1984, 0.0
      %v2024 = vsel %vm790, %v1987, 0.0
      %v2025 = vsel %vm790, %v1990, 0.0
      %v2026 = vsel %vm790, %v1993, 0.0
      %2027 = vrot.lane.b32.xlu0 %v1787, 8
      %v2028 = vpop.permute.xlu0 %2027
      %2029 = vrot.lane.b32.xlu0 %v1788, 8
      %v2030 = vpop.permute.xlu0 %2029
      %2031 = vrot.lane.b32.xlu0 %v1789, 8
      %v2032 = vpop.permute.xlu0 %2031
      %2033 = vrot.lane.b32.xlu0 %v1790, 8
      %v2034 = vpop.permute.xlu0 %2033
      %2035 = vrot.lane.b32.xlu0 %v1791, 8
      %v2036 = vpop.permute.xlu0 %2035
      %2037 = vrot.lane.b32.xlu0 %v1792, 8
      %v2038 = vpop.permute.xlu0 %2037
      %2039 = vrot.lane.b32.xlu0 %v1793, 8
      %v2040 = vpop.permute.xlu0 %2039
      %2041 = vrot.lane.b32.xlu0 %v1794, 8
      %v2042 = vpop.permute.xlu0 %2041
      %2043 = vrot.lane.b32.xlu0 %v1795, 8
      %v2044 = vpop.permute.xlu0 %2043
      %2045 = vrot.lane.b32.xlu0 %v1796, 8
      %v2046 = vpop.permute.xlu0 %2045
      %2047 = vrot.lane.b32.xlu0 %v1797, 8
      %v2048 = vpop.permute.xlu0 %2047
      %2049 = vrot.lane.b32.xlu0 %v1798, 8
      %v2050 = vpop.permute.xlu0 %2049
      %2051 = vrot.lane.b32.xlu0 %v1799, 8
      %v2052 = vpop.permute.xlu0 %2051
      %2053 = vrot.lane.b32.xlu0 %v1800, 8
      %v2054 = vpop.permute.xlu0 %2053
      %2055 = vrot.lane.b32.xlu0 %v1801, 8
      %v2056 = vpop.permute.xlu0 %2055
      %2057 = vrot.lane.b32.xlu0 %v1802, 8
      %v2058 = vpop.permute.xlu0 %2057
      %2059 = vrot.lane.b32.xlu0 %v1803, 8
      %v2060 = vpop.permute.xlu0 %2059
      %2061 = vrot.lane.b32.xlu0 %v1804, 8
      %v2062 = vpop.permute.xlu0 %2061
      %2063 = vrot.lane.b32.xlu0 %v1805, 8
      %v2064 = vpop.permute.xlu0 %2063
      %2065 = vrot.lane.b32.xlu0 %v1806, 8
      %v2066 = vpop.permute.xlu0 %2065
      %2067 = vrot.lane.b32.xlu0 %v1807, 8
      %v2068 = vpop.permute.xlu0 %2067
      %2069 = vrot.lane.b32.xlu0 %v1808, 8
      %v2070 = vpop.permute.xlu0 %2069
      %2071 = vrot.lane.b32.xlu0 %v1809, 8
      %v2072 = vpop.permute.xlu0 %2071
      %2073 = vrot.lane.b32.xlu0 %v1810, 8
      %v2074 = vpop.permute.xlu0 %2073
      %2075 = vrot.lane.b32.xlu0 %v1811, 8
      %v2076 = vpop.permute.xlu0 %2075
      %2077 = vrot.lane.b32.xlu0 %v1812, 8
      %v2078 = vpop.permute.xlu0 %2077
      %2079 = vrot.lane.b32.xlu0 %v1813, 8
      %v2080 = vpop.permute.xlu0 %2079
      %2081 = vrot.lane.b32.xlu0 %v1814, 8
      %v2082 = vpop.permute.xlu0 %2081
      %2083 = vrot.lane.b32.xlu0 %v1815, 8
      %v2084 = vpop.permute.xlu0 %2083
      %2085 = vrot.lane.b32.xlu0 %v1816, 8
      %v2086 = vpop.permute.xlu0 %2085
      %2087 = vrot.lane.b32.xlu0 %v1817, 8
      %v2088 = vpop.permute.xlu0 %2087
      %2089 = vrot.lane.b32.xlu0 %v1818, 8
      %v2090 = vpop.permute.xlu0 %2089
      %2139 = vrot.lane.b32.xlu0 %v1949, 16
      %v2140 = vpop.permute.xlu0 %2139
      %2141 = vrot.lane.b32.xlu0 %v2011, 16
      %v2142 = vpop.permute.xlu0 %2141
      %2143 = vrot.lane.b32.xlu0 %v1952, 16
      %v2144 = vpop.permute.xlu0 %2143
      %2145 = vrot.lane.b32.xlu0 %v2012, 16
      %v2146 = vpop.permute.xlu0 %2145
      %2147 = vrot.lane.b32.xlu0 %v1955, 16
      %v2148 = vpop.permute.xlu0 %2147
      %2149 = vrot.lane.b32.xlu0 %v2013, 16
      %v2150 = vpop.permute.xlu0 %2149
      %2151 = vrot.lane.b32.xlu0 %v1958, 16
      %v2152 = vpop.permute.xlu0 %2151
      %2153 = vrot.lane.b32.xlu0 %v2014, 16
      %v2154 = vpop.permute.xlu0 %2153
      %2155 = vrot.lane.b32.xlu0 %v1961, 16
      %v2156 = vpop.permute.xlu0 %2155
      %2157 = vrot.lane.b32.xlu0 %v2015, 16
      %v2158 = vpop.permute.xlu0 %2157
      %2159 = vrot.lane.b32.xlu0 %v1964, 16
      %v2160 = vpop.permute.xlu0 %2159
      %2161 = vrot.lane.b32.xlu0 %v2016, 16
      %v2162 = vpop.permute.xlu0 %2161
      %2163 = vrot.lane.b32.xlu0 %v1967, 16
      %v2164 = vpop.permute.xlu0 %2163
      %2165 = vrot.lane.b32.xlu0 %v2017, 16
      %v2166 = vpop.permute.xlu0 %2165
      %2167 = vrot.lane.b32.xlu0 %v1970, 16
      %v2168 = vpop.permute.xlu0 %2167
      %2169 = vrot.lane.b32.xlu0 %v2018, 16
      %v2170 = vpop.permute.xlu0 %2169
      %2171 = vrot.lane.b32.xlu0 %v1973, 16
      %v2172 = vpop.permute.xlu0 %2171
      %2173 = vrot.lane.b32.xlu0 %v2019, 16
      %v2174 = vpop.permute.xlu0 %2173
      %2175 = vrot.lane.b32.xlu0 %v1976, 16
      %v2176 = vpop.permute.xlu0 %2175
      %2177 = vrot.lane.b32.xlu0 %v2020, 16
      %v2178 = vpop.permute.xlu0 %2177
      %2179 = vrot.lane.b32.xlu0 %v1979, 16
      %v2180 = vpop.permute.xlu0 %2179
      %2181 = vrot.lane.b32.xlu0 %v2021, 16
      %v2182 = vpop.permute.xlu0 %2181
      %2183 = vrot.lane.b32.xlu0 %v1982, 16
      %v2184 = vpop.permute.xlu0 %2183
      %2185 = vrot.lane.b32.xlu0 %v2022, 16
      %v2186 = vpop.permute.xlu0 %2185
      %2187 = vrot.lane.b32.xlu0 %v1985, 16
      %v2188 = vpop.permute.xlu0 %2187
      %2189 = vrot.lane.b32.xlu0 %v2023, 16
      %v2190 = vpop.permute.xlu0 %2189
      %2191 = vrot.lane.b32.xlu0 %v1988, 16
      %v2192 = vpop.permute.xlu0 %2191
      %2193 = vrot.lane.b32.xlu0 %v2024, 16
      %v2194 = vpop.permute.xlu0 %2193
      %2195 = vrot.lane.b32.xlu0 %v1991, 16
      %v2196 = vpop.permute.xlu0 %2195
      %2197 = vrot.lane.b32.xlu0 %v2025, 16
      %v2198 = vpop.permute.xlu0 %2197
      %2199 = vrot.lane.b32.xlu0 %v1994, 16
      %v2200 = vpop.permute.xlu0 %2199
      %2201 = vrot.lane.b32.xlu0 %v2026, 16
      %v2202 = vpop.permute.xlu0 %2201
      %v2235 = vsel %vm1079, %v1931, %v2028
      %v2236 = vsel %vm1079, %v1853, %v2030
      %v2237 = vsel %vm1079, %v1932, %v2032
      %v2238 = vsel %vm1079, %v1856, %v2034
      %v2239 = vsel %vm1079, %v1933, %v2036
      %v2240 = vsel %vm1079, %v1859, %v2038
      %v2241 = vsel %vm1079, %v1934, %v2040
      %v2242 = vsel %vm1079, %v1862, %v2042
      %v2243 = vsel %vm1079, %v1935, %v2044
      %v2244 = vsel %vm1079, %v1865, %v2046
      %v2245 = vsel %vm1079, %v1936, %v2048
      %v2246 = vsel %vm1079, %v1868, %v2050
      %v2247 = vsel %vm1079, %v1937, %v2052
      %v2248 = vsel %vm1079, %v1871, %v2054
      %v2249 = vsel %vm1079, %v1938, %v2056
      %v2250 = vsel %vm1079, %v1874, %v2058
      %v2251 = vsel %vm1079, %v1939, %v2060
      %v2252 = vsel %vm1079, %v1877, %v2062
      %v2253 = vsel %vm1079, %v1940, %v2064
      %v2254 = vsel %vm1079, %v1880, %v2066
      %v2255 = vsel %vm1079, %v1941, %v2068
      %v2256 = vsel %vm1079, %v1883, %v2070
      %v2257 = vsel %vm1079, %v1942, %v2072
      %v2258 = vsel %vm1079, %v1886, %v2074
      %v2259 = vsel %vm1079, %v1943, %v2076
      %v2260 = vsel %vm1079, %v1889, %v2078
      %v2261 = vsel %vm1079, %v1944, %v2080
      %v2262 = vsel %vm1079, %v1892, %v2082
      %v2263 = vsel %vm1079, %v1945, %v2084
      %v2264 = vsel %vm1079, %v1895, %v2086
      %v2265 = vsel %vm1079, %v1946, %v2088
      %v2266 = vsel %vm1079, %v1898, %v2090
      %v2267 = vsel %vm1112, %v2235, %v2140
      %v2268 = vsel %vm1112, %v2236, %v2142
      %v2269 = vsel %vm1112, %v2237, %v2144
      %v2270 = vsel %vm1112, %v2238, %v2146
      %v2271 = vsel %vm1112, %v2239, %v2148
      %v2272 = vsel %vm1112, %v2240, %v2150
      %v2273 = vsel %vm1112, %v2241, %v2152
      %v2274 = vsel %vm1112, %v2242, %v2154
      %v2275 = vsel %vm1112, %v2243, %v2156
      %v2276 = vsel %vm1112, %v2244, %v2158
      %v2277 = vsel %vm1112, %v2245, %v2160
      %v2278 = vsel %vm1112, %v2246, %v2162
      %v2279 = vsel %vm1112, %v2247, %v2164
      %v2280 = vsel %vm1112, %v2248, %v2166
      %v2281 = vsel %vm1112, %v2249, %v2168
      %v2282 = vsel %vm1112, %v2250, %v2170
      %v2283 = vsel %vm1112, %v2251, %v2172
      %v2284 = vsel %vm1112, %v2252, %v2174
      %v2285 = vsel %vm1112, %v2253, %v2176
      %v2286 = vsel %vm1112, %v2254, %v2178
      %v2287 = vsel %vm1112, %v2255, %v2180
      %v2288 = vsel %vm1112, %v2256, %v2182
      %v2289 = vsel %vm1112, %v2257, %v2184
      %v2290 = vsel %vm1112, %v2258, %v2186
      %v2291 = vsel %vm1112, %v2259, %v2188
      %v2292 = vsel %vm1112, %v2260, %v2190
      %v2293 = vsel %vm1112, %v2261, %v2192
      %v2294 = vsel %vm1112, %v2262, %v2194
      %v2295 = vsel %vm1112, %v2263, %v2196
      %v2296 = vsel %vm1112, %v2264, %v2198
      %v2297 = vsel %vm1112, %v2265, %v2200
      %v2298 = vsel %vm1112, %v2266, %v2202
      %2331 = vrot.lane.b32.xlu0 %v2267, 24
      %v2332 = vpop.permute.xlu0 %2331
      %2333 = vrot.lane.b32.xlu0 %v2268, 24
      %v2334 = vpop.permute.xlu0 %2333
      %2335 = vrot.lane.b32.xlu0 %v2269, 24
      %v2336 = vpop.permute.xlu0 %2335
      %2337 = vrot.lane.b32.xlu0 %v2270, 24
      %v2338 = vpop.permute.xlu0 %2337
      %2339 = vrot.lane.b32.xlu0 %v2271, 24
      %v2340 = vpop.permute.xlu0 %2339
      %2341 = vrot.lane.b32.xlu0 %v2272, 24
      %v2342 = vpop.permute.xlu0 %2341
      %2343 = vrot.lane.b32.xlu0 %v2273, 24
      %v2344 = vpop.permute.xlu0 %2343
      %2345 = vrot.lane.b32.xlu0 %v2274, 24
      %v2346 = vpop.permute.xlu0 %2345
      %2347 = vrot.lane.b32.xlu0 %v2275, 24
      %v2348 = vpop.permute.xlu0 %2347
      %2349 = vrot.lane.b32.xlu0 %v2276, 24
      %v2350 = vpop.permute.xlu0 %2349
      %2351 = vrot.lane.b32.xlu0 %v2277, 24
      %v2352 = vpop.permute.xlu0 %2351
      %2353 = vrot.lane.b32.xlu0 %v2278, 24
      %v2354 = vpop.permute.xlu0 %2353
      %2355 = vrot.lane.b32.xlu0 %v2279, 24
      %v2356 = vpop.permute.xlu0 %2355
      %2357 = vrot.lane.b32.xlu0 %v2280, 24
      %v2358 = vpop.permute.xlu0 %2357
      %2359 = vrot.lane.b32.xlu0 %v2281, 24
      %v2360 = vpop.permute.xlu0 %2359
      %2361 = vrot.lane.b32.xlu0 %v2282, 24
      %v2362 = vpop.permute.xlu0 %2361
      %2363 = vrot.lane.b32.xlu0 %v2283, 24
      %v2364 = vpop.permute.xlu0 %2363
      %2365 = vrot.lane.b32.xlu0 %v2284, 24
      %v2366 = vpop.permute.xlu0 %2365
      %2367 = vrot.lane.b32.xlu0 %v2285, 24
      %v2368 = vpop.permute.xlu0 %2367
      %2369 = vrot.lane.b32.xlu0 %v2286, 24
      %v2370 = vpop.permute.xlu0 %2369
      %2371 = vrot.lane.b32.xlu0 %v2287, 24
      %v2372 = vpop.permute.xlu0 %2371
      %2373 = vrot.lane.b32.xlu0 %v2288, 24
      %v2374 = vpop.permute.xlu0 %2373
      %2375 = vrot.lane.b32.xlu0 %v2289, 24
      %v2376 = vpop.permute.xlu0 %2375
      %2377 = vrot.lane.b32.xlu0 %v2290, 24
      %v2378 = vpop.permute.xlu0 %2377
      %2379 = vrot.lane.b32.xlu0 %v2291, 24
      %v2380 = vpop.permute.xlu0 %2379
      %2381 = vrot.lane.b32.xlu0 %v2292, 24
      %v2382 = vpop.permute.xlu0 %2381
      %2383 = vrot.lane.b32.xlu0 %v2293, 24
      %v2384 = vpop.permute.xlu0 %2383
      %2385 = vrot.lane.b32.xlu0 %v2294, 24
      %v2386 = vpop.permute.xlu0 %2385
      %2387 = vrot.lane.b32.xlu0 %v2295, 24
      %v2388 = vpop.permute.xlu0 %2387
      %2389 = vrot.lane.b32.xlu0 %v2296, 24
      %v2390 = vpop.permute.xlu0 %2389
      %2391 = vrot.lane.b32.xlu0 %v2297, 24
      %v2392 = vpop.permute.xlu0 %2391
      %2393 = vrot.lane.b32.xlu0 %v2298, 24
      %v2394 = vpop.permute.xlu0 %2393
      %2427 = vrot.lane.b32.xlu0 %v2269, 48
      %v2428 = vpop.permute.xlu0 %2427
      %2429 = vrot.lane.b32.xlu0 %v2270, 48
      %v2430 = vpop.permute.xlu0 %2429
      %2431 = vrot.lane.b32.xlu0 %v2271, 48
      %v2432 = vpop.permute.xlu0 %2431
      %2433 = vrot.lane.b32.xlu0 %v2272, 48
      %v2434 = vpop.permute.xlu0 %2433
      %2435 = vrot.lane.b32.xlu0 %v2273, 48
      %v2436 = vpop.permute.xlu0 %2435
      %2437 = vrot.lane.b32.xlu0 %v2274, 48
      %v2438 = vpop.permute.xlu0 %2437
      %2439 = vrot.lane.b32.xlu0 %v2275, 48
      %v2440 = vpop.permute.xlu0 %2439
      %2441 = vrot.lane.b32.xlu0 %v2276, 48
      %v2442 = vpop.permute.xlu0 %2441
      %2443 = vrot.lane.b32.xlu0 %v2277, 48
      %v2444 = vpop.permute.xlu0 %2443
      %2445 = vrot.lane.b32.xlu0 %v2278, 48
      %v2446 = vpop.permute.xlu0 %2445
      %2447 = vrot.lane.b32.xlu0 %v2279, 48
      %v2448 = vpop.permute.xlu0 %2447
      %2449 = vrot.lane.b32.xlu0 %v2280, 48
      %v2450 = vpop.permute.xlu0 %2449
      %2451 = vrot.lane.b32.xlu0 %v2281, 48
      %v2452 = vpop.permute.xlu0 %2451
      %2453 = vrot.lane.b32.xlu0 %v2282, 48
      %v2454 = vpop.permute.xlu0 %2453
      %2455 = vrot.lane.b32.xlu0 %v2283, 48
      %v2456 = vpop.permute.xlu0 %2455
      %2457 = vrot.lane.b32.xlu0 %v2284, 48
      %v2458 = vpop.permute.xlu0 %2457
      %2459 = vrot.lane.b32.xlu0 %v2285, 48
      %v2460 = vpop.permute.xlu0 %2459
      %2461 = vrot.lane.b32.xlu0 %v2286, 48
      %v2462 = vpop.permute.xlu0 %2461
      %2463 = vrot.lane.b32.xlu0 %v2287, 48
      %v2464 = vpop.permute.xlu0 %2463
      %2465 = vrot.lane.b32.xlu0 %v2288, 48
      %v2466 = vpop.permute.xlu0 %2465
      %2467 = vrot.lane.b32.xlu0 %v2289, 48
      %v2468 = vpop.permute.xlu0 %2467
      %2469 = vrot.lane.b32.xlu0 %v2290, 48
      %v2470 = vpop.permute.xlu0 %2469
      %2471 = vrot.lane.b32.xlu0 %v2291, 48
      %v2472 = vpop.permute.xlu0 %2471
      %2473 = vrot.lane.b32.xlu0 %v2292, 48
      %v2474 = vpop.permute.xlu0 %2473
      %2475 = vrot.lane.b32.xlu0 %v2293, 48
      %v2476 = vpop.permute.xlu0 %2475
      %2477 = vrot.lane.b32.xlu0 %v2294, 48
      %v2478 = vpop.permute.xlu0 %2477
      %2479 = vrot.lane.b32.xlu0 %v2295, 48
      %v2480 = vpop.permute.xlu0 %2479
      %2481 = vrot.lane.b32.xlu0 %v2296, 48
      %v2482 = vpop.permute.xlu0 %2481
      %2483 = vrot.lane.b32.xlu0 %v2297, 48
      %v2484 = vpop.permute.xlu0 %2483
      %2485 = vrot.lane.b32.xlu0 %v2298, 48
      %v2486 = vpop.permute.xlu0 %2485
      %v2517 = vsel %vm1367, 0.0, %v2332
      %v2518 = vsel %vm1367, 0.0, %v2334
      %v2519 = vsel %vm1367, %v2267, %v2336
      %v2520 = vsel %vm1367, %v2268, %v2338
      %v2521 = vsel %vm1367, %v2269, %v2340
      %v2522 = vsel %vm1367, %v2270, %v2342
      %v2523 = vsel %vm1367, %v2271, %v2344
      %v2524 = vsel %vm1367, %v2272, %v2346
      %v2525 = vsel %vm1367, %v2273, %v2348
      %v2526 = vsel %vm1367, %v2274, %v2350
      %v2527 = vsel %vm1367, %v2275, %v2352
      %v2528 = vsel %vm1367, %v2276, %v2354
      %v2529 = vsel %vm1367, %v2277, %v2356
      %v2530 = vsel %vm1367, %v2278, %v2358
      %v2531 = vsel %vm1367, %v2279, %v2360
      %v2532 = vsel %vm1367, %v2280, %v2362
      %v2533 = vsel %vm1367, %v2281, %v2364
      %v2534 = vsel %vm1367, %v2282, %v2366
      %v2535 = vsel %vm1367, %v2283, %v2368
      %v2536 = vsel %vm1367, %v2284, %v2370
      %v2537 = vsel %vm1367, %v2285, %v2372
      %v2538 = vsel %vm1367, %v2286, %v2374
      %v2539 = vsel %vm1367, %v2287, %v2376
      %v2540 = vsel %vm1367, %v2288, %v2378
      %v2541 = vsel %vm1367, %v2289, %v2380
      %v2542 = vsel %vm1367, %v2290, %v2382
      %v2543 = vsel %vm1367, %v2291, %v2384
      %v2544 = vsel %vm1367, %v2292, %v2386
      %v2545 = vsel %vm1367, %v2293, %v2388
      %v2546 = vsel %vm1367, %v2294, %v2390
      %v2547 = vsel %vm1367, %v2295, %v2392
      %v2548 = vsel %vm1367, %v2296, %v2394
      %v2549 = vsel %vm1400, %v2517, %v2428
      %v2550 = vsel %vm1400, %v2518, %v2430
      %v2551 = vsel %vm1400, %v2519, %v2432
      %v2552 = vsel %vm1400, %v2520, %v2434
      %v2553 = vsel %vm1400, %v2521, %v2436
      %v2554 = vsel %vm1400, %v2522, %v2438
      %v2555 = vsel %vm1400, %v2523, %v2440
      %v2556 = vsel %vm1400, %v2524, %v2442
      %v2557 = vsel %vm1400, %v2525, %v2444
      %v2558 = vsel %vm1400, %v2526, %v2446
      %v2559 = vsel %vm1400, %v2527, %v2448
      %v2560 = vsel %vm1400, %v2528, %v2450
      %v2561 = vsel %vm1400, %v2529, %v2452
      %v2562 = vsel %vm1400, %v2530, %v2454
      %v2563 = vsel %vm1400, %v2531, %v2456
      %v2564 = vsel %vm1400, %v2532, %v2458
      %v2565 = vsel %vm1400, %v2533, %v2460
      %v2566 = vsel %vm1400, %v2534, %v2462
      %v2567 = vsel %vm1400, %v2535, %v2464
      %v2568 = vsel %vm1400, %v2536, %v2466
      %v2569 = vsel %vm1400, %v2537, %v2468
      %v2570 = vsel %vm1400, %v2538, %v2470
      %v2571 = vsel %vm1400, %v2539, %v2472
      %v2572 = vsel %vm1400, %v2540, %v2474
      %v2573 = vsel %vm1400, %v2541, %v2476
      %v2574 = vsel %vm1400, %v2542, %v2478
      %v2575 = vsel %vm1400, %v2543, %v2480
      %v2576 = vsel %vm1400, %v2544, %v2482
      %v2577 = vsel %vm1400, %v2545, %v2484
      %v2578 = vsel %vm1400, %v2546, %v2486
      %v2579 = vsel %vm1400, %v2547, %v1335
      %v2580 = vsel %vm1400, %v2548, %v1335
      %v2582 = vsel %vm1433, %v2549, 0
      %v2585 = vsel %vm1433, %v2550, 0
      %v2588 = vsel %vm1433, %v2551, 0
      %v2591 = vsel %vm1433, %v2552, 0
      %v2594 = vsel %vm1433, %v2553, 0
      %v2597 = vsel %vm1433, %v2554, 0
      %v2600 = vsel %vm1433, %v2555, 0
      %v2603 = vsel %vm1433, %v2556, 0
      %v2606 = vsel %vm1433, %v2557, 0
      %v2609 = vsel %vm1433, %v2558, 0
      %v2612 = vsel %vm1433, %v2559, 0
      %v2615 = vsel %vm1433, %v2560, 0
      %v2618 = vsel %vm1433, %v2561, 0
      %v2621 = vsel %vm1433, %v2562, 0
      %v2624 = vsel %vm1433, %v2563, 0
      %v2627 = vsel %vm1433, %v2564, 0
      %v2630 = vsel %vm1433, %v2565, 0
      %v2633 = vsel %vm1433, %v2566, 0
      %v2636 = vsel %vm1433, %v2567, 0
      %v2639 = vsel %vm1433, %v2568, 0
      %v2642 = vsel %vm1433, %v2569, 0
      %v2645 = vsel %vm1433, %v2570, 0
      %v2648 = vsel %vm1433, %v2571, 0
      %v2651 = vsel %vm1433, %v2572, 0
      %v2654 = vsel %vm1433, %v2573, 0
      %v2657 = vsel %vm1433, %v2574, 0
      %v2660 = vsel %vm1433, %v2575, 0
      %v2663 = vsel %vm1433, %v2576, 0
      %v2666 = vsel %vm1433, %v2577, 0
      %v2669 = vsel %vm1433, %v2578, 0
      %v2672 = vsel %vm1433, %v2579, 0
      %v2675 = vsel %vm1433, %v2580, 0
      %2677 = vmatprep.subr.mxu0 0.0
      %2678 = vmatpush1.msra.mxu0 %v645
      %2679 = vmatprep.subr.mxu0 0.0
      %2680 = vmatpush1.msra.mxu0 %v646
      %2681 = vmatprep.subr.mxu0 0.0
      %2682 = vmatpush1.msra.mxu0 %v647
      %2683 = vmatprep.subr.mxu0 0.0
      %2684 = vmatpush1.msra.mxu0 %v648
      %2685 = vmatprep.subr.mxu0 0.0
      %2686 = vmatpush1.msra.mxu0 %v649
      %2687 = vmatprep.subr.mxu0 0.0
      %2688 = vmatpush1.msra.mxu0 %v650
      %2689 = vmatprep.subr.mxu0 0.0
      %2690 = vmatpush1.msra.mxu0 %v651
      %2691 = vmatprep.subr.mxu0 0.0
      %2692 = vmatpush1.msra.mxu0 %v652
      %2693 = vmatprep.subr.mxu0 0.0
      %2694 = vmatpush1.msra.mxu0 %v653
      %2695 = vmatprep.subr.mxu0 0.0
      %2696 = vmatpush1.msra.mxu0 0.0
      %2697 = vmatprep.subr.mxu0 0.0
      %2698 = vmatpush1.msra.mxu0 0.0
      %2699 = vmatprep.subr.mxu0 0.0
      %2700 = vmatpush1.msra.mxu0 0.0
      %2701 = vmatprep.subr.mxu0 0.0
      %2702 = vmatpush1.msra.mxu0 0.0
      %2703 = vmatprep.subr.mxu0 0.0
      %2704 = vmatpush1.msra.mxu0 0.0
      %2705 = vmatprep.subr.mxu0 0.0
      %2706 = vmatpush1.msra.mxu0 0.0
      %2707 = vmatprep.subr.mxu0 0.0
      %2708 = vmatpush1.msra.mxu0 0.0
      %2709 = vmatprep.subr.mxu0 0.0
      %2710 = vmatpush1.msra.mxu0 0.0
      %2711 = vmatprep.subr.mxu0 0.0
      %2712 = vmatpush1.msra.mxu0 0.0
      %2713 = vmatprep.subr.mxu0 0.0
      %2714 = vmatpush1.msra.mxu0 0.0
      %2715 = vmatprep.subr.mxu0 0.0
      %2716 = vmatpush1.msra.mxu0 0.0
      %2717 = vmatprep.subr.mxu0 0.0
      %2718 = vmatpush1.msra.mxu0 0.0
      %2719 = vmatprep.subr.mxu0 0.0
      %2720 = vmatpush1.msra.mxu0 0.0
      %2721 = vmatprep.subr.mxu0 0.0
      %2722 = vmatpush1.msra.mxu0 0.0
      %2723 = vmatprep.subr.mxu0 0.0
      %2724 = vmatpush1.msra.mxu0 0.0
      %2725 = vmatprep.subr.mxu0 0.0
      %2726 = vmatpush1.msra.mxu0 0.0
      %2727 = vmatprep.subr.mxu0 0.0
      %2728 = vmatpush1.msra.mxu0 0.0
      %2729 = vmatprep.subr.mxu0 0.0
      %2730 = vmatpush1.msra.mxu0 0.0
      %2731 = vmatprep.subr.mxu0 0.0
      %2732 = vmatpush1.msra.mxu0 0.0
      %2733 = vmatprep.subr.mxu0 0.0
      %2734 = vmatpush1.msra.mxu0 0.0
      %2735 = vmatprep.subr.mxu0 0.0
      %2736 = vmatpush1.msra.mxu0 0.0
      %2737 = vmatprep.subr.mxu0 0.0
      %2738 = vmatpush1.msra.mxu0 0.0
      %2739 = vmatprep.subr.mxu0 0.0
      %2740 = vmatpush1.msra.mxu0 0.0
      %2741 = vmatprep.mubr.f32.mxu0 0.0
      %2742 = vmatmul.mubr.f32.gmra.mrb[0].mxu0 %v2582
      %v2743 = vpop.f32.mrb[0].mxu0
      %v2744 = vadd.f32 %v659, %v2743
      %v2745 = vpop.f32.mrb[0].mxu0
      %2746 = vmatprep.mubr.f32.mxu0 0.0
      %2747 = vmatmul.mubr.f32.gmra.mrb[0].mxu0 %v2585
      %v2748 = vpop.f32.mrb[0].mxu0
      %v2749 = vadd.f32 %v659, %v2748
      %v2750 = vpop.f32.mrb[0].mxu0
      %2751 = vmatprep.mubr.f32.mxu0 0.0
      %2752 = vmatmul.mubr.f32.gmra.mrb[0].mxu0 %v2588
      %v2753 = vpop.f32.mrb[0].mxu0
      %v2754 = vadd.f32 %v659, %v2753
      %v2755 = vpop.f32.mrb[0].mxu0
      %2756 = vmatprep.mubr.f32.mxu0 0.0
      %2757 = vmatmul.mubr.f32.gmra.mrb[0].mxu0 %v2591
      %v2758 = vpop.f32.mrb[0].mxu0
      %v2759 = vadd.f32 %v659, %v2758
      %v2760 = vpop.f32.mrb[0].mxu0
      %2761 = vmatprep.mubr.f32.mxu0 0.0
      %2762 = vmatmul.mubr.f32.gmra.mrb[0].mxu0 %v2594
      %v2763 = vpop.f32.mrb[0].mxu0
      %v2764 = vadd.f32 %v659, %v2763
      %v2765 = vpop.f32.mrb[0].mxu0
      %2766 = vmatprep.mubr.f32.mxu0 0.0
      %2767 = vmatmul.mubr.f32.gmra.mrb[0].mxu0 %v2597
      %v2768 = vpop.f32.mrb[0].mxu0
      %v2769 = vadd.f32 %v659, %v2768
      %v2770 = vpop.f32.mrb[0].mxu0
      %2771 = vmatprep.mubr.f32.mxu0 0.0
      %2772 = vmatmul.mubr.f32.gmra.mrb[0].mxu0 %v2600
      %v2773 = vpop.f32.mrb[0].mxu0
      %v2774 = vadd.f32 %v659, %v2773
      %v2775 = vpop.f32.mrb[0].mxu0
      %2776 = vmatprep.mubr.f32.mxu0 0.0
      %2777 = vmatmul.mubr.f32.gmra.mrb[0].mxu0 %v2603
      %v2778 = vpop.f32.mrb[0].mxu0
      %v2779 = vadd.f32 %v659, %v2778
      %v2780 = vpop.f32.mrb[0].mxu0
      %2781 = vmatprep.mubr.f32.mxu0 0.0
      %2782 = vmatmul.mubr.f32.gmra.mrb[0].mxu0 %v2606
      %v2783 = vpop.f32.mrb[0].mxu0
      %v2784 = vadd.f32 %v659, %v2783
      %v2785 = vpop.f32.mrb[0].mxu0
      %2786 = vmatprep.mubr.f32.mxu0 0.0
      %2787 = vmatmul.mubr.f32.gmra.mrb[0].mxu0 %v2609
      %v2788 = vpop.f32.mrb[0].mxu0
      %v2789 = vadd.f32 %v659, %v2788
      %v2790 = vpop.f32.mrb[0].mxu0
      %2791 = vmatprep.mubr.f32.mxu0 0.0
      %2792 = vmatmul.mubr.f32.gmra.mrb[0].mxu0 %v2612
      %v2793 = vpop.f32.mrb[0].mxu0
      %v2794 = vadd.f32 %v659, %v2793
      %v2795 = vpop.f32.mrb[0].mxu0
      %2796 = vmatprep.mubr.f32.mxu0 0.0
      %2797 = vmatmul.mubr.f32.gmra.mrb[0].mxu0 %v2615
      %v2798 = vpop.f32.mrb[0].mxu0
      %v2799 = vadd.f32 %v659, %v2798
      %v2800 = vpop.f32.mrb[0].mxu0
      %2801 = vmatprep.mubr.f32.mxu0 0.0
      %2802 = vmatmul.mubr.f32.gmra.mrb[0].mxu0 %v2618
      %v2803 = vpop.f32.mrb[0].mxu0
      %v2804 = vadd.f32 %v659, %v2803
      %v2805 = vpop.f32.mrb[0].mxu0
      %2806 = vmatprep.mubr.f32.mxu0 0.0
      %2807 = vmatmul.mubr.f32.gmra.mrb[0].mxu0 %v2621
      %v2808 = vpop.f32.mrb[0].mxu0
      %v2809 = vadd.f32 %v659, %v2808
      %v2810 = vpop.f32.mrb[0].mxu0
      %2811 = vmatprep.mubr.f32.mxu0 0.0
      %2812 = vmatmul.mubr.f32.gmra.mrb[0].mxu0 %v2624
      %v2813 = vpop.f32.mrb[0].mxu0
      %v2814 = vadd.f32 %v659, %v2813
      %v2815 = vpop.f32.mrb[0].mxu0
      %2816 = vmatprep.mubr.f32.mxu0 0.0
      %2817 = vmatmul.mubr.f32.gmra.mrb[0].mxu0 %v2627
      %v2818 = vpop.f32.mrb[0].mxu0
      %v2819 = vadd.f32 %v659, %v2818
      %v2820 = vpop.f32.mrb[0].mxu0
      %2821 = vmatprep.mubr.f32.mxu0 0.0
      %2822 = vmatmul.mubr.f32.gmra.mrb[0].mxu0 %v2630
      %v2823 = vpop.f32.mrb[0].mxu0
      %v2824 = vadd.f32 %v659, %v2823
      %v2825 = vpop.f32.mrb[0].mxu0
      %2826 = vmatprep.mubr.f32.mxu0 0.0
      %2827 = vmatmul.mubr.f32.gmra.mrb[0].mxu0 %v2633
      %v2828 = vpop.f32.mrb[0].mxu0
      %v2829 = vadd.f32 %v659, %v2828
      %v2830 = vpop.f32.mrb[0].mxu0
      %2831 = vmatprep.mubr.f32.mxu0 0.0
      %2832 = vmatmul.mubr.f32.gmra.mrb[0].mxu0 %v2636
      %v2833 = vpop.f32.mrb[0].mxu0
      %v2834 = vadd.f32 %v659, %v2833
      %v2835 = vpop.f32.mrb[0].mxu0
      %2836 = vmatprep.mubr.f32.mxu0 0.0
      %2837 = vmatmul.mubr.f32.gmra.mrb[0].mxu0 %v2639
      %v2838 = vpop.f32.mrb[0].mxu0
      %v2839 = vadd.f32 %v659, %v2838
      %v2840 = vpop.f32.mrb[0].mxu0
      %2841 = vmatprep.mubr.f32.mxu0 0.0
      %2842 = vmatmul.mubr.f32.gmra.mrb[0].mxu0 %v2642
      %v2843 = vpop.f32.mrb[0].mxu0
      %v2844 = vadd.f32 %v659, %v2843
      %v2845 = vpop.f32.mrb[0].mxu0
      %2846 = vmatprep.mubr.f32.mxu0 0.0
      %2847 = vmatmul.mubr.f32.gmra.mrb[0].mxu0 %v2645
      %v2848 = vpop.f32.mrb[0].mxu0
      %v2849 = vadd.f32 %v659, %v2848
      %v2850 = vpop.f32.mrb[0].mxu0
      %2851 = vmatprep.mubr.f32.mxu0 0.0
      %2852 = vmatmul.mubr.f32.gmra.mrb[0].mxu0 %v2648
      %v2853 = vpop.f32.mrb[0].mxu0
      %v2854 = vadd.f32 %v659, %v2853
      %v2855 = vpop.f32.mrb[0].mxu0
      %2856 = vmatprep.mubr.f32.mxu0 0.0
      %2857 = vmatmul.mubr.f32.gmra.mrb[0].mxu0 %v2651
      %v2858 = vpop.f32.mrb[0].mxu0
      %v2859 = vadd.f32 %v659, %v2858
      %v2860 = vpop.f32.mrb[0].mxu0
      %2861 = vmatprep.mubr.f32.mxu0 0.0
      %2862 = vmatmul.mubr.f32.gmra.mrb[0].mxu0 %v2654
      %v2863 = vpop.f32.mrb[0].mxu0
      %v2864 = vadd.f32 %v659, %v2863
      %v2865 = vpop.f32.mrb[0].mxu0
      %2866 = vmatprep.mubr.f32.mxu0 0.0
      %2867 = vmatmul.mubr.f32.gmra.mrb[0].mxu0 %v2657
      %v2868 = vpop.f32.mrb[0].mxu0
      %v2869 = vadd.f32 %v659, %v2868
      %v2870 = vpop.f32.mrb[0].mxu0
      %2871 = vmatprep.mubr.f32.mxu0 0.0
      %2872 = vmatmul.mubr.f32.gmra.mrb[0].mxu0 %v2660
      %v2873 = vpop.f32.mrb[0].mxu0
      %v2874 = vadd.f32 %v659, %v2873
      %v2875 = vpop.f32.mrb[0].mxu0
      %2876 = vmatprep.mubr.f32.mxu0 0.0
      %2877 = vmatmul.mubr.f32.gmra.mrb[0].mxu0 %v2663
      %v2878 = vpop.f32.mrb[0].mxu0
      %v2879 = vadd.f32 %v659, %v2878
      %v2880 = vpop.f32.mrb[0].mxu0
      %2881 = vmatprep.mubr.f32.mxu0 0.0
      %2882 = vmatmul.mubr.f32.gmra.mrb[0].mxu0 %v2666
      %v2883 = vpop.f32.mrb[0].mxu0
      %v2884 = vadd.f32 %v659, %v2883
      %v2885 = vpop.f32.mrb[0].mxu0
      %2886 = vmatprep.mubr.f32.mxu0 0.0
      %2887 = vmatmul.mubr.f32.gmra.mrb[0].mxu0 %v2669
      %v2888 = vpop.f32.mrb[0].mxu0
      %v2889 = vadd.f32 %v659, %v2888
      %v2890 = vpop.f32.mrb[0].mxu0
      %2891 = vmatprep.mubr.f32.mxu0 0.0
      %2892 = vmatmul.mubr.f32.gmra.mrb[0].mxu0 %v2672
      %v2893 = vpop.f32.mrb[0].mxu0
      %v2894 = vadd.f32 %v659, %v2893
      %v2895 = vpop.f32.mrb[0].mxu0
      %2896 = vmatprep.mubr.f32.mxu0 0.0
      %2897 = vmatmul.mubr.f32.gmra.mrb[0].mxu0 %v2675
      %v2898 = vpop.f32.mrb[0].mxu0
      %v2899 = vadd.f32 %v659, %v2898
      %v2900 = vpop.f32.mrb[0].mxu0
      %2901 = vdwg.mxu0
      %v2902 = vmax.f32 %v2744, 0.0
      %v2903 = vmax.f32 %v2749, 0.0
      %v2904 = vmax.f32 %v2754, 0.0
      %v2905 = vmax.f32 %v2759, 0.0
      %v2906 = vmax.f32 %v2764, 0.0
      %v2907 = vmax.f32 %v2769, 0.0
      %v2908 = vmax.f32 %v2774, 0.0
      %v2909 = vmax.f32 %v2779, 0.0
      %v2910 = vmax.f32 %v2784, 0.0
      %v2911 = vmax.f32 %v2789, 0.0
      %v2912 = vmax.f32 %v2794, 0.0
      %v2913 = vmax.f32 %v2799, 0.0
      %v2914 = vmax.f32 %v2804, 0.0
      %v2915 = vmax.f32 %v2809, 0.0
      %v2916 = vmax.f32 %v2814, 0.0
      %v2917 = vmax.f32 %v2819, 0.0
      %v2918 = vmax.f32 %v2824, 0.0
      %v2919 = vmax.f32 %v2829, 0.0
      %v2920 = vmax.f32 %v2834, 0.0
      %v2921 = vmax.f32 %v2839, 0.0
      %v2922 = vmax.f32 %v2844, 0.0
      %v2923 = vmax.f32 %v2849, 0.0
      %v2924 = vmax.f32 %v2854, 0.0
      %v2925 = vmax.f32 %v2859, 0.0
      %v2926 = vmax.f32 %v2864, 0.0
      %v2927 = vmax.f32 %v2869, 0.0
      %v2928 = vmax.f32 %v2874, 0.0
      %v2929 = vmax.f32 %v2879, 0.0
      %v2930 = vmax.f32 %v2884, 0.0
      %v2931 = vmax.f32 %v2889, 0.0
      %v2932 = vmax.f32 %v2894, 0.0
      %v2933 = vmax.f32 %v2899, 0.0
      %v2934 = vadd.f32 %v487, %v2902
      %v2935 = vadd.f32 %v492, %v2903
      %v2936 = vadd.f32 %v497, %v2904
      %v2937 = vadd.f32 %v502, %v2905
      %v2938 = vadd.f32 %v507, %v2906
      %v2939 = vadd.f32 %v512, %v2907
      %v2940 = vadd.f32 %v517, %v2908
      %v2941 = vadd.f32 %v522, %v2909
      %v2942 = vadd.f32 %v527, %v2910
      %v2943 = vadd.f32 %v532, %v2911
      %v2944 = vadd.f32 %v537, %v2912
      %v2945 = vadd.f32 %v542, %v2913
      %v2946 = vadd.f32 %v547, %v2914
      %v2947 = vadd.f32 %v552, %v2915
      %v2948 = vadd.f32 %v557, %v2916
      %v2949 = vadd.f32 %v562, %v2917
      %v2950 = vadd.f32 %v567, %v2918
      %v2951 = vadd.f32 %v572, %v2919
      %v2952 = vadd.f32 %v577, %v2920
      %v2953 = vadd.f32 %v582, %v2921
      %v2954 = vadd.f32 %v587, %v2922
      %v2955 = vadd.f32 %v592, %v2923
      %v2956 = vadd.f32 %v597, %v2924
      %v2957 = vadd.f32 %v602, %v2925
      %v2958 = vadd.f32 %v607, %v2926
      %v2959 = vadd.f32 %v612, %v2927
      %v2960 = vadd.f32 %v617, %v2928
      %v2961 = vadd.f32 %v622, %v2929
      %v2962 = vadd.f32 %v627, %v2930
      %v2963 = vadd.f32 %v632, %v2931
      %v2964 = vadd.f32 %v637, %v2932
      %v2965 = vadd.f32 %v642, %v2933
      %v2998 = vrot.slane %v2934, 7
      %v2999 = vrot.slane %v2935, 7
      %v3000 = vsel %vm693, %v2998, %v2999
      %v3001 = vrot.slane %v2936, 7
      %v3002 = vrot.slane %v2937, 7
      %v3003 = vsel %vm693, %v3001, %v3002
      %v3004 = vrot.slane %v2938, 7
      %v3005 = vrot.slane %v2939, 7
      %v3006 = vsel %vm693, %v3004, %v3005
      %v3007 = vrot.slane %v2940, 7
      %v3008 = vrot.slane %v2941, 7
      %v3009 = vsel %vm693, %v3007, %v3008
      %v3010 = vrot.slane %v2942, 7
      %v3011 = vrot.slane %v2943, 7
      %v3012 = vsel %vm693, %v3010, %v3011
      %v3013 = vrot.slane %v2944, 7
      %v3014 = vrot.slane %v2945, 7
      %v3015 = vsel %vm693, %v3013, %v3014
      %v3016 = vrot.slane %v2946, 7
      %v3017 = vrot.slane %v2947, 7
      %v3018 = vsel %vm693, %v3016, %v3017
      %v3019 = vrot.slane %v2948, 7
      %v3020 = vrot.slane %v2949, 7
      %v3021 = vsel %vm693, %v3019, %v3020
      %v3022 = vrot.slane %v2950, 7
      %v3023 = vrot.slane %v2951, 7
      %v3024 = vsel %vm693, %v3022, %v3023
      %v3025 = vrot.slane %v2952, 7
      %v3026 = vrot.slane %v2953, 7
      %v3027 = vsel %vm693, %v3025, %v3026
      %v3028 = vrot.slane %v2954, 7
      %v3029 = vrot.slane %v2955, 7
      %v3030 = vsel %vm693, %v3028, %v3029
      %v3031 = vrot.slane %v2956, 7
      %v3032 = vrot.slane %v2957, 7
      %v3033 = vsel %vm693, %v3031, %v3032
      %v3034 = vrot.slane %v2958, 7
      %v3035 = vrot.slane %v2959, 7
      %v3036 = vsel %vm693, %v3034, %v3035
      %v3037 = vrot.slane %v2960, 7
      %v3038 = vrot.slane %v2961, 7
      %v3039 = vsel %vm693, %v3037, %v3038
      %v3040 = vrot.slane %v2962, 7
      %v3041 = vrot.slane %v2963, 7
      %v3042 = vsel %vm693, %v3040, %v3041
      %v3043 = vrot.slane %v2964, 7
      %v3044 = vrot.slane %v2965, 7
      %v3045 = vsel %vm693, %v3043, %v3044
      %v3078 = vsel %vm693, 0.0, %v2998
      %v3079 = vsel %vm693, 0.0, %v3001
      %v3080 = vsel %vm693, 0.0, %v3004
      %v3081 = vsel %vm693, 0.0, %v3007
      %v3082 = vsel %vm693, 0.0, %v3010
      %v3083 = vsel %vm693, 0.0, %v3013
      %v3084 = vsel %vm693, 0.0, %v3016
      %v3085 = vsel %vm693, 0.0, %v3019
      %v3086 = vsel %vm693, 0.0, %v3022
      %v3087 = vsel %vm693, 0.0, %v3025
      %v3088 = vsel %vm693, 0.0, %v3028
      %v3089 = vsel %vm693, 0.0, %v3031
      %v3090 = vsel %vm693, 0.0, %v3034
      %v3091 = vsel %vm693, 0.0, %v3037
      %v3092 = vsel %vm693, 0.0, %v3040
      %v3093 = vsel %vm693, 0.0, %v3043
      %v3094 = vrot.slane %v2934, 1
      %v3095 = vrot.slane %v2935, 1
      %v3096 = vsel %vm790, %v3094, %v3095
      %v3097 = vrot.slane %v2936, 1
      %v3098 = vrot.slane %v2937, 1
      %v3099 = vsel %vm790, %v3097, %v3098
      %v3100 = vrot.slane %v2938, 1
      %v3101 = vrot.slane %v2939, 1
      %v3102 = vsel %vm790, %v3100, %v3101
      %v3103 = vrot.slane %v2940, 1
      %v3104 = vrot.slane %v2941, 1
      %v3105 = vsel %vm790, %v3103, %v3104
      %v3106 = vrot.slane %v2942, 1
      %v3107 = vrot.slane %v2943, 1
      %v3108 = vsel %vm790, %v3106, %v3107
      %v3109 = vrot.slane %v2944, 1
      %v3110 = vrot.slane %v2945, 1
      %v3111 = vsel %vm790, %v3109, %v3110
      %v3112 = vrot.slane %v2946, 1
      %v3113 = vrot.slane %v2947, 1
      %v3114 = vsel %vm790, %v3112, %v3113
      %v3115 = vrot.slane %v2948, 1
      %v3116 = vrot.slane %v2949, 1
      %v3117 = vsel %vm790, %v3115, %v3116
      %v3118 = vrot.slane %v2950, 1
      %v3119 = vrot.slane %v2951, 1
      %v3120 = vsel %vm790, %v3118, %v3119
      %v3121 = vrot.slane %v2952, 1
      %v3122 = vrot.slane %v2953, 1
      %v3123 = vsel %vm790, %v3121, %v3122
      %v3124 = vrot.slane %v2954, 1
      %v3125 = vrot.slane %v2955, 1
      %v3126 = vsel %vm790, %v3124, %v3125
      %v3127 = vrot.slane %v2956, 1
      %v3128 = vrot.slane %v2957, 1
      %v3129 = vsel %vm790, %v3127, %v3128
      %v3130 = vrot.slane %v2958, 1
      %v3131 = vrot.slane %v2959, 1
      %v3132 = vsel %vm790, %v3130, %v3131
      %v3133 = vrot.slane %v2960, 1
      %v3134 = vrot.slane %v2961, 1
      %v3135 = vsel %vm790, %v3133, %v3134
      %v3136 = vrot.slane %v2962, 1
      %v3137 = vrot.slane %v2963, 1
      %v3138 = vsel %vm790, %v3136, %v3137
      %v3139 = vrot.slane %v2964, 1
      %v3140 = vrot.slane %v2965, 1
      %v3141 = vsel %vm790, %v3139, %v3140
      %v3158 = vsel %vm790, %v3095, 0.0
      %v3159 = vsel %vm790, %v3098, 0.0
      %v3160 = vsel %vm790, %v3101, 0.0
      %v3161 = vsel %vm790, %v3104, 0.0
      %v3162 = vsel %vm790, %v3107, 0.0
      %v3163 = vsel %vm790, %v3110, 0.0
      %v3164 = vsel %vm790, %v3113, 0.0
      %v3165 = vsel %vm790, %v3116, 0.0
      %v3166 = vsel %vm790, %v3119, 0.0
      %v3167 = vsel %vm790, %v3122, 0.0
      %v3168 = vsel %vm790, %v3125, 0.0
      %v3169 = vsel %vm790, %v3128, 0.0
      %v3170 = vsel %vm790, %v3131, 0.0
      %v3171 = vsel %vm790, %v3134, 0.0
      %v3172 = vsel %vm790, %v3137, 0.0
      %v3173 = vsel %vm790, %v3140, 0.0
      %3174 = vrot.lane.b32.xlu0 %v2934, 8
      %v3175 = vpop.permute.xlu0 %3174
      %3176 = vrot.lane.b32.xlu0 %v2935, 8
      %v3177 = vpop.permute.xlu0 %3176
      %3178 = vrot.lane.b32.xlu0 %v2936, 8
      %v3179 = vpop.permute.xlu0 %3178
      %3180 = vrot.lane.b32.xlu0 %v2937, 8
      %v3181 = vpop.permute.xlu0 %3180
      %3182 = vrot.lane.b32.xlu0 %v2938, 8
      %v3183 = vpop.permute.xlu0 %3182
      %3184 = vrot.lane.b32.xlu0 %v2939, 8
      %v3185 = vpop.permute.xlu0 %3184
      %3186 = vrot.lane.b32.xlu0 %v2940, 8
      %v3187 = vpop.permute.xlu0 %3186
      %3188 = vrot.lane.b32.xlu0 %v2941, 8
      %v3189 = vpop.permute.xlu0 %3188
      %3190 = vrot.lane.b32.xlu0 %v2942, 8
      %v3191 = vpop.permute.xlu0 %3190
      %3192 = vrot.lane.b32.xlu0 %v2943, 8
      %v3193 = vpop.permute.xlu0 %3192
      %3194 = vrot.lane.b32.xlu0 %v2944, 8
      %v3195 = vpop.permute.xlu0 %3194
      %3196 = vrot.lane.b32.xlu0 %v2945, 8
      %v3197 = vpop.permute.xlu0 %3196
      %3198 = vrot.lane.b32.xlu0 %v2946, 8
      %v3199 = vpop.permute.xlu0 %3198
      %3200 = vrot.lane.b32.xlu0 %v2947, 8
      %v3201 = vpop.permute.xlu0 %3200
      %3202 = vrot.lane.b32.xlu0 %v2948, 8
      %v3203 = vpop.permute.xlu0 %3202
      %3204 = vrot.lane.b32.xlu0 %v2949, 8
      %v3205 = vpop.permute.xlu0 %3204
      %3206 = vrot.lane.b32.xlu0 %v2950, 8
      %v3207 = vpop.permute.xlu0 %3206
      %3208 = vrot.lane.b32.xlu0 %v2951, 8
      %v3209 = vpop.permute.xlu0 %3208
      %3210 = vrot.lane.b32.xlu0 %v2952, 8
      %v3211 = vpop.permute.xlu0 %3210
      %3212 = vrot.lane.b32.xlu0 %v2953, 8
      %v3213 = vpop.permute.xlu0 %3212
      %3214 = vrot.lane.b32.xlu0 %v2954, 8
      %v3215 = vpop.permute.xlu0 %3214
      %3216 = vrot.lane.b32.xlu0 %v2955, 8
      %v3217 = vpop.permute.xlu0 %3216
      %3218 = vrot.lane.b32.xlu0 %v2956, 8
      %v3219 = vpop.permute.xlu0 %3218
      %3220 = vrot.lane.b32.xlu0 %v2957, 8
      %v3221 = vpop.permute.xlu0 %3220
      %3222 = vrot.lane.b32.xlu0 %v2958, 8
      %v3223 = vpop.permute.xlu0 %3222
      %3224 = vrot.lane.b32.xlu0 %v2959, 8
      %v3225 = vpop.permute.xlu0 %3224
      %3226 = vrot.lane.b32.xlu0 %v2960, 8
      %v3227 = vpop.permute.xlu0 %3226
      %3228 = vrot.lane.b32.xlu0 %v2961, 8
      %v3229 = vpop.permute.xlu0 %3228
      %3230 = vrot.lane.b32.xlu0 %v2962, 8
      %v3231 = vpop.permute.xlu0 %3230
      %3232 = vrot.lane.b32.xlu0 %v2963, 8
      %v3233 = vpop.permute.xlu0 %3232
      %3234 = vrot.lane.b32.xlu0 %v2964, 8
      %v3235 = vpop.permute.xlu0 %3234
      %3236 = vrot.lane.b32.xlu0 %v2965, 8
      %v3237 = vpop.permute.xlu0 %3236
      %3286 = vrot.lane.b32.xlu0 %v3096, 16
      %v3287 = vpop.permute.xlu0 %3286
      %3288 = vrot.lane.b32.xlu0 %v3158, 16
      %v3289 = vpop.permute.xlu0 %3288
      %3290 = vrot.lane.b32.xlu0 %v3099, 16
      %v3291 = vpop.permute.xlu0 %3290
      %3292 = vrot.lane.b32.xlu0 %v3159, 16
      %v3293 = vpop.permute.xlu0 %3292
      %3294 = vrot.lane.b32.xlu0 %v3102, 16
      %v3295 = vpop.permute.xlu0 %3294
      %3296 = vrot.lane.b32.xlu0 %v3160, 16
      %v3297 = vpop.permute.xlu0 %3296
      %3298 = vrot.lane.b32.xlu0 %v3105, 16
      %v3299 = vpop.permute.xlu0 %3298
      %3300 = vrot.lane.b32.xlu0 %v3161, 16
      %v3301 = vpop.permute.xlu0 %3300
      %3302 = vrot.lane.b32.xlu0 %v3108, 16
      %v3303 = vpop.permute.xlu0 %3302
      %3304 = vrot.lane.b32.xlu0 %v3162, 16
      %v3305 = vpop.permute.xlu0 %3304
      %3306 = vrot.lane.b32.xlu0 %v3111, 16
      %v3307 = vpop.permute.xlu0 %3306
      %3308 = vrot.lane.b32.xlu0 %v3163, 16
      %v3309 = vpop.permute.xlu0 %3308
      %3310 = vrot.lane.b32.xlu0 %v3114, 16
      %v3311 = vpop.permute.xlu0 %3310
      %3312 = vrot.lane.b32.xlu0 %v3164, 16
      %v3313 = vpop.permute.xlu0 %3312
      %3314 = vrot.lane.b32.xlu0 %v3117, 16
      %v3315 = vpop.permute.xlu0 %3314
      %3316 = vrot.lane.b32.xlu0 %v3165, 16
      %v3317 = vpop.permute.xlu0 %3316
      %3318 = vrot.lane.b32.xlu0 %v3120, 16
      %v3319 = vpop.permute.xlu0 %3318
      %3320 = vrot.lane.b32.xlu0 %v3166, 16
      %v3321 = vpop.permute.xlu0 %3320
      %3322 = vrot.lane.b32.xlu0 %v3123, 16
      %v3323 = vpop.permute.xlu0 %3322
      %3324 = vrot.lane.b32.xlu0 %v3167, 16
      %v3325 = vpop.permute.xlu0 %3324
      %3326 = vrot.lane.b32.xlu0 %v3126, 16
      %v3327 = vpop.permute.xlu0 %3326
      %3328 = vrot.lane.b32.xlu0 %v3168, 16
      %v3329 = vpop.permute.xlu0 %3328
      %3330 = vrot.lane.b32.xlu0 %v3129, 16
      %v3331 = vpop.permute.xlu0 %3330
      %3332 = vrot.lane.b32.xlu0 %v3169, 16
      %v3333 = vpop.permute.xlu0 %3332
      %3334 = vrot.lane.b32.xlu0 %v3132, 16
      %v3335 = vpop.permute.xlu0 %3334
      %3336 = vrot.lane.b32.xlu0 %v3170, 16
      %v3337 = vpop.permute.xlu0 %3336
      %3338 = vrot.lane.b32.xlu0 %v3135, 16
      %v3339 = vpop.permute.xlu0 %3338
      %3340 = vrot.lane.b32.xlu0 %v3171, 16
      %v3341 = vpop.permute.xlu0 %3340
      %3342 = vrot.lane.b32.xlu0 %v3138, 16
      %v3343 = vpop.permute.xlu0 %3342
      %3344 = vrot.lane.b32.xlu0 %v3172, 16
      %v3345 = vpop.permute.xlu0 %3344
      %3346 = vrot.lane.b32.xlu0 %v3141, 16
      %v3347 = vpop.permute.xlu0 %3346
      %3348 = vrot.lane.b32.xlu0 %v3173, 16
      %v3349 = vpop.permute.xlu0 %3348
      %v3382 = vsel %vm1079, %v3078, %v3175
      %v3383 = vsel %vm1079, %v3000, %v3177
      %v3384 = vsel %vm1079, %v3079, %v3179
      %v3385 = vsel %vm1079, %v3003, %v3181
      %v3386 = vsel %vm1079, %v3080, %v3183
      %v3387 = vsel %vm1079, %v3006, %v3185
      %v3388 = vsel %vm1079, %v3081, %v3187
      %v3389 = vsel %vm1079, %v3009, %v3189
      %v3390 = vsel %vm1079, %v3082, %v3191
      %v3391 = vsel %vm1079, %v3012, %v3193
      %v3392 = vsel %vm1079, %v3083, %v3195
      %v3393 = vsel %vm1079, %v3015, %v3197
      %v3394 = vsel %vm1079, %v3084, %v3199
      %v3395 = vsel %vm1079, %v3018, %v3201
      %v3396 = vsel %vm1079, %v3085, %v3203
      %v3397 = vsel %vm1079, %v3021, %v3205
      %v3398 = vsel %vm1079, %v3086, %v3207
      %v3399 = vsel %vm1079, %v3024, %v3209
      %v3400 = vsel %vm1079, %v3087, %v3211
      %v3401 = vsel %vm1079, %v3027, %v3213
      %v3402 = vsel %vm1079, %v3088, %v3215
      %v3403 = vsel %vm1079, %v3030, %v3217
      %v3404 = vsel %vm1079, %v3089, %v3219
      %v3405 = vsel %vm1079, %v3033, %v3221
      %v3406 = vsel %vm1079, %v3090, %v3223
      %v3407 = vsel %vm1079, %v3036, %v3225
      %v3408 = vsel %vm1079, %v3091, %v3227
      %v3409 = vsel %vm1079, %v3039, %v3229
      %v3410 = vsel %vm1079, %v3092, %v3231
      %v3411 = vsel %vm1079, %v3042, %v3233
      %v3412 = vsel %vm1079, %v3093, %v3235
      %v3413 = vsel %vm1079, %v3045, %v3237
      %v3414 = vsel %vm1112, %v3382, %v3287
      %v3415 = vsel %vm1112, %v3383, %v3289
      %v3416 = vsel %vm1112, %v3384, %v3291
      %v3417 = vsel %vm1112, %v3385, %v3293
      %v3418 = vsel %vm1112, %v3386, %v3295
      %v3419 = vsel %vm1112, %v3387, %v3297
      %v3420 = vsel %vm1112, %v3388, %v3299
      %v3421 = vsel %vm1112, %v3389, %v3301
      %v3422 = vsel %vm1112, %v3390, %v3303
      %v3423 = vsel %vm1112, %v3391, %v3305
      %v3424 = vsel %vm1112, %v3392, %v3307
      %v3425 = vsel %vm1112, %v3393, %v3309
      %v3426 = vsel %vm1112, %v3394, %v3311
      %v3427 = vsel %vm1112, %v3395, %v3313
      %v3428 = vsel %vm1112, %v3396, %v3315
      %v3429 = vsel %vm1112, %v3397, %v3317
      %v3430 = vsel %vm1112, %v3398, %v3319
      %v3431 = vsel %vm1112, %v3399, %v3321
      %v3432 = vsel %vm1112, %v3400, %v3323
      %v3433 = vsel %vm1112, %v3401, %v3325
      %v3434 = vsel %vm1112, %v3402, %v3327
      %v3435 = vsel %vm1112, %v3403, %v3329
      %v3436 = vsel %vm1112, %v3404, %v3331
      %v3437 = vsel %vm1112, %v3405, %v3333
      %v3438 = vsel %vm1112, %v3406, %v3335
      %v3439 = vsel %vm1112, %v3407, %v3337
      %v3440 = vsel %vm1112, %v3408, %v3339
      %v3441 = vsel %vm1112, %v3409, %v3341
      %v3442 = vsel %vm1112, %v3410, %v3343
      %v3443 = vsel %vm1112, %v3411, %v3345
      %v3444 = vsel %vm1112, %v3412, %v3347
      %v3445 = vsel %vm1112, %v3413, %v3349
      %3478 = vrot.lane.b32.xlu0 %v3414, 24
      %v3479 = vpop.permute.xlu0 %3478
      %3480 = vrot.lane.b32.xlu0 %v3415, 24
      %v3481 = vpop.permute.xlu0 %3480
      %3482 = vrot.lane.b32.xlu0 %v3416, 24
      %v3483 = vpop.permute.xlu0 %3482
      %3484 = vrot.lane.b32.xlu0 %v3417, 24
      %v3485 = vpop.permute.xlu0 %3484
      %3486 = vrot.lane.b32.xlu0 %v3418, 24
      %v3487 = vpop.permute.xlu0 %3486
      %3488 = vrot.lane.b32.xlu0 %v3419, 24
      %v3489 = vpop.permute.xlu0 %3488
      %3490 = vrot.lane.b32.xlu0 %v3420, 24
      %v3491 = vpop.permute.xlu0 %3490
      %3492 = vrot.lane.b32.xlu0 %v3421, 24
      %v3493 = vpop.permute.xlu0 %3492
      %3494 = vrot.lane.b32.xlu0 %v3422, 24
      %v3495 = vpop.permute.xlu0 %3494
      %3496 = vrot.lane.b32.xlu0 %v3423, 24
      %v3497 = vpop.permute.xlu0 %3496
      %3498 = vrot.lane.b32.xlu0 %v3424, 24
      %v3499 = vpop.permute.xlu0 %3498
      %3500 = vrot.lane.b32.xlu0 %v3425, 24
      %v3501 = vpop.permute.xlu0 %3500
      %3502 = vrot.lane.b32.xlu0 %v3426, 24
      %v3503 = vpop.permute.xlu0 %3502
      %3504 = vrot.lane.b32.xlu0 %v3427, 24
      %v3505 = vpop.permute.xlu0 %3504
      %3506 = vrot.lane.b32.xlu0 %v3428, 24
      %v3507 = vpop.permute.xlu0 %3506
      %3508 = vrot.lane.b32.xlu0 %v3429, 24
      %v3509 = vpop.permute.xlu0 %3508
      %3510 = vrot.lane.b32.xlu0 %v3430, 24
      %v3511 = vpop.permute.xlu0 %3510
      %3512 = vrot.lane.b32.xlu0 %v3431, 24
      %v3513 = vpop.permute.xlu0 %3512
      %3514 = vrot.lane.b32.xlu0 %v3432, 24
      %v3515 = vpop.permute.xlu0 %3514
      %3516 = vrot.lane.b32.xlu0 %v3433, 24
      %v3517 = vpop.permute.xlu0 %3516
      %3518 = vrot.lane.b32.xlu0 %v3434, 24
      %v3519 = vpop.permute.xlu0 %3518
      %3520 = vrot.lane.b32.xlu0 %v3435, 24
      %v3521 = vpop.permute.xlu0 %3520
      %3522 = vrot.lane.b32.xlu0 %v3436, 24
      %v3523 = vpop.permute.xlu0 %3522
      %3524 = vrot.lane.b32.xlu0 %v3437, 24
      %v3525 = vpop.permute.xlu0 %3524
      %3526 = vrot.lane.b32.xlu0 %v3438, 24
      %v3527 = vpop.permute.xlu0 %3526
      %3528 = vrot.lane.b32.xlu0 %v3439, 24
      %v3529 = vpop.permute.xlu0 %3528
      %3530 = vrot.lane.b32.xlu0 %v3440, 24
      %v3531 = vpop.permute.xlu0 %3530
      %3532 = vrot.lane.b32.xlu0 %v3441, 24
      %v3533 = vpop.permute.xlu0 %3532
      %3534 = vrot.lane.b32.xlu0 %v3442, 24
      %v3535 = vpop.permute.xlu0 %3534
      %3536 = vrot.lane.b32.xlu0 %v3443, 24
      %v3537 = vpop.permute.xlu0 %3536
      %3538 = vrot.lane.b32.xlu0 %v3444, 24
      %v3539 = vpop.permute.xlu0 %3538
      %3540 = vrot.lane.b32.xlu0 %v3445, 24
      %v3541 = vpop.permute.xlu0 %3540
      %3574 = vrot.lane.b32.xlu0 %v3416, 48
      %v3575 = vpop.permute.xlu0 %3574
      %3576 = vrot.lane.b32.xlu0 %v3417, 48
      %v3577 = vpop.permute.xlu0 %3576
      %3578 = vrot.lane.b32.xlu0 %v3418, 48
      %v3579 = vpop.permute.xlu0 %3578
      %3580 = vrot.lane.b32.xlu0 %v3419, 48
      %v3581 = vpop.permute.xlu0 %3580
      %3582 = vrot.lane.b32.xlu0 %v3420, 48
      %v3583 = vpop.permute.xlu0 %3582
      %3584 = vrot.lane.b32.xlu0 %v3421, 48
      %v3585 = vpop.permute.xlu0 %3584
      %3586 = vrot.lane.b32.xlu0 %v3422, 48
      %v3587 = vpop.permute.xlu0 %3586
      %3588 = vrot.lane.b32.xlu0 %v3423, 48
      %v3589 = vpop.permute.xlu0 %3588
      %3590 = vrot.lane.b32.xlu0 %v3424, 48
      %v3591 = vpop.permute.xlu0 %3590
      %3592 = vrot.lane.b32.xlu0 %v3425, 48
      %v3593 = vpop.permute.xlu0 %3592
      %3594 = vrot.lane.b32.xlu0 %v3426, 48
      %v3595 = vpop.permute.xlu0 %3594
      %3596 = vrot.lane.b32.xlu0 %v3427, 48
      %v3597 = vpop.permute.xlu0 %3596
      %3598 = vrot.lane.b32.xlu0 %v3428, 48
      %v3599 = vpop.permute.xlu0 %3598
      %3600 = vrot.lane.b32.xlu0 %v3429, 48
      %v3601 = vpop.permute.xlu0 %3600
      %3602 = vrot.lane.b32.xlu0 %v3430, 48
      %v3603 = vpop.permute.xlu0 %3602
      %3604 = vrot.lane.b32.xlu0 %v3431, 48
      %v3605 = vpop.permute.xlu0 %3604
      %3606 = vrot.lane.b32.xlu0 %v3432, 48
      %v3607 = vpop.permute.xlu0 %3606
      %3608 = vrot.lane.b32.xlu0 %v3433, 48
      %v3609 = vpop.permute.xlu0 %3608
      %3610 = vrot.lane.b32.xlu0 %v3434, 48
      %v3611 = vpop.permute.xlu0 %3610
      %3612 = vrot.lane.b32.xlu0 %v3435, 48
      %v3613 = vpop.permute.xlu0 %3612
      %3614 = vrot.lane.b32.xlu0 %v3436, 48
      %v3615 = vpop.permute.xlu0 %3614
      %3616 = vrot.lane.b32.xlu0 %v3437, 48
      %v3617 = vpop.permute.xlu0 %3616
      %3618 = vrot.lane.b32.xlu0 %v3438, 48
      %v3619 = vpop.permute.xlu0 %3618
      %3620 = vrot.lane.b32.xlu0 %v3439, 48
      %v3621 = vpop.permute.xlu0 %3620
      %3622 = vrot.lane.b32.xlu0 %v3440, 48
      %v3623 = vpop.permute.xlu0 %3622
      %3624 = vrot.lane.b32.xlu0 %v3441, 48
      %v3625 = vpop.permute.xlu0 %3624
      %3626 = vrot.lane.b32.xlu0 %v3442, 48
      %v3627 = vpop.permute.xlu0 %3626
      %3628 = vrot.lane.b32.xlu0 %v3443, 48
      %v3629 = vpop.permute.xlu0 %3628
      %3630 = vrot.lane.b32.xlu0 %v3444, 48
      %v3631 = vpop.permute.xlu0 %3630
      %3632 = vrot.lane.b32.xlu0 %v3445, 48
      %v3633 = vpop.permute.xlu0 %3632
      %v3664 = vsel %vm1367, 0.0, %v3479
      %v3665 = vsel %vm1367, 0.0, %v3481
      %v3666 = vsel %vm1367, %v3414, %v3483
      %v3667 = vsel %vm1367, %v3415, %v3485
      %v3668 = vsel %vm1367, %v3416, %v3487
      %v3669 = vsel %vm1367, %v3417, %v3489
      %v3670 = vsel %vm1367, %v3418, %v3491
      %v3671 = vsel %vm1367, %v3419, %v3493
      %v3672 = vsel %vm1367, %v3420, %v3495
      %v3673 = vsel %vm1367, %v3421, %v3497
      %v3674 = vsel %vm1367, %v3422, %v3499
      %v3675 = vsel %vm1367, %v3423, %v3501
      %v3676 = vsel %vm1367, %v3424, %v3503
      %v3677 = vsel %vm1367, %v3425, %v3505
      %v3678 = vsel %vm1367, %v3426, %v3507
      %v3679 = vsel %vm1367, %v3427, %v3509
      %v3680 = vsel %vm1367, %v3428, %v3511
      %v3681 = vsel %vm1367, %v3429, %v3513
      %v3682 = vsel %vm1367, %v3430, %v3515
      %v3683 = vsel %vm1367, %v3431, %v3517
      %v3684 = vsel %vm1367, %v3432, %v3519
      %v3685 = vsel %vm1367, %v3433, %v3521
      %v3686 = vsel %vm1367, %v3434, %v3523
      %v3687 = vsel %vm1367, %v3435, %v3525
      %v3688 = vsel %vm1367, %v3436, %v3527
      %v3689 = vsel %vm1367, %v3437, %v3529
      %v3690 = vsel %vm1367, %v3438, %v3531
      %v3691 = vsel %vm1367, %v3439, %v3533
      %v3692 = vsel %vm1367, %v3440, %v3535
      %v3693 = vsel %vm1367, %v3441, %v3537
      %v3694 = vsel %vm1367, %v3442, %v3539
      %v3695 = vsel %vm1367, %v3443, %v3541
      %v3696 = vsel %vm1400, %v3664, %v3575
      %v3697 = vsel %vm1400, %v3665, %v3577
      %v3698 = vsel %vm1400, %v3666, %v3579
      %v3699 = vsel %vm1400, %v3667, %v3581
      %v3700 = vsel %vm1400, %v3668, %v3583
      %v3701 = vsel %vm1400, %v3669, %v3585
      %v3702 = vsel %vm1400, %v3670, %v3587
      %v3703 = vsel %vm1400, %v3671, %v3589
      %v3704 = vsel %vm1400, %v3672, %v3591
      %v3705 = vsel %vm1400, %v3673, %v3593
      %v3706 = vsel %vm1400, %v3674, %v3595
      %v3707 = vsel %vm1400, %v3675, %v3597
      %v3708 = vsel %vm1400, %v3676, %v3599
      %v3709 = vsel %vm1400, %v3677, %v3601
      %v3710 = vsel %vm1400, %v3678, %v3603
      %v3711 = vsel %vm1400, %v3679, %v3605
      %v3712 = vsel %vm1400, %v3680, %v3607
      %v3713 = vsel %vm1400, %v3681, %v3609
      %v3714 = vsel %vm1400, %v3682, %v3611
      %v3715 = vsel %vm1400, %v3683, %v3613
      %v3716 = vsel %vm1400, %v3684, %v3615
      %v3717 = vsel %vm1400, %v3685, %v3617
      %v3718 = vsel %vm1400, %v3686, %v3619
      %v3719 = vsel %vm1400, %v3687, %v3621
      %v3720 = vsel %vm1400, %v3688, %v3623
      %v3721 = vsel %vm1400, %v3689, %v3625
      %v3722 = vsel %vm1400, %v3690, %v3627
      %v3723 = vsel %vm1400, %v3691, %v3629
      %v3724 = vsel %vm1400, %v3692, %v3631
      %v3725 = vsel %vm1400, %v3693, %v3633
      %v3726 = vsel %vm1400, %v3694, %v1335
      %v3727 = vsel %vm1400, %v3695, %v1335
      %v3729 = vsel %vm1433, %v3696, 0
      %v3732 = vsel %vm1433, %v3697, 0
      %v3735 = vsel %vm1433, %v3698, 0
      %v3738 = vsel %vm1433, %v3699, 0
      %v3741 = vsel %vm1433, %v3700, 0
      %v3744 = vsel %vm1433, %v3701, 0
      %v3747 = vsel %vm1433, %v3702, 0
      %v3750 = vsel %vm1433, %v3703, 0
      %v3753 = vsel %vm1433, %v3704, 0
      %v3756 = vsel %vm1433, %v3705, 0
      %v3759 = vsel %vm1433, %v3706, 0
      %v3762 = vsel %vm1433, %v3707, 0
      %v3765 = vsel %vm1433, %v3708, 0
      %v3768 = vsel %vm1433, %v3709, 0
      %v3771 = vsel %vm1433, %v3710, 0
      %v3774 = vsel %vm1433, %v3711, 0
      %v3777 = vsel %vm1433, %v3712, 0
      %v3780 = vsel %vm1433, %v3713, 0
      %v3783 = vsel %vm1433, %v3714, 0
      %v3786 = vsel %vm1433, %v3715, 0
      %v3789 = vsel %vm1433, %v3716, 0
      %v3792 = vsel %vm1433, %v3717, 0
      %v3795 = vsel %vm1433, %v3718, 0
      %v3798 = vsel %vm1433, %v3719, 0
      %v3801 = vsel %vm1433, %v3720, 0
      %v3804 = vsel %vm1433, %v3721, 0
      %v3807 = vsel %vm1433, %v3722, 0
      %v3810 = vsel %vm1433, %v3723, 0
      %v3813 = vsel %vm1433, %v3724, 0
      %v3816 = vsel %vm1433, %v3725, 0
      %v3819 = vsel %vm1433, %v3726, 0
      %v3822 = vsel %vm1433, %v3727, 0
      %3824 = vmatprep.subr.mxu0 0.0
      %3825 = vmatpush1.msra.mxu0 %v645
      %3826 = vmatprep.subr.mxu0 0.0
      %3827 = vmatpush1.msra.mxu0 %v646
      %3828 = vmatprep.subr.mxu0 0.0
      %3829 = vmatpush1.msra.mxu0 %v647
      %3830 = vmatprep.subr.mxu0 0.0
      %3831 = vmatpush1.msra.mxu0 %v648
      %3832 = vmatprep.subr.mxu0 0.0
      %3833 = vmatpush1.msra.mxu0 %v649
      %3834 = vmatprep.subr.mxu0 0.0
      %3835 = vmatpush1.msra.mxu0 %v650
      %3836 = vmatprep.subr.mxu0 0.0
      %3837 = vmatpush1.msra.mxu0 %v651
      %3838 = vmatprep.subr.mxu0 0.0
      %3839 = vmatpush1.msra.mxu0 %v652
      %3840 = vmatprep.subr.mxu0 0.0
      %3841 = vmatpush1.msra.mxu0 %v653
      %3842 = vmatprep.subr.mxu0 0.0
      %3843 = vmatpush1.msra.mxu0 0.0
      %3844 = vmatprep.subr.mxu0 0.0
      %3845 = vmatpush1.msra.mxu0 0.0
      %3846 = vmatprep.subr.mxu0 0.0
      %3847 = vmatpush1.msra.mxu0 0.0
      %3848 = vmatprep.subr.mxu0 0.0
      %3849 = vmatpush1.msra.mxu0 0.0
      %3850 = vmatprep.subr.mxu0 0.0
      %3851 = vmatpush1.msra.mxu0 0.0
      %3852 = vmatprep.subr.mxu0 0.0
      %3853 = vmatpush1.msra.mxu0 0.0
      %3854 = vmatprep.subr.mxu0 0.0
      %3855 = vmatpush1.msra.mxu0 0.0
      %3856 = vmatprep.subr.mxu0 0.0
      %3857 = vmatpush1.msra.mxu0 0.0
      %3858 = vmatprep.subr.mxu0 0.0
      %3859 = vmatpush1.msra.mxu0 0.0
      %3860 = vmatprep.subr.mxu0 0.0
      %3861 = vmatpush1.msra.mxu0 0.0
      %3862 = vmatprep.subr.mxu0 0.0
      %3863 = vmatpush1.msra.mxu0 0.0
      %3864 = vmatprep.subr.mxu0 0.0
      %3865 = vmatpush1.msra.mxu0 0.0
      %3866 = vmatprep.subr.mxu0 0.0
      %3867 = vmatpush1.msra.mxu0 0.0
      %3868 = vmatprep.subr.mxu0 0.0
      %3869 = vmatpush1.msra.mxu0 0.0
      %3870 = vmatprep.subr.mxu0 0.0
      %3871 = vmatpush1.msra.mxu0 0.0
      %3872 = vmatprep.subr.mxu0 0.0
      %3873 = vmatpush1.msra.mxu0 0.0
      %3874 = vmatprep.subr.mxu0 0.0
      %3875 = vmatpush1.msra.mxu0 0.0
      %3876 = vmatprep.subr.mxu0 0.0
      %3877 = vmatpush1.msra.mxu0 0.0
      %3878 = vmatprep.subr.mxu0 0.0
      %3879 = vmatpush1.msra.mxu0 0.0
      %3880 = vmatprep.subr.mxu0 0.0
      %3881 = vmatpush1.msra.mxu0 0.0
      %3882 = vmatprep.subr.mxu0 0.0
      %3883 = vmatpush1.msra.mxu0 0.0
      %3884 = vmatprep.subr.mxu0 0.0
      %3885 = vmatpush1.msra.mxu0 0.0
      %3886 = vmatprep.subr.mxu0 0.0
      %3887 = vmatpush1.msra.mxu0 0.0
      %3888 = vmatprep.mubr.f32.mxu0 0.0
      %3889 = vmatmul.mubr.f32.gmra.mrb[0].mxu0 %v3729
      %v3890 = vpop.f32.mrb[0].mxu0
      %v3891 = vadd.f32 %v659, %v3890
      %v3892 = vpop.f32.mrb[0].mxu0
      %3893 = vmatprep.mubr.f32.mxu0 0.0
      %3894 = vmatmul.mubr.f32.gmra.mrb[0].mxu0 %v3732
      %v3895 = vpop.f32.mrb[0].mxu0
      %v3896 = vadd.f32 %v659, %v3895
      %v3897 = vpop.f32.mrb[0].mxu0
      %3898 = vmatprep.mubr.f32.mxu0 0.0
      %3899 = vmatmul.mubr.f32.gmra.mrb[0].mxu0 %v3735
      %v3900 = vpop.f32.mrb[0].mxu0
      %v3901 = vadd.f32 %v659, %v3900
      %v3902 = vpop.f32.mrb[0].mxu0
      %3903 = vmatprep.mubr.f32.mxu0 0.0
      %3904 = vmatmul.mubr.f32.gmra.mrb[0].mxu0 %v3738
      %v3905 = vpop.f32.mrb[0].mxu0
      %v3906 = vadd.f32 %v659, %v3905
      %v3907 = vpop.f32.mrb[0].mxu0
      %3908 = vmatprep.mubr.f32.mxu0 0.0
      %3909 = vmatmul.mubr.f32.gmra.mrb[0].mxu0 %v3741
      %v3910 = vpop.f32.mrb[0].mxu0
      %v3911 = vadd.f32 %v659, %v3910
      %v3912 = vpop.f32.mrb[0].mxu0
      %3913 = vmatprep.mubr.f32.mxu0 0.0
      %3914 = vmatmul.mubr.f32.gmra.mrb[0].mxu0 %v3744
      %v3915 = vpop.f32.mrb[0].mxu0
      %v3916 = vadd.f32 %v659, %v3915
      %v3917 = vpop.f32.mrb[0].mxu0
      %3918 = vmatprep.mubr.f32.mxu0 0.0
      %3919 = vmatmul.mubr.f32.gmra.mrb[0].mxu0 %v3747
      %v3920 = vpop.f32.mrb[0].mxu0
      %v3921 = vadd.f32 %v659, %v3920
      %v3922 = vpop.f32.mrb[0].mxu0
      %3923 = vmatprep.mubr.f32.mxu0 0.0
      %3924 = vmatmul.mubr.f32.gmra.mrb[0].mxu0 %v3750
      %v3925 = vpop.f32.mrb[0].mxu0
      %v3926 = vadd.f32 %v659, %v3925
      %v3927 = vpop.f32.mrb[0].mxu0
      %3928 = vmatprep.mubr.f32.mxu0 0.0
      %3929 = vmatmul.mubr.f32.gmra.mrb[0].mxu0 %v3753
      %v3930 = vpop.f32.mrb[0].mxu0
      %v3931 = vadd.f32 %v659, %v3930
      %v3932 = vpop.f32.mrb[0].mxu0
      %3933 = vmatprep.mubr.f32.mxu0 0.0
      %3934 = vmatmul.mubr.f32.gmra.mrb[0].mxu0 %v3756
      %v3935 = vpop.f32.mrb[0].mxu0
      %v3936 = vadd.f32 %v659, %v3935
      %v3937 = vpop.f32.mrb[0].mxu0
      %3938 = vmatprep.mubr.f32.mxu0 0.0
      %3939 = vmatmul.mubr.f32.gmra.mrb[0].mxu0 %v3759
      %v3940 = vpop.f32.mrb[0].mxu0
      %v3941 = vadd.f32 %v659, %v3940
      %v3942 = vpop.f32.mrb[0].mxu0
      %3943 = vmatprep.mubr.f32.mxu0 0.0
      %3944 = vmatmul.mubr.f32.gmra.mrb[0].mxu0 %v3762
      %v3945 = vpop.f32.mrb[0].mxu0
      %v3946 = vadd.f32 %v659, %v3945
      %v3947 = vpop.f32.mrb[0].mxu0
      %3948 = vmatprep.mubr.f32.mxu0 0.0
      %3949 = vmatmul.mubr.f32.gmra.mrb[0].mxu0 %v3765
      %v3950 = vpop.f32.mrb[0].mxu0
      %v3951 = vadd.f32 %v659, %v3950
      %v3952 = vpop.f32.mrb[0].mxu0
      %3953 = vmatprep.mubr.f32.mxu0 0.0
      %3954 = vmatmul.mubr.f32.gmra.mrb[0].mxu0 %v3768
      %v3955 = vpop.f32.mrb[0].mxu0
      %v3956 = vadd.f32 %v659, %v3955
      %v3957 = vpop.f32.mrb[0].mxu0
      %3958 = vmatprep.mubr.f32.mxu0 0.0
      %3959 = vmatmul.mubr.f32.gmra.mrb[0].mxu0 %v3771
      %v3960 = vpop.f32.mrb[0].mxu0
      %v3961 = vadd.f32 %v659, %v3960
      %v3962 = vpop.f32.mrb[0].mxu0
      %3963 = vmatprep.mubr.f32.mxu0 0.0
      %3964 = vmatmul.mubr.f32.gmra.mrb[0].mxu0 %v3774
      %v3965 = vpop.f32.mrb[0].mxu0
      %v3966 = vadd.f32 %v659, %v3965
      %v3967 = vpop.f32.mrb[0].mxu0
      %3968 = vmatprep.mubr.f32.mxu0 0.0
      %3969 = vmatmul.mubr.f32.gmra.mrb[0].mxu0 %v3777
      %v3970 = vpop.f32.mrb[0].mxu0
      %v3971 = vadd.f32 %v659, %v3970
      %v3972 = vpop.f32.mrb[0].mxu0
      %3973 = vmatprep.mubr.f32.mxu0 0.0
      %3974 = vmatmul.mubr.f32.gmra.mrb[0].mxu0 %v3780
      %v3975 = vpop.f32.mrb[0].mxu0
      %v3976 = vadd.f32 %v659, %v3975
      %v3977 = vpop.f32.mrb[0].mxu0
      %3978 = vmatprep.mubr.f32.mxu0 0.0
      %3979 = vmatmul.mubr.f32.gmra.mrb[0].mxu0 %v3783
      %v3980 = vpop.f32.mrb[0].mxu0
      %v3981 = vadd.f32 %v659, %v3980
      %v3982 = vpop.f32.mrb[0].mxu0
      %3983 = vmatprep.mubr.f32.mxu0 0.0
      %3984 = vmatmul.mubr.f32.gmra.mrb[0].mxu0 %v3786
      %v3985 = vpop.f32.mrb[0].mxu0
      %v3986 = vadd.f32 %v659, %v3985
      %v3987 = vpop.f32.mrb[0].mxu0
      %3988 = vmatprep.mubr.f32.mxu0 0.0
      %3989 = vmatmul.mubr.f32.gmra.mrb[0].mxu0 %v3789
      %v3990 = vpop.f32.mrb[0].mxu0
      %v3991 = vadd.f32 %v659, %v3990
      %v3992 = vpop.f32.mrb[0].mxu0
      %3993 = vmatprep.mubr.f32.mxu0 0.0
      %3994 = vmatmul.mubr.f32.gmra.mrb[0].mxu0 %v3792
      %v3995 = vpop.f32.mrb[0].mxu0
      %v3996 = vadd.f32 %v659, %v3995
      %v3997 = vpop.f32.mrb[0].mxu0
      %3998 = vmatprep.mubr.f32.mxu0 0.0
      %3999 = vmatmul.mubr.f32.gmra.mrb[0].mxu0 %v3795
      %v4000 = vpop.f32.mrb[0].mxu0
      %v4001 = vadd.f32 %v659, %v4000
      %v4002 = vpop.f32.mrb[0].mxu0
      %4003 = vmatprep.mubr.f32.mxu0 0.0
      %4004 = vmatmul.mubr.f32.gmra.mrb[0].mxu0 %v3798
      %v4005 = vpop.f32.mrb[0].mxu0
      %v4006 = vadd.f32 %v659, %v4005
      %v4007 = vpop.f32.mrb[0].mxu0
      %4008 = vmatprep.mubr.f32.mxu0 0.0
      %4009 = vmatmul.mubr.f32.gmra.mrb[0].mxu0 %v3801
      %v4010 = vpop.f32.mrb[0].mxu0
      %v4011 = vadd.f32 %v659, %v4010
      %v4012 = vpop.f32.mrb[0].mxu0
      %4013 = vmatprep.mubr.f32.mxu0 0.0
      %4014 = vmatmul.mubr.f32.gmra.mrb[0].mxu0 %v3804
      %v4015 = vpop.f32.mrb[0].mxu0
      %v4016 = vadd.f32 %v659, %v4015
      %v4017 = vpop.f32.mrb[0].mxu0
      %4018 = vmatprep.mubr.f32.mxu0 0.0
      %4019 = vmatmul.mubr.f32.gmra.mrb[0].mxu0 %v3807
      %v4020 = vpop.f32.mrb[0].mxu0
      %v4021 = vadd.f32 %v659, %v4020
      %v4022 = vpop.f32.mrb[0].mxu0
      %4023 = vmatprep.mubr.f32.mxu0 0.0
      %4024 = vmatmul.mubr.f32.gmra.mrb[0].mxu0 %v3810
      %v4025 = vpop.f32.mrb[0].mxu0
      %v4026 = vadd.f32 %v659, %v4025
      %v4027 = vpop.f32.mrb[0].mxu0
      %4028 = vmatprep.mubr.f32.mxu0 0.0
      %4029 = vmatmul.mubr.f32.gmra.mrb[0].mxu0 %v3813
      %v4030 = vpop.f32.mrb[0].mxu0
      %v4031 = vadd.f32 %v659, %v4030
      %v4032 = vpop.f32.mrb[0].mxu0
      %4033 = vmatprep.mubr.f32.mxu0 0.0
      %4034 = vmatmul.mubr.f32.gmra.mrb[0].mxu0 %v3816
      %v4035 = vpop.f32.mrb[0].mxu0
      %v4036 = vadd.f32 %v659, %v4035
      %v4037 = vpop.f32.mrb[0].mxu0
      %4038 = vmatprep.mubr.f32.mxu0 0.0
      %4039 = vmatmul.mubr.f32.gmra.mrb[0].mxu0 %v3819
      %v4040 = vpop.f32.mrb[0].mxu0
      %v4041 = vadd.f32 %v659, %v4040
      %v4042 = vpop.f32.mrb[0].mxu0
      %4043 = vmatprep.mubr.f32.mxu0 0.0
      %4044 = vmatmul.mubr.f32.gmra.mrb[0].mxu0 %v3822
      %v4045 = vpop.f32.mrb[0].mxu0
      %v4046 = vadd.f32 %v659, %v4045
      %v4047 = vpop.f32.mrb[0].mxu0
      %4048 = vdwg.mxu0
      %v4049 = vmax.f32 %v3891, 0.0
      %v4050 = vmax.f32 %v3896, 0.0
      %v4051 = vmax.f32 %v3901, 0.0
      %v4052 = vmax.f32 %v3906, 0.0
      %v4053 = vmax.f32 %v3911, 0.0
      %v4054 = vmax.f32 %v3916, 0.0
      %v4055 = vmax.f32 %v3921, 0.0
      %v4056 = vmax.f32 %v3926, 0.0
      %v4057 = vmax.f32 %v3931, 0.0
      %v4058 = vmax.f32 %v3936, 0.0
      %v4059 = vmax.f32 %v3941, 0.0
      %v4060 = vmax.f32 %v3946, 0.0
      %v4061 = vmax.f32 %v3951, 0.0
      %v4062 = vmax.f32 %v3956, 0.0
      %v4063 = vmax.f32 %v3961, 0.0
      %v4064 = vmax.f32 %v3966, 0.0
      %v4065 = vmax.f32 %v3971, 0.0
      %v4066 = vmax.f32 %v3976, 0.0
      %v4067 = vmax.f32 %v3981, 0.0
      %v4068 = vmax.f32 %v3986, 0.0
      %v4069 = vmax.f32 %v3991, 0.0
      %v4070 = vmax.f32 %v3996, 0.0
      %v4071 = vmax.f32 %v4001, 0.0
      %v4072 = vmax.f32 %v4006, 0.0
      %v4073 = vmax.f32 %v4011, 0.0
      %v4074 = vmax.f32 %v4016, 0.0
      %v4075 = vmax.f32 %v4021, 0.0
      %v4076 = vmax.f32 %v4026, 0.0
      %v4077 = vmax.f32 %v4031, 0.0
      %v4078 = vmax.f32 %v4036, 0.0
      %v4079 = vmax.f32 %v4041, 0.0
      %v4080 = vmax.f32 %v4046, 0.0
      %v4081 = vld [vmem:[%s5] sm:$0xff]
      %v4082 = vld [vmem:[%s5 + $0x8] sm:$0xff]
      %v4083 = vld [vmem:[%s5 + $0x10] sm:$0xff]
      %v4084 = vld [vmem:[%s5 + $0x18] sm:$0xff]
      %v4085 = vld [vmem:[%s5 + $0x20] sm:$0xff]
      %v4086 = vld [vmem:[%s5 + $0x28] sm:$0xff]
      %v4087 = vld [vmem:[%s5 + $0x30] sm:$0xff]
      %v4088 = vld [vmem:[%s5 + $0x38] sm:$0xff]
      %v4089 = vld [vmem:[%s5 + $0x40] sm:$0xff]
      %v4090 = vld [vmem:[%s6] sm:$0x1]
      %v4092 = vlaneseq
      %v4093 = vshrl.u32 %v4092, 7
      %v4094 = vsub.s32 0, %v4093
      %v4095 = vrot.slane %v4090, %v4094
      %v4129 = vrot.slane %v4049, 7
      %v4130 = vrot.slane %v4050, 7
      %v4131 = vsel %vm693, %v4129, %v4130
      %v4132 = vrot.slane %v4051, 7
      %v4133 = vrot.slane %v4052, 7
      %v4134 = vsel %vm693, %v4132, %v4133
      %v4135 = vrot.slane %v4053, 7
      %v4136 = vrot.slane %v4054, 7
      %v4137 = vsel %vm693, %v4135, %v4136
      %v4138 = vrot.slane %v4055, 7
      %v4139 = vrot.slane %v4056, 7
      %v4140 = vsel %vm693, %v4138, %v4139
      %v4141 = vrot.slane %v4057, 7
      %v4142 = vrot.slane %v4058, 7
      %v4143 = vsel %vm693, %v4141, %v4142
      %v4144 = vrot.slane %v4059, 7
      %v4145 = vrot.slane %v4060, 7
      %v4146 = vsel %vm693, %v4144, %v4145
      %v4147 = vrot.slane %v4061, 7
      %v4148 = vrot.slane %v4062, 7
      %v4149 = vsel %vm693, %v4147, %v4148
      %v4150 = vrot.slane %v4063, 7
      %v4151 = vrot.slane %v4064, 7
      %v4152 = vsel %vm693, %v4150, %v4151
      %v4153 = vrot.slane %v4065, 7
      %v4154 = vrot.slane %v4066, 7
      %v4155 = vsel %vm693, %v4153, %v4154
      %v4156 = vrot.slane %v4067, 7
      %v4157 = vrot.slane %v4068, 7
      %v4158 = vsel %vm693, %v4156, %v4157
      %v4159 = vrot.slane %v4069, 7
      %v4160 = vrot.slane %v4070, 7
      %v4161 = vsel %vm693, %v4159, %v4160
      %v4162 = vrot.slane %v4071, 7
      %v4163 = vrot.slane %v4072, 7
      %v4164 = vsel %vm693, %v4162, %v4163
      %v4165 = vrot.slane %v4073, 7
      %v4166 = vrot.slane %v4074, 7
      %v4167 = vsel %vm693, %v4165, %v4166
      %v4168 = vrot.slane %v4075, 7
      %v4169 = vrot.slane %v4076, 7
      %v4170 = vsel %vm693, %v4168, %v4169
      %v4171 = vrot.slane %v4077, 7
      %v4172 = vrot.slane %v4078, 7
      %v4173 = vsel %vm693, %v4171, %v4172
      %v4174 = vrot.slane %v4079, 7
      %v4175 = vrot.slane %v4080, 7
      %v4176 = vsel %vm693, %v4174, %v4175
      %v4209 = vsel %vm693, 0.0, %v4129
      %v4210 = vsel %vm693, 0.0, %v4132
      %v4211 = vsel %vm693, 0.0, %v4135
      %v4212 = vsel %vm693, 0.0, %v4138
      %v4213 = vsel %vm693, 0.0, %v4141
      %v4214 = vsel %vm693, 0.0, %v4144
      %v4215 = vsel %vm693, 0.0, %v4147
      %v4216 = vsel %vm693, 0.0, %v4150
      %v4217 = vsel %vm693, 0.0, %v4153
      %v4218 = vsel %vm693, 0.0, %v4156
      %v4219 = vsel %vm693, 0.0, %v4159
      %v4220 = vsel %vm693, 0.0, %v4162
      %v4221 = vsel %vm693, 0.0, %v4165
      %v4222 = vsel %vm693, 0.0, %v4168
      %v4223 = vsel %vm693, 0.0, %v4171
      %v4224 = vsel %vm693, 0.0, %v4174
      %v4225 = vrot.slane %v4049, 1
      %v4226 = vrot.slane %v4050, 1
      %v4227 = vsel %vm790, %v4225, %v4226
      %v4228 = vrot.slane %v4051, 1
      %v4229 = vrot.slane %v4052, 1
      %v4230 = vsel %vm790, %v4228, %v4229
      %v4231 = vrot.slane %v4053, 1
      %v4232 = vrot.slane %v4054, 1
      %v4233 = vsel %vm790, %v4231, %v4232
      %v4234 = vrot.slane %v4055, 1
      %v4235 = vrot.slane %v4056, 1
      %v4236 = vsel %vm790, %v4234, %v4235
      %v4237 = vrot.slane %v4057, 1
      %v4238 = vrot.slane %v4058, 1
      %v4239 = vsel %vm790, %v4237, %v4238
      %v4240 = vrot.slane %v4059, 1
      %v4241 = vrot.slane %v4060, 1
      %v4242 = vsel %vm790, %v4240, %v4241
      %v4243 = vrot.slane %v4061, 1
      %v4244 = vrot.slane %v4062, 1
      %v4245 = vsel %vm790, %v4243, %v4244
      %v4246 = vrot.slane %v4063, 1
      %v4247 = vrot.slane %v4064, 1
      %v4248 = vsel %vm790, %v4246, %v4247
      %v4249 = vrot.slane %v4065, 1
      %v4250 = vrot.slane %v4066, 1
      %v4251 = vsel %vm790, %v4249, %v4250
      %v4252 = vrot.slane %v4067, 1
      %v4253 = vrot.slane %v4068, 1
      %v4254 = vsel %vm790, %v4252, %v4253
      %v4255 = vrot.slane %v4069, 1
      %v4256 = vrot.slane %v4070, 1
      %v4257 = vsel %vm790, %v4255, %v4256
      %v4258 = vrot.slane %v4071, 1
      %v4259 = vrot.slane %v4072, 1
      %v4260 = vsel %vm790, %v4258, %v4259
      %v4261 = vrot.slane %v4073, 1
      %v4262 = vrot.slane %v4074, 1
      %v4263 = vsel %vm790, %v4261, %v4262
      %v4264 = vrot.slane %v4075, 1
      %v4265 = vrot.slane %v4076, 1
      %v4266 = vsel %vm790, %v4264, %v4265
      %v4267 = vrot.slane %v4077, 1
      %v4268 = vrot.slane %v4078, 1
      %v4269 = vsel %vm790, %v4267, %v4268
      %v4270 = vrot.slane %v4079, 1
      %v4271 = vrot.slane %v4080, 1
      %v4272 = vsel %vm790, %v4270, %v4271
      %v4289 = vsel %vm790, %v4226, 0.0
      %v4290 = vsel %vm790, %v4229, 0.0
      %v4291 = vsel %vm790, %v4232, 0.0
      %v4292 = vsel %vm790, %v4235, 0.0
      %v4293 = vsel %vm790, %v4238, 0.0
      %v4294 = vsel %vm790, %v4241, 0.0
      %v4295 = vsel %vm790, %v4244, 0.0
      %v4296 = vsel %vm790, %v4247, 0.0
      %v4297 = vsel %vm790, %v4250, 0.0
      %v4298 = vsel %vm790, %v4253, 0.0
      %v4299 = vsel %vm790, %v4256, 0.0
      %v4300 = vsel %vm790, %v4259, 0.0
      %v4301 = vsel %vm790, %v4262, 0.0
      %v4302 = vsel %vm790, %v4265, 0.0
      %v4303 = vsel %vm790, %v4268, 0.0
      %v4304 = vsel %vm790, %v4271, 0.0
      %4305 = vrot.lane.b32.xlu0 %v4049, 8
      %v4306 = vpop.permute.xlu0 %4305
      %4307 = vrot.lane.b32.xlu0 %v4050, 8
      %v4308 = vpop.permute.xlu0 %4307
      %4309 = vrot.lane.b32.xlu0 %v4051, 8
      %v4310 = vpop.permute.xlu0 %4309
      %4311 = vrot.lane.b32.xlu0 %v4052, 8
      %v4312 = vpop.permute.xlu0 %4311
      %4313 = vrot.lane.b32.xlu0 %v4053, 8
      %v4314 = vpop.permute.xlu0 %4313
      %4315 = vrot.lane.b32.xlu0 %v4054, 8
      %v4316 = vpop.permute.xlu0 %4315
      %4317 = vrot.lane.b32.xlu0 %v4055, 8
      %v4318 = vpop.permute.xlu0 %4317
      %4319 = vrot.lane.b32.xlu0 %v4056, 8
      %v4320 = vpop.permute.xlu0 %4319
      %4321 = vrot.lane.b32.xlu0 %v4057, 8
      %v4322 = vpop.permute.xlu0 %4321
      %4323 = vrot.lane.b32.xlu0 %v4058, 8
      %v4324 = vpop.permute.xlu0 %4323
      %4325 = vrot.lane.b32.xlu0 %v4059, 8
      %v4326 = vpop.permute.xlu0 %4325
      %4327 = vrot.lane.b32.xlu0 %v4060, 8
      %v4328 = vpop.permute.xlu0 %4327
      %4329 = vrot.lane.b32.xlu0 %v4061, 8
      %v4330 = vpop.permute.xlu0 %4329
      %4331 = vrot.lane.b32.xlu0 %v4062, 8
      %v4332 = vpop.permute.xlu0 %4331
      %4333 = vrot.lane.b32.xlu0 %v4063, 8
      %v4334 = vpop.permute.xlu0 %4333
      %4335 = vrot.lane.b32.xlu0 %v4064, 8
      %v4336 = vpop.permute.xlu0 %4335
      %4337 = vrot.lane.b32.xlu0 %v4065, 8
      %v4338 = vpop.permute.xlu0 %4337
      %4339 = vrot.lane.b32.xlu0 %v4066, 8
      %v4340 = vpop.permute.xlu0 %4339
      %4341 = vrot.lane.b32.xlu0 %v4067, 8
      %v4342 = vpop.permute.xlu0 %4341
      %4343 = vrot.lane.b32.xlu0 %v4068, 8
      %v4344 = vpop.permute.xlu0 %4343
      %4345 = vrot.lane.b32.xlu0 %v4069, 8
      %v4346 = vpop.permute.xlu0 %4345
      %4347 = vrot.lane.b32.xlu0 %v4070, 8
      %v4348 = vpop.permute.xlu0 %4347
      %4349 = vrot.lane.b32.xlu0 %v4071, 8
      %v4350 = vpop.permute.xlu0 %4349
      %4351 = vrot.lane.b32.xlu0 %v4072, 8
      %v4352 = vpop.permute.xlu0 %4351
      %4353 = vrot.lane.b32.xlu0 %v4073, 8
      %v4354 = vpop.permute.xlu0 %4353
      %4355 = vrot.lane.b32.xlu0 %v4074, 8
      %v4356 = vpop.permute.xlu0 %4355
      %4357 = vrot.lane.b32.xlu0 %v4075, 8
      %v4358 = vpop.permute.xlu0 %4357
      %4359 = vrot.lane.b32.xlu0 %v4076, 8
      %v4360 = vpop.permute.xlu0 %4359
      %4361 = vrot.lane.b32.xlu0 %v4077, 8
      %v4362 = vpop.permute.xlu0 %4361
      %4363 = vrot.lane.b32.xlu0 %v4078, 8
      %v4364 = vpop.permute.xlu0 %4363
      %4365 = vrot.lane.b32.xlu0 %v4079, 8
      %v4366 = vpop.permute.xlu0 %4365
      %4367 = vrot.lane.b32.xlu0 %v4080, 8
      %v4368 = vpop.permute.xlu0 %4367
      %4417 = vrot.lane.b32.xlu0 %v4227, 16
      %v4418 = vpop.permute.xlu0 %4417
      %4419 = vrot.lane.b32.xlu0 %v4289, 16
      %v4420 = vpop.permute.xlu0 %4419
      %4421 = vrot.lane.b32.xlu0 %v4230, 16
      %v4422 = vpop.permute.xlu0 %4421
      %4423 = vrot.lane.b32.xlu0 %v4290, 16
      %v4424 = vpop.permute.xlu0 %4423
      %4425 = vrot.lane.b32.xlu0 %v4233, 16
      %v4426 = vpop.permute.xlu0 %4425
      %4427 = vrot.lane.b32.xlu0 %v4291, 16
      %v4428 = vpop.permute.xlu0 %4427
      %4429 = vrot.lane.b32.xlu0 %v4236, 16
      %v4430 = vpop.permute.xlu0 %4429
      %4431 = vrot.lane.b32.xlu0 %v4292, 16
      %v4432 = vpop.permute.xlu0 %4431
      %4433 = vrot.lane.b32.xlu0 %v4239, 16
      %v4434 = vpop.permute.xlu0 %4433
      %4435 = vrot.lane.b32.xlu0 %v4293, 16
      %v4436 = vpop.permute.xlu0 %4435
      %4437 = vrot.lane.b32.xlu0 %v4242, 16
      %v4438 = vpop.permute.xlu0 %4437
      %4439 = vrot.lane.b32.xlu0 %v4294, 16
      %v4440 = vpop.permute.xlu0 %4439
      %4441 = vrot.lane.b32.xlu0 %v4245, 16
      %v4442 = vpop.permute.xlu0 %4441
      %4443 = vrot.lane.b32.xlu0 %v4295, 16
      %v4444 = vpop.permute.xlu0 %4443
      %4445 = vrot.lane.b32.xlu0 %v4248, 16
      %v4446 = vpop.permute.xlu0 %4445
      %4447 = vrot.lane.b32.xlu0 %v4296, 16
      %v4448 = vpop.permute.xlu0 %4447
      %4449 = vrot.lane.b32.xlu0 %v4251, 16
      %v4450 = vpop.permute.xlu0 %4449
      %4451 = vrot.lane.b32.xlu0 %v4297, 16
      %v4452 = vpop.permute.xlu0 %4451
      %4453 = vrot.lane.b32.xlu0 %v4254, 16
      %v4454 = vpop.permute.xlu0 %4453
      %4455 = vrot.lane.b32.xlu0 %v4298, 16
      %v4456 = vpop.permute.xlu0 %4455
      %4457 = vrot.lane.b32.xlu0 %v4257, 16
      %v4458 = vpop.permute.xlu0 %4457
      %4459 = vrot.lane.b32.xlu0 %v4299, 16
      %v4460 = vpop.permute.xlu0 %4459
      %4461 = vrot.lane.b32.xlu0 %v4260, 16
      %v4462 = vpop.permute.xlu0 %4461
      %4463 = vrot.lane.b32.xlu0 %v4300, 16
      %v4464 = vpop.permute.xlu0 %4463
      %4465 = vrot.lane.b32.xlu0 %v4263, 16
      %v4466 = vpop.permute.xlu0 %4465
      %4467 = vrot.lane.b32.xlu0 %v4301, 16
      %v4468 = vpop.permute.xlu0 %4467
      %4469 = vrot.lane.b32.xlu0 %v4266, 16
      %v4470 = vpop.permute.xlu0 %4469
      %4471 = vrot.lane.b32.xlu0 %v4302, 16
      %v4472 = vpop.permute.xlu0 %4471
      %4473 = vrot.lane.b32.xlu0 %v4269, 16
      %v4474 = vpop.permute.xlu0 %4473
      %4475 = vrot.lane.b32.xlu0 %v4303, 16
      %v4476 = vpop.permute.xlu0 %4475
      %4477 = vrot.lane.b32.xlu0 %v4272, 16
      %v4478 = vpop.permute.xlu0 %4477
      %4479 = vrot.lane.b32.xlu0 %v4304, 16
      %v4480 = vpop.permute.xlu0 %4479
      %v4513 = vsel %vm1079, %v4209, %v4306
      %v4514 = vsel %vm1079, %v4131, %v4308
      %v4515 = vsel %vm1079, %v4210, %v4310
      %v4516 = vsel %vm1079, %v4134, %v4312
      %v4517 = vsel %vm1079, %v4211, %v4314
      %v4518 = vsel %vm1079, %v4137, %v4316
      %v4519 = vsel %vm1079, %v4212, %v4318
      %v4520 = vsel %vm1079, %v4140, %v4320
      %v4521 = vsel %vm1079, %v4213, %v4322
      %v4522 = vsel %vm1079, %v4143, %v4324
      %v4523 = vsel %vm1079, %v4214, %v4326
      %v4524 = vsel %vm1079, %v4146, %v4328
      %v4525 = vsel %vm1079, %v4215, %v4330
      %v4526 = vsel %vm1079, %v4149, %v4332
      %v4527 = vsel %vm1079, %v4216, %v4334
      %v4528 = vsel %vm1079, %v4152, %v4336
      %v4529 = vsel %vm1079, %v4217, %v4338
      %v4530 = vsel %vm1079, %v4155, %v4340
      %v4531 = vsel %vm1079, %v4218, %v4342
      %v4532 = vsel %vm1079, %v4158, %v4344
      %v4533 = vsel %vm1079, %v4219, %v4346
      %v4534 = vsel %vm1079, %v4161, %v4348
      %v4535 = vsel %vm1079, %v4220, %v4350
      %v4536 = vsel %vm1079, %v4164, %v4352
      %v4537 = vsel %vm1079, %v4221, %v4354
      %v4538 = vsel %vm1079, %v4167, %v4356
      %v4539 = vsel %vm1079, %v4222, %v4358
      %v4540 = vsel %vm1079, %v4170, %v4360
      %v4541 = vsel %vm1079, %v4223, %v4362
      %v4542 = vsel %vm1079, %v4173, %v4364
      %v4543 = vsel %vm1079, %v4224, %v4366
      %v4544 = vsel %vm1079, %v4176, %v4368
      %v4545 = vsel %vm1112, %v4513, %v4418
      %v4546 = vsel %vm1112, %v4514, %v4420
      %v4547 = vsel %vm1112, %v4515, %v4422
      %v4548 = vsel %vm1112, %v4516, %v4424
      %v4549 = vsel %vm1112, %v4517, %v4426
      %v4550 = vsel %vm1112, %v4518, %v4428
      %v4551 = vsel %vm1112, %v4519, %v4430
      %v4552 = vsel %vm1112, %v4520, %v4432
      %v4553 = vsel %vm1112, %v4521, %v4434
      %v4554 = vsel %vm1112, %v4522, %v4436
      %v4555 = vsel %vm1112, %v4523, %v4438
      %v4556 = vsel %vm1112, %v4524, %v4440
      %v4557 = vsel %vm1112, %v4525, %v4442
      %v4558 = vsel %vm1112, %v4526, %v4444
      %v4559 = vsel %vm1112, %v4527, %v4446
      %v4560 = vsel %vm1112, %v4528, %v4448
      %v4561 = vsel %vm1112, %v4529, %v4450
      %v4562 = vsel %vm1112, %v4530, %v4452
      %v4563 = vsel %vm1112, %v4531, %v4454
      %v4564 = vsel %vm1112, %v4532, %v4456
      %v4565 = vsel %vm1112, %v4533, %v4458
      %v4566 = vsel %vm1112, %v4534, %v4460
      %v4567 = vsel %vm1112, %v4535, %v4462
      %v4568 = vsel %vm1112, %v4536, %v4464
      %v4569 = vsel %vm1112, %v4537, %v4466
      %v4570 = vsel %vm1112, %v4538, %v4468
      %v4571 = vsel %vm1112, %v4539, %v4470
      %v4572 = vsel %vm1112, %v4540, %v4472
      %v4573 = vsel %vm1112, %v4541, %v4474
      %v4574 = vsel %vm1112, %v4542, %v4476
      %v4575 = vsel %vm1112, %v4543, %v4478
      %v4576 = vsel %vm1112, %v4544, %v4480
      %4609 = vrot.lane.b32.xlu0 %v4545, 24
      %v4610 = vpop.permute.xlu0 %4609
      %4611 = vrot.lane.b32.xlu0 %v4546, 24
      %v4612 = vpop.permute.xlu0 %4611
      %4613 = vrot.lane.b32.xlu0 %v4547, 24
      %v4614 = vpop.permute.xlu0 %4613
      %4615 = vrot.lane.b32.xlu0 %v4548, 24
      %v4616 = vpop.permute.xlu0 %4615
      %4617 = vrot.lane.b32.xlu0 %v4549, 24
      %v4618 = vpop.permute.xlu0 %4617
      %4619 = vrot.lane.b32.xlu0 %v4550, 24
      %v4620 = vpop.permute.xlu0 %4619
      %4621 = vrot.lane.b32.xlu0 %v4551, 24
      %v4622 = vpop.permute.xlu0 %4621
      %4623 = vrot.lane.b32.xlu0 %v4552, 24
      %v4624 = vpop.permute.xlu0 %4623
      %4625 = vrot.lane.b32.xlu0 %v4553, 24
      %v4626 = vpop.permute.xlu0 %4625
      %4627 = vrot.lane.b32.xlu0 %v4554, 24
      %v4628 = vpop.permute.xlu0 %4627
      %4629 = vrot.lane.b32.xlu0 %v4555, 24
      %v4630 = vpop.permute.xlu0 %4629
      %4631 = vrot.lane.b32.xlu0 %v4556, 24
      %v4632 = vpop.permute.xlu0 %4631
      %4633 = vrot.lane.b32.xlu0 %v4557, 24
      %v4634 = vpop.permute.xlu0 %4633
      %4635 = vrot.lane.b32.xlu0 %v4558, 24
      %v4636 = vpop.permute.xlu0 %4635
      %4637 = vrot.lane.b32.xlu0 %v4559, 24
      %v4638 = vpop.permute.xlu0 %4637
      %4639 = vrot.lane.b32.xlu0 %v4560, 24
      %v4640 = vpop.permute.xlu0 %4639
      %4641 = vrot.lane.b32.xlu0 %v4561, 24
      %v4642 = vpop.permute.xlu0 %4641
      %4643 = vrot.lane.b32.xlu0 %v4562, 24
      %v4644 = vpop.permute.xlu0 %4643
      %4645 = vrot.lane.b32.xlu0 %v4563, 24
      %v4646 = vpop.permute.xlu0 %4645
      %4647 = vrot.lane.b32.xlu0 %v4564, 24
      %v4648 = vpop.permute.xlu0 %4647
      %4649 = vrot.lane.b32.xlu0 %v4565, 24
      %v4650 = vpop.permute.xlu0 %4649
      %4651 = vrot.lane.b32.xlu0 %v4566, 24
      %v4652 = vpop.permute.xlu0 %4651
      %4653 = vrot.lane.b32.xlu0 %v4567, 24
      %v4654 = vpop.permute.xlu0 %4653
      %4655 = vrot.lane.b32.xlu0 %v4568, 24
      %v4656 = vpop.permute.xlu0 %4655
      %4657 = vrot.lane.b32.xlu0 %v4569, 24
      %v4658 = vpop.permute.xlu0 %4657
      %4659 = vrot.lane.b32.xlu0 %v4570, 24
      %v4660 = vpop.permute.xlu0 %4659
      %4661 = vrot.lane.b32.xlu0 %v4571, 24
      %v4662 = vpop.permute.xlu0 %4661
      %4663 = vrot.lane.b32.xlu0 %v4572, 24
      %v4664 = vpop.permute.xlu0 %4663
      %4665 = vrot.lane.b32.xlu0 %v4573, 24
      %v4666 = vpop.permute.xlu0 %4665
      %4667 = vrot.lane.b32.xlu0 %v4574, 24
      %v4668 = vpop.permute.xlu0 %4667
      %4669 = vrot.lane.b32.xlu0 %v4575, 24
      %v4670 = vpop.permute.xlu0 %4669
      %4671 = vrot.lane.b32.xlu0 %v4576, 24
      %v4672 = vpop.permute.xlu0 %4671
      %4705 = vrot.lane.b32.xlu0 %v4547, 48
      %v4706 = vpop.permute.xlu0 %4705
      %4707 = vrot.lane.b32.xlu0 %v4548, 48
      %v4708 = vpop.permute.xlu0 %4707
      %4709 = vrot.lane.b32.xlu0 %v4549, 48
      %v4710 = vpop.permute.xlu0 %4709
      %4711 = vrot.lane.b32.xlu0 %v4550, 48
      %v4712 = vpop.permute.xlu0 %4711
      %4713 = vrot.lane.b32.xlu0 %v4551, 48
      %v4714 = vpop.permute.xlu0 %4713
      %4715 = vrot.lane.b32.xlu0 %v4552, 48
      %v4716 = vpop.permute.xlu0 %4715
      %4717 = vrot.lane.b32.xlu0 %v4553, 48
      %v4718 = vpop.permute.xlu0 %4717
      %4719 = vrot.lane.b32.xlu0 %v4554, 48
      %v4720 = vpop.permute.xlu0 %4719
      %4721 = vrot.lane.b32.xlu0 %v4555, 48
      %v4722 = vpop.permute.xlu0 %4721
      %4723 = vrot.lane.b32.xlu0 %v4556, 48
      %v4724 = vpop.permute.xlu0 %4723
      %4725 = vrot.lane.b32.xlu0 %v4557, 48
      %v4726 = vpop.permute.xlu0 %4725
      %4727 = vrot.lane.b32.xlu0 %v4558, 48
      %v4728 = vpop.permute.xlu0 %4727
      %4729 = vrot.lane.b32.xlu0 %v4559, 48
      %v4730 = vpop.permute.xlu0 %4729
      %4731 = vrot.lane.b32.xlu0 %v4560, 48
      %v4732 = vpop.permute.xlu0 %4731
      %4733 = vrot.lane.b32.xlu0 %v4561, 48
      %v4734 = vpop.permute.xlu0 %4733
      %4735 = vrot.lane.b32.xlu0 %v4562, 48
      %v4736 = vpop.permute.xlu0 %4735
      %4737 = vrot.lane.b32.xlu0 %v4563, 48
      %v4738 = vpop.permute.xlu0 %4737
      %4739 = vrot.lane.b32.xlu0 %v4564, 48
      %v4740 = vpop.permute.xlu0 %4739
      %4741 = vrot.lane.b32.xlu0 %v4565, 48
      %v4742 = vpop.permute.xlu0 %4741
      %4743 = vrot.lane.b32.xlu0 %v4566, 48
      %v4744 = vpop.permute.xlu0 %4743
      %4745 = vrot.lane.b32.xlu0 %v4567, 48
      %v4746 = vpop.permute.xlu0 %4745
      %4747 = vrot.lane.b32.xlu0 %v4568, 48
      %v4748 = vpop.permute.xlu0 %4747
      %4749 = vrot.lane.b32.xlu0 %v4569, 48
      %v4750 = vpop.permute.xlu0 %4749
      %4751 = vrot.lane.b32.xlu0 %v4570, 48
      %v4752 = vpop.permute.xlu0 %4751
      %4753 = vrot.lane.b32.xlu0 %v4571, 48
      %v4754 = vpop.permute.xlu0 %4753
      %4755 = vrot.lane.b32.xlu0 %v4572, 48
      %v4756 = vpop.permute.xlu0 %4755
      %4757 = vrot.lane.b32.xlu0 %v4573, 48
      %v4758 = vpop.permute.xlu0 %4757
      %4759 = vrot.lane.b32.xlu0 %v4574, 48
      %v4760 = vpop.permute.xlu0 %4759
      %4761 = vrot.lane.b32.xlu0 %v4575, 48
      %v4762 = vpop.permute.xlu0 %4761
      %4763 = vrot.lane.b32.xlu0 %v4576, 48
      %v4764 = vpop.permute.xlu0 %4763
      %v4795 = vsel %vm1367, 0.0, %v4610
      %v4796 = vsel %vm1367, 0.0, %v4612
      %v4797 = vsel %vm1367, %v4545, %v4614
      %v4798 = vsel %vm1367, %v4546, %v4616
      %v4799 = vsel %vm1367, %v4547, %v4618
      %v4800 = vsel %vm1367, %v4548, %v4620
      %v4801 = vsel %vm1367, %v4549, %v4622
      %v4802 = vsel %vm1367, %v4550, %v4624
      %v4803 = vsel %vm1367, %v4551, %v4626
      %v4804 = vsel %vm1367, %v4552, %v4628
      %v4805 = vsel %vm1367, %v4553, %v4630
      %v4806 = vsel %vm1367, %v4554, %v4632
      %v4807 = vsel %vm1367, %v4555, %v4634
      %v4808 = vsel %vm1367, %v4556, %v4636
      %v4809 = vsel %vm1367, %v4557, %v4638
      %v4810 = vsel %vm1367, %v4558, %v4640
      %v4811 = vsel %vm1367, %v4559, %v4642
      %v4812 = vsel %vm1367, %v4560, %v4644
      %v4813 = vsel %vm1367, %v4561, %v4646
      %v4814 = vsel %vm1367, %v4562, %v4648
      %v4815 = vsel %vm1367, %v4563, %v4650
      %v4816 = vsel %vm1367, %v4564, %v4652
      %v4817 = vsel %vm1367, %v4565, %v4654
      %v4818 = vsel %vm1367, %v4566, %v4656
      %v4819 = vsel %vm1367, %v4567, %v4658
      %v4820 = vsel %vm1367, %v4568, %v4660
      %v4821 = vsel %vm1367, %v4569, %v4662
      %v4822 = vsel %vm1367, %v4570, %v4664
      %v4823 = vsel %vm1367, %v4571, %v4666
      %v4824 = vsel %vm1367, %v4572, %v4668
      %v4825 = vsel %vm1367, %v4573, %v4670
      %v4826 = vsel %vm1367, %v4574, %v4672
      %v4827 = vsel %vm1400, %v4795, %v4706
      %v4828 = vsel %vm1400, %v4796, %v4708
      %v4829 = vsel %vm1400, %v4797, %v4710
      %v4830 = vsel %vm1400, %v4798, %v4712
      %v4831 = vsel %vm1400, %v4799, %v4714
      %v4832 = vsel %vm1400, %v4800, %v4716
      %v4833 = vsel %vm1400, %v4801, %v4718
      %v4834 = vsel %vm1400, %v4802, %v4720
      %v4835 = vsel %vm1400, %v4803, %v4722
      %v4836 = vsel %vm1400, %v4804, %v4724
      %v4837 = vsel %vm1400, %v4805, %v4726
      %v4838 = vsel %vm1400, %v4806, %v4728
      %v4839 = vsel %vm1400, %v4807, %v4730
      %v4840 = vsel %vm1400, %v4808, %v4732
      %v4841 = vsel %vm1400, %v4809, %v4734
      %v4842 = vsel %vm1400, %v4810, %v4736
      %v4843 = vsel %vm1400, %v4811, %v4738
      %v4844 = vsel %vm1400, %v4812, %v4740
      %v4845 = vsel %vm1400, %v4813, %v4742
      %v4846 = vsel %vm1400, %v4814, %v4744
      %v4847 = vsel %vm1400, %v4815, %v4746
      %v4848 = vsel %vm1400, %v4816, %v4748
      %v4849 = vsel %vm1400, %v4817, %v4750
      %v4850 = vsel %vm1400, %v4818, %v4752
      %v4851 = vsel %vm1400, %v4819, %v4754
      %v4852 = vsel %vm1400, %v4820, %v4756
      %v4853 = vsel %vm1400, %v4821, %v4758
      %v4854 = vsel %vm1400, %v4822, %v4760
      %v4855 = vsel %vm1400, %v4823, %v4762
      %v4856 = vsel %vm1400, %v4824, %v4764
      %v4857 = vsel %vm1400, %v4825, %v1335
      %v4858 = vsel %vm1400, %v4826, %v1335
      %v4860 = vsel %vm1433, %v4827, 0
      %v4863 = vsel %vm1433, %v4828, 0
      %v4866 = vsel %vm1433, %v4829, 0
      %v4869 = vsel %vm1433, %v4830, 0
      %v4872 = vsel %vm1433, %v4831, 0
      %v4875 = vsel %vm1433, %v4832, 0
      %v4878 = vsel %vm1433, %v4833, 0
      %v4881 = vsel %vm1433, %v4834, 0
      %v4884 = vsel %vm1433, %v4835, 0
      %v4887 = vsel %vm1433, %v4836, 0
      %v4890 = vsel %vm1433, %v4837, 0
      %v4893 = vsel %vm1433, %v4838, 0
      %v4896 = vsel %vm1433, %v4839, 0
      %v4899 = vsel %vm1433, %v4840, 0
      %v4902 = vsel %vm1433, %v4841, 0
      %v4905 = vsel %vm1433, %v4842, 0
      %v4908 = vsel %vm1433, %v4843, 0
      %v4911 = vsel %vm1433, %v4844, 0
      %v4914 = vsel %vm1433, %v4845, 0
      %v4917 = vsel %vm1433, %v4846, 0
      %v4920 = vsel %vm1433, %v4847, 0
      %v4923 = vsel %vm1433, %v4848, 0
      %v4926 = vsel %vm1433, %v4849, 0
      %v4929 = vsel %vm1433, %v4850, 0
      %v4932 = vsel %vm1433, %v4851, 0
      %v4935 = vsel %vm1433, %v4852, 0
      %v4938 = vsel %vm1433, %v4853, 0
      %v4941 = vsel %vm1433, %v4854, 0
      %v4944 = vsel %vm1433, %v4855, 0
      %v4947 = vsel %vm1433, %v4856, 0
      %v4950 = vsel %vm1433, %v4857, 0
      %v4953 = vsel %vm1433, %v4858, 0
      %4955 = vmatprep.subr.mxu0 0.0
      %4956 = vmatpush1.msra.mxu0 %v4081
      %4957 = vmatprep.subr.mxu0 0.0
      %4958 = vmatpush1.msra.mxu0 %v4082
      %4959 = vmatprep.subr.mxu0 0.0
      %4960 = vmatpush1.msra.mxu0 %v4083
      %4961 = vmatprep.subr.mxu0 0.0
      %4962 = vmatpush1.msra.mxu0 %v4084
      %4963 = vmatprep.subr.mxu0 0.0
      %4964 = vmatpush1.msra.mxu0 %v4085
      %4965 = vmatprep.subr.mxu0 0.0
      %4966 = vmatpush1.msra.mxu0 %v4086
      %4967 = vmatprep.subr.mxu0 0.0
      %4968 = vmatpush1.msra.mxu0 %v4087
      %4969 = vmatprep.subr.mxu0 0.0
      %4970 = vmatpush1.msra.mxu0 %v4088
      %4971 = vmatprep.subr.mxu0 0.0
      %4972 = vmatpush1.msra.mxu0 %v4089
      %4973 = vmatprep.subr.mxu0 0.0
      %4974 = vmatpush1.msra.mxu0 0.0
      %4975 = vmatprep.subr.mxu0 0.0
      %4976 = vmatpush1.msra.mxu0 0.0
      %4977 = vmatprep.subr.mxu0 0.0
      %4978 = vmatpush1.msra.mxu0 0.0
      %4979 = vmatprep.subr.mxu0 0.0
      %4980 = vmatpush1.msra.mxu0 0.0
      %4981 = vmatprep.subr.mxu0 0.0
      %4982 = vmatpush1.msra.mxu0 0.0
      %4983 = vmatprep.subr.mxu0 0.0
      %4984 = vmatpush1.msra.mxu0 0.0
      %4985 = vmatprep.subr.mxu0 0.0
      %4986 = vmatpush1.msra.mxu0 0.0
      %4987 = vmatprep.subr.mxu0 0.0
      %4988 = vmatpush1.msra.mxu0 0.0
      %4989 = vmatprep.subr.mxu0 0.0
      %4990 = vmatpush1.msra.mxu0 0.0
      %4991 = vmatprep.subr.mxu0 0.0
      %4992 = vmatpush1.msra.mxu0 0.0
      %4993 = vmatprep.subr.mxu0 0.0
      %4994 = vmatpush1.msra.mxu0 0.0
      %4995 = vmatprep.subr.mxu0 0.0
      %4996 = vmatpush1.msra.mxu0 0.0
      %4997 = vmatprep.subr.mxu0 0.0
      %4998 = vmatpush1.msra.mxu0 0.0
      %4999 = vmatprep.subr.mxu0 0.0
      %5000 = vmatpush1.msra.mxu0 0.0
      %5001 = vmatprep.subr.mxu0 0.0
      %5002 = vmatpush1.msra.mxu0 0.0
      %5003 = vmatprep.subr.mxu0 0.0
      %5004 = vmatpush1.msra.mxu0 0.0
      %5005 = vmatprep.subr.mxu0 0.0
      %5006 = vmatpush1.msra.mxu0 0.0
      %5007 = vmatprep.subr.mxu0 0.0
      %5008 = vmatpush1.msra.mxu0 0.0
      %5009 = vmatprep.subr.mxu0 0.0
      %5010 = vmatpush1.msra.mxu0 0.0
      %5011 = vmatprep.subr.mxu0 0.0
      %5012 = vmatpush1.msra.mxu0 0.0
      %5013 = vmatprep.subr.mxu0 0.0
      %5014 = vmatpush1.msra.mxu0 0.0
      %5015 = vmatprep.subr.mxu0 0.0
      %5016 = vmatpush1.msra.mxu0 0.0
      %5017 = vmatprep.subr.mxu0 0.0
      %5018 = vmatpush1.msra.mxu0 0.0
      %5019 = vmatprep.mubr.f32.mxu0 0.0
      %5020 = vmatmul.mubr.f32.gmra.mrb[0].mxu0 %v4860
      %v5021 = vpop.f32.mrb[0].mxu0
      %v5022 = vadd.f32 %v4095, %v5021
      %v5023 = vpop.f32.mrb[0].mxu0
      %5024 = vmatprep.mubr.f32.mxu0 0.0
      %5025 = vmatmul.mubr.f32.gmra.mrb[0].mxu0 %v4863
      %v5026 = vpop.f32.mrb[0].mxu0
      %v5027 = vadd.f32 %v4095, %v5026
      %v5028 = vpop.f32.mrb[0].mxu0
      %5029 = vmatprep.mubr.f32.mxu0 0.0
      %5030 = vmatmul.mubr.f32.gmra.mrb[0].mxu0 %v4866
      %v5031 = vpop.f32.mrb[0].mxu0
      %v5032 = vadd.f32 %v4095, %v5031
      %v5033 = vpop.f32.mrb[0].mxu0
      %5034 = vmatprep.mubr.f32.mxu0 0.0
      %5035 = vmatmul.mubr.f32.gmra.mrb[0].mxu0 %v4869
      %v5036 = vpop.f32.mrb[0].mxu0
      %v5037 = vadd.f32 %v4095, %v5036
      %v5038 = vpop.f32.mrb[0].mxu0
      %5039 = vmatprep.mubr.f32.mxu0 0.0
      %5040 = vmatmul.mubr.f32.gmra.mrb[0].mxu0 %v4872
      %v5041 = vpop.f32.mrb[0].mxu0
      %v5042 = vadd.f32 %v4095, %v5041
      %v5043 = vpop.f32.mrb[0].mxu0
      %5044 = vmatprep.mubr.f32.mxu0 0.0
      %5045 = vmatmul.mubr.f32.gmra.mrb[0].mxu0 %v4875
      %v5046 = vpop.f32.mrb[0].mxu0
      %v5047 = vadd.f32 %v4095, %v5046
      %v5048 = vpop.f32.mrb[0].mxu0
      %5049 = vmatprep.mubr.f32.mxu0 0.0
      %5050 = vmatmul.mubr.f32.gmra.mrb[0].mxu0 %v4878
      %v5051 = vpop.f32.mrb[0].mxu0
      %v5052 = vadd.f32 %v4095, %v5051
      %v5053 = vpop.f32.mrb[0].mxu0
      %5054 = vmatprep.mubr.f32.mxu0 0.0
      %5055 = vmatmul.mubr.f32.gmra.mrb[0].mxu0 %v4881
      %v5056 = vpop.f32.mrb[0].mxu0
      %v5057 = vadd.f32 %v4095, %v5056
      %v5058 = vpop.f32.mrb[0].mxu0
      %5059 = vmatprep.mubr.f32.mxu0 0.0
      %5060 = vmatmul.mubr.f32.gmra.mrb[0].mxu0 %v4884
      %v5061 = vpop.f32.mrb[0].mxu0
      %v5062 = vadd.f32 %v4095, %v5061
      %v5063 = vpop.f32.mrb[0].mxu0
      %5064 = vmatprep.mubr.f32.mxu0 0.0
      %5065 = vmatmul.mubr.f32.gmra.mrb[0].mxu0 %v4887
      %v5066 = vpop.f32.mrb[0].mxu0
      %v5067 = vadd.f32 %v4095, %v5066
      %v5068 = vpop.f32.mrb[0].mxu0
      %5069 = vmatprep.mubr.f32.mxu0 0.0
      %5070 = vmatmul.mubr.f32.gmra.mrb[0].mxu0 %v4890
      %v5071 = vpop.f32.mrb[0].mxu0
      %v5072 = vadd.f32 %v4095, %v5071
      %v5073 = vpop.f32.mrb[0].mxu0
      %5074 = vmatprep.mubr.f32.mxu0 0.0
      %5075 = vmatmul.mubr.f32.gmra.mrb[0].mxu0 %v4893
      %v5076 = vpop.f32.mrb[0].mxu0
      %v5077 = vadd.f32 %v4095, %v5076
      %v5078 = vpop.f32.mrb[0].mxu0
      %5079 = vmatprep.mubr.f32.mxu0 0.0
      %5080 = vmatmul.mubr.f32.gmra.mrb[0].mxu0 %v4896
      %v5081 = vpop.f32.mrb[0].mxu0
      %v5082 = vadd.f32 %v4095, %v5081
      %v5083 = vpop.f32.mrb[0].mxu0
      %5084 = vmatprep.mubr.f32.mxu0 0.0
      %5085 = vmatmul.mubr.f32.gmra.mrb[0].mxu0 %v4899
      %v5086 = vpop.f32.mrb[0].mxu0
      %v5087 = vadd.f32 %v4095, %v5086
      %v5088 = vpop.f32.mrb[0].mxu0
      %5089 = vmatprep.mubr.f32.mxu0 0.0
      %5090 = vmatmul.mubr.f32.gmra.mrb[0].mxu0 %v4902
      %v5091 = vpop.f32.mrb[0].mxu0
      %v5092 = vadd.f32 %v4095, %v5091
      %v5093 = vpop.f32.mrb[0].mxu0
      %5094 = vmatprep.mubr.f32.mxu0 0.0
      %5095 = vmatmul.mubr.f32.gmra.mrb[0].mxu0 %v4905
      %v5096 = vpop.f32.mrb[0].mxu0
      %v5097 = vadd.f32 %v4095, %v5096
      %v5098 = vpop.f32.mrb[0].mxu0
      %5099 = vmatprep.mubr.f32.mxu0 0.0
      %5100 = vmatmul.mubr.f32.gmra.mrb[0].mxu0 %v4908
      %v5101 = vpop.f32.mrb[0].mxu0
      %v5102 = vadd.f32 %v4095, %v5101
      %v5103 = vpop.f32.mrb[0].mxu0
      %5104 = vmatprep.mubr.f32.mxu0 0.0
      %5105 = vmatmul.mubr.f32.gmra.mrb[0].mxu0 %v4911
      %v5106 = vpop.f32.mrb[0].mxu0
      %v5107 = vadd.f32 %v4095, %v5106
      %v5108 = vpop.f32.mrb[0].mxu0
      %5109 = vmatprep.mubr.f32.mxu0 0.0
      %5110 = vmatmul.mubr.f32.gmra.mrb[0].mxu0 %v4914
      %v5111 = vpop.f32.mrb[0].mxu0
      %v5112 = vadd.f32 %v4095, %v5111
      %v5113 = vpop.f32.mrb[0].mxu0
      %5114 = vmatprep.mubr.f32.mxu0 0.0
      %5115 = vmatmul.mubr.f32.gmra.mrb[0].mxu0 %v4917
      %v5116 = vpop.f32.mrb[0].mxu0
      %v5117 = vadd.f32 %v4095, %v5116
      %v5118 = vpop.f32.mrb[0].mxu0
      %5119 = vmatprep.mubr.f32.mxu0 0.0
      %5120 = vmatmul.mubr.f32.gmra.mrb[0].mxu0 %v4920
      %v5121 = vpop.f32.mrb[0].mxu0
      %v5122 = vadd.f32 %v4095, %v5121
      %v5123 = vpop.f32.mrb[0].mxu0
      %5124 = vmatprep.mubr.f32.mxu0 0.0
      %5125 = vmatmul.mubr.f32.gmra.mrb[0].mxu0 %v4923
      %v5126 = vpop.f32.mrb[0].mxu0
      %v5127 = vadd.f32 %v4095, %v5126
      %v5128 = vpop.f32.mrb[0].mxu0
      %5129 = vmatprep.mubr.f32.mxu0 0.0
      %5130 = vmatmul.mubr.f32.gmra.mrb[0].mxu0 %v4926
      %v5131 = vpop.f32.mrb[0].mxu0
      %v5132 = vadd.f32 %v4095, %v5131
      %v5133 = vpop.f32.mrb[0].mxu0
      %5134 = vmatprep.mubr.f32.mxu0 0.0
      %5135 = vmatmul.mubr.f32.gmra.mrb[0].mxu0 %v4929
      %v5136 = vpop.f32.mrb[0].mxu0
      %v5137 = vadd.f32 %v4095, %v5136
      %v5138 = vpop.f32.mrb[0].mxu0
      %5139 = vmatprep.mubr.f32.mxu0 0.0
      %5140 = vmatmul.mubr.f32.gmra.mrb[0].mxu0 %v4932
      %v5141 = vpop.f32.mrb[0].mxu0
      %v5142 = vadd.f32 %v4095, %v5141
      %v5143 = vpop.f32.mrb[0].mxu0
      %5144 = vmatprep.mubr.f32.mxu0 0.0
      %5145 = vmatmul.mubr.f32.gmra.mrb[0].mxu0 %v4935
      %v5146 = vpop.f32.mrb[0].mxu0
      %v5147 = vadd.f32 %v4095, %v5146
      %v5148 = vpop.f32.mrb[0].mxu0
      %5149 = vmatprep.mubr.f32.mxu0 0.0
      %5150 = vmatmul.mubr.f32.gmra.mrb[0].mxu0 %v4938
      %v5151 = vpop.f32.mrb[0].mxu0
      %v5152 = vadd.f32 %v4095, %v5151
      %v5153 = vpop.f32.mrb[0].mxu0
      %5154 = vmatprep.mubr.f32.mxu0 0.0
      %5155 = vmatmul.mubr.f32.gmra.mrb[0].mxu0 %v4941
      %v5156 = vpop.f32.mrb[0].mxu0
      %v5157 = vadd.f32 %v4095, %v5156
      %v5158 = vpop.f32.mrb[0].mxu0
      %5159 = vmatprep.mubr.f32.mxu0 0.0
      %5160 = vmatmul.mubr.f32.gmra.mrb[0].mxu0 %v4944
      %v5161 = vpop.f32.mrb[0].mxu0
      %v5162 = vadd.f32 %v4095, %v5161
      %v5163 = vpop.f32.mrb[0].mxu0
      %5164 = vmatprep.mubr.f32.mxu0 0.0
      %5165 = vmatmul.mubr.f32.gmra.mrb[0].mxu0 %v4947
      %v5166 = vpop.f32.mrb[0].mxu0
      %v5167 = vadd.f32 %v4095, %v5166
      %v5168 = vpop.f32.mrb[0].mxu0
      %5169 = vmatprep.mubr.f32.mxu0 0.0
      %5170 = vmatmul.mubr.f32.gmra.mrb[0].mxu0 %v4950
      %v5171 = vpop.f32.mrb[0].mxu0
      %v5172 = vadd.f32 %v4095, %v5171
      %v5173 = vpop.f32.mrb[0].mxu0
      %5174 = vmatprep.mubr.f32.mxu0 0.0
      %5175 = vmatmul.mubr.f32.gmra.mrb[0].mxu0 %v4953
      %v5176 = vpop.f32.mrb[0].mxu0
      %v5177 = vadd.f32 %v4095, %v5176
      %v5178 = vpop.f32.mrb[0].mxu0
      %5179 = vdwg.mxu0
      %v5180 = vmax.f32 %v5022, 0.0
      %v5181 = vmax.f32 %v5027, 0.0
      %v5182 = vmax.f32 %v5032, 0.0
      %v5183 = vmax.f32 %v5037, 0.0
      %v5184 = vmax.f32 %v5042, 0.0
      %v5185 = vmax.f32 %v5047, 0.0
      %v5186 = vmax.f32 %v5052, 0.0
      %v5187 = vmax.f32 %v5057, 0.0
      %v5188 = vmax.f32 %v5062, 0.0
      %v5189 = vmax.f32 %v5067, 0.0
      %v5190 = vmax.f32 %v5072, 0.0
      %v5191 = vmax.f32 %v5077, 0.0
      %v5192 = vmax.f32 %v5082, 0.0
      %v5193 = vmax.f32 %v5087, 0.0
      %v5194 = vmax.f32 %v5092, 0.0
      %v5195 = vmax.f32 %v5097, 0.0
      %v5196 = vmax.f32 %v5102, 0.0
      %v5197 = vmax.f32 %v5107, 0.0
      %v5198 = vmax.f32 %v5112, 0.0
      %v5199 = vmax.f32 %v5117, 0.0
      %v5200 = vmax.f32 %v5122, 0.0
      %v5201 = vmax.f32 %v5127, 0.0
      %v5202 = vmax.f32 %v5132, 0.0
      %v5203 = vmax.f32 %v5137, 0.0
      %v5204 = vmax.f32 %v5142, 0.0
      %v5205 = vmax.f32 %v5147, 0.0
      %v5206 = vmax.f32 %v5152, 0.0
      %v5207 = vmax.f32 %v5157, 0.0
      %v5208 = vmax.f32 %v5162, 0.0
      %v5209 = vmax.f32 %v5167, 0.0
      %v5210 = vmax.f32 %v5172, 0.0
      %v5211 = vmax.f32 %v5177, 0.0
      %v5212 = vadd.f32 %v4049, %v5180
      %v5213 = vadd.f32 %v4050, %v5181
      %v5214 = vadd.f32 %v4051, %v5182
      %v5215 = vadd.f32 %v4052, %v5183
      %v5216 = vadd.f32 %v4053, %v5184
      %v5217 = vadd.f32 %v4054, %v5185
      %v5218 = vadd.f32 %v4055, %v5186
      %v5219 = vadd.f32 %v4056, %v5187
      %v5220 = vadd.f32 %v4057, %v5188
      %v5221 = vadd.f32 %v4058, %v5189
      %v5222 = vadd.f32 %v4059, %v5190
      %v5223 = vadd.f32 %v4060, %v5191
      %v5224 = vadd.f32 %v4061, %v5192
      %v5225 = vadd.f32 %v4062, %v5193
      %v5226 = vadd.f32 %v4063, %v5194
      %v5227 = vadd.f32 %v4064, %v5195
      %v5228 = vadd.f32 %v4065, %v5196
      %v5229 = vadd.f32 %v4066, %v5197
      %v5230 = vadd.f32 %v4067, %v5198
      %v5231 = vadd.f32 %v4068, %v5199
      %v5232 = vadd.f32 %v4069, %v5200
      %v5233 = vadd.f32 %v4070, %v5201
      %v5234 = vadd.f32 %v4071, %v5202
      %v5235 = vadd.f32 %v4072, %v5203
      %v5236 = vadd.f32 %v4073, %v5204
      %v5237 = vadd.f32 %v4074, %v5205
      %v5238 = vadd.f32 %v4075, %v5206
      %v5239 = vadd.f32 %v4076, %v5207
      %v5240 = vadd.f32 %v4077, %v5208
      %v5241 = vadd.f32 %v4078, %v5209
      %v5242 = vadd.f32 %v4079, %v5210
      %v5243 = vadd.f32 %v4080, %v5211
      %v5276 = vrot.slane %v5212, 7
      %v5277 = vrot.slane %v5213, 7
      %v5278 = vsel %vm693, %v5276, %v5277
      %v5279 = vrot.slane %v5214, 7
      %v5280 = vrot.slane %v5215, 7
      %v5281 = vsel %vm693, %v5279, %v5280
      %v5282 = vrot.slane %v5216, 7
      %v5283 = vrot.slane %v5217, 7
      %v5284 = vsel %vm693, %v5282, %v5283
      %v5285 = vrot.slane %v5218, 7
      %v5286 = vrot.slane %v5219, 7
      %v5287 = vsel %vm693, %v5285, %v5286
      %v5288 = vrot.slane %v5220, 7
      %v5289 = vrot.slane %v5221, 7
      %v5290 = vsel %vm693, %v5288, %v5289
      %v5291 = vrot.slane %v5222, 7
      %v5292 = vrot.slane %v5223, 7
      %v5293 = vsel %vm693, %v5291, %v5292
      %v5294 = vrot.slane %v5224, 7
      %v5295 = vrot.slane %v5225, 7
      %v5296 = vsel %vm693, %v5294, %v5295
      %v5297 = vrot.slane %v5226, 7
      %v5298 = vrot.slane %v5227, 7
      %v5299 = vsel %vm693, %v5297, %v5298
      %v5300 = vrot.slane %v5228, 7
      %v5301 = vrot.slane %v5229, 7
      %v5302 = vsel %vm693, %v5300, %v5301
      %v5303 = vrot.slane %v5230, 7
      %v5304 = vrot.slane %v5231, 7
      %v5305 = vsel %vm693, %v5303, %v5304
      %v5306 = vrot.slane %v5232, 7
      %v5307 = vrot.slane %v5233, 7
      %v5308 = vsel %vm693, %v5306, %v5307
      %v5309 = vrot.slane %v5234, 7
      %v5310 = vrot.slane %v5235, 7
      %v5311 = vsel %vm693, %v5309, %v5310
      %v5312 = vrot.slane %v5236, 7
      %v5313 = vrot.slane %v5237, 7
      %v5314 = vsel %vm693, %v5312, %v5313
      %v5315 = vrot.slane %v5238, 7
      %v5316 = vrot.slane %v5239, 7
      %v5317 = vsel %vm693, %v5315, %v5316
      %v5318 = vrot.slane %v5240, 7
      %v5319 = vrot.slane %v5241, 7
      %v5320 = vsel %vm693, %v5318, %v5319
      %v5321 = vrot.slane %v5242, 7
      %v5322 = vrot.slane %v5243, 7
      %v5323 = vsel %vm693, %v5321, %v5322
      %v5356 = vsel %vm693, 0.0, %v5276
      %v5357 = vsel %vm693, 0.0, %v5279
      %v5358 = vsel %vm693, 0.0, %v5282
      %v5359 = vsel %vm693, 0.0, %v5285
      %v5360 = vsel %vm693, 0.0, %v5288
      %v5361 = vsel %vm693, 0.0, %v5291
      %v5362 = vsel %vm693, 0.0, %v5294
      %v5363 = vsel %vm693, 0.0, %v5297
      %v5364 = vsel %vm693, 0.0, %v5300
      %v5365 = vsel %vm693, 0.0, %v5303
      %v5366 = vsel %vm693, 0.0, %v5306
      %v5367 = vsel %vm693, 0.0, %v5309
      %v5368 = vsel %vm693, 0.0, %v5312
      %v5369 = vsel %vm693, 0.0, %v5315
      %v5370 = vsel %vm693, 0.0, %v5318
      %v5371 = vsel %vm693, 0.0, %v5321
      %v5372 = vrot.slane %v5212, 1
      %v5373 = vrot.slane %v5213, 1
      %v5374 = vsel %vm790, %v5372, %v5373
      %v5375 = vrot.slane %v5214, 1
      %v5376 = vrot.slane %v5215, 1
      %v5377 = vsel %vm790, %v5375, %v5376
      %v5378 = vrot.slane %v5216, 1
      %v5379 = vrot.slane %v5217, 1
      %v5380 = vsel %vm790, %v5378, %v5379
      %v5381 = vrot.slane %v5218, 1
      %v5382 = vrot.slane %v5219, 1
      %v5383 = vsel %vm790, %v5381, %v5382
      %v5384 = vrot.slane %v5220, 1
      %v5385 = vrot.slane %v5221, 1
      %v5386 = vsel %vm790, %v5384, %v5385
      %v5387 = vrot.slane %v5222, 1
      %v5388 = vrot.slane %v5223, 1
      %v5389 = vsel %vm790, %v5387, %v5388
      %v5390 = vrot.slane %v5224, 1
      %v5391 = vrot.slane %v5225, 1
      %v5392 = vsel %vm790, %v5390, %v5391
      %v5393 = vrot.slane %v5226, 1
      %v5394 = vrot.slane %v5227, 1
      %v5395 = vsel %vm790, %v5393, %v5394
      %v5396 = vrot.slane %v5228, 1
      %v5397 = vrot.slane %v5229, 1
      %v5398 = vsel %vm790, %v5396, %v5397
      %v5399 = vrot.slane %v5230, 1
      %v5400 = vrot.slane %v5231, 1
      %v5401 = vsel %vm790, %v5399, %v5400
      %v5402 = vrot.slane %v5232, 1
      %v5403 = vrot.slane %v5233, 1
      %v5404 = vsel %vm790, %v5402, %v5403
      %v5405 = vrot.slane %v5234, 1
      %v5406 = vrot.slane %v5235, 1
      %v5407 = vsel %vm790, %v5405, %v5406
      %v5408 = vrot.slane %v5236, 1
      %v5409 = vrot.slane %v5237, 1
      %v5410 = vsel %vm790, %v5408, %v5409
      %v5411 = vrot.slane %v5238, 1
      %v5412 = vrot.slane %v5239, 1
      %v5413 = vsel %vm790, %v5411, %v5412
      %v5414 = vrot.slane %v5240, 1
      %v5415 = vrot.slane %v5241, 1
      %v5416 = vsel %vm790, %v5414, %v5415
      %v5417 = vrot.slane %v5242, 1
      %v5418 = vrot.slane %v5243, 1
      %v5419 = vsel %vm790, %v5417, %v5418
      %v5436 = vsel %vm790, %v5373, 0.0
      %v5437 = vsel %vm790, %v5376, 0.0
      %v5438 = vsel %vm790, %v5379, 0.0
      %v5439 = vsel %vm790, %v5382, 0.0
      %v5440 = vsel %vm790, %v5385, 0.0
      %v5441 = vsel %vm790, %v5388, 0.0
      %v5442 = vsel %vm790, %v5391, 0.0
      %v5443 = vsel %vm790, %v5394, 0.0
      %v5444 = vsel %vm790, %v5397, 0.0
      %v5445 = vsel %vm790, %v5400, 0.0
      %v5446 = vsel %vm790, %v5403, 0.0
      %v5447 = vsel %vm790, %v5406, 0.0
      %v5448 = vsel %vm790, %v5409, 0.0
      %v5449 = vsel %vm790, %v5412, 0.0
      %v5450 = vsel %vm790, %v5415, 0.0
      %v5451 = vsel %vm790, %v5418, 0.0
      %5452 = vrot.lane.b32.xlu0 %v5212, 8
      %v5453 = vpop.permute.xlu0 %5452
      %5454 = vrot.lane.b32.xlu0 %v5213, 8
      %v5455 = vpop.permute.xlu0 %5454
      %5456 = vrot.lane.b32.xlu0 %v5214, 8
      %v5457 = vpop.permute.xlu0 %5456
      %5458 = vrot.lane.b32.xlu0 %v5215, 8
      %v5459 = vpop.permute.xlu0 %5458
      %5460 = vrot.lane.b32.xlu0 %v5216, 8
      %v5461 = vpop.permute.xlu0 %5460
      %5462 = vrot.lane.b32.xlu0 %v5217, 8
      %v5463 = vpop.permute.xlu0 %5462
      %5464 = vrot.lane.b32.xlu0 %v5218, 8
      %v5465 = vpop.permute.xlu0 %5464
      %5466 = vrot.lane.b32.xlu0 %v5219, 8
      %v5467 = vpop.permute.xlu0 %5466
      %5468 = vrot.lane.b32.xlu0 %v5220, 8
      %v5469 = vpop.permute.xlu0 %5468
      %5470 = vrot.lane.b32.xlu0 %v5221, 8
      %v5471 = vpop.permute.xlu0 %5470
      %5472 = vrot.lane.b32.xlu0 %v5222, 8
      %v5473 = vpop.permute.xlu0 %5472
      %5474 = vrot.lane.b32.xlu0 %v5223, 8
      %v5475 = vpop.permute.xlu0 %5474
      %5476 = vrot.lane.b32.xlu0 %v5224, 8
      %v5477 = vpop.permute.xlu0 %5476
      %5478 = vrot.lane.b32.xlu0 %v5225, 8
      %v5479 = vpop.permute.xlu0 %5478
      %5480 = vrot.lane.b32.xlu0 %v5226, 8
      %v5481 = vpop.permute.xlu0 %5480
      %5482 = vrot.lane.b32.xlu0 %v5227, 8
      %v5483 = vpop.permute.xlu0 %5482
      %5484 = vrot.lane.b32.xlu0 %v5228, 8
      %v5485 = vpop.permute.xlu0 %5484
      %5486 = vrot.lane.b32.xlu0 %v5229, 8
      %v5487 = vpop.permute.xlu0 %5486
      %5488 = vrot.lane.b32.xlu0 %v5230, 8
      %v5489 = vpop.permute.xlu0 %5488
      %5490 = vrot.lane.b32.xlu0 %v5231, 8
      %v5491 = vpop.permute.xlu0 %5490
      %5492 = vrot.lane.b32.xlu0 %v5232, 8
      %v5493 = vpop.permute.xlu0 %5492
      %5494 = vrot.lane.b32.xlu0 %v5233, 8
      %v5495 = vpop.permute.xlu0 %5494
      %5496 = vrot.lane.b32.xlu0 %v5234, 8
      %v5497 = vpop.permute.xlu0 %5496
      %5498 = vrot.lane.b32.xlu0 %v5235, 8
      %v5499 = vpop.permute.xlu0 %5498
      %5500 = vrot.lane.b32.xlu0 %v5236, 8
      %v5501 = vpop.permute.xlu0 %5500
      %5502 = vrot.lane.b32.xlu0 %v5237, 8
      %v5503 = vpop.permute.xlu0 %5502
      %5504 = vrot.lane.b32.xlu0 %v5238, 8
      %v5505 = vpop.permute.xlu0 %5504
      %5506 = vrot.lane.b32.xlu0 %v5239, 8
      %v5507 = vpop.permute.xlu0 %5506
      %5508 = vrot.lane.b32.xlu0 %v5240, 8
      %v5509 = vpop.permute.xlu0 %5508
      %5510 = vrot.lane.b32.xlu0 %v5241, 8
      %v5511 = vpop.permute.xlu0 %5510
      %5512 = vrot.lane.b32.xlu0 %v5242, 8
      %v5513 = vpop.permute.xlu0 %5512
      %5514 = vrot.lane.b32.xlu0 %v5243, 8
      %v5515 = vpop.permute.xlu0 %5514
      %5564 = vrot.lane.b32.xlu0 %v5374, 16
      %v5565 = vpop.permute.xlu0 %5564
      %5566 = vrot.lane.b32.xlu0 %v5436, 16
      %v5567 = vpop.permute.xlu0 %5566
      %5568 = vrot.lane.b32.xlu0 %v5377, 16
      %v5569 = vpop.permute.xlu0 %5568
      %5570 = vrot.lane.b32.xlu0 %v5437, 16
      %v5571 = vpop.permute.xlu0 %5570
      %5572 = vrot.lane.b32.xlu0 %v5380, 16
      %v5573 = vpop.permute.xlu0 %5572
      %5574 = vrot.lane.b32.xlu0 %v5438, 16
      %v5575 = vpop.permute.xlu0 %5574
      %5576 = vrot.lane.b32.xlu0 %v5383, 16
      %v5577 = vpop.permute.xlu0 %5576
      %5578 = vrot.lane.b32.xlu0 %v5439, 16
      %v5579 = vpop.permute.xlu0 %5578
      %5580 = vrot.lane.b32.xlu0 %v5386, 16
      %v5581 = vpop.permute.xlu0 %5580
      %5582 = vrot.lane.b32.xlu0 %v5440, 16
      %v5583 = vpop.permute.xlu0 %5582
      %5584 = vrot.lane.b32.xlu0 %v5389, 16
      %v5585 = vpop.permute.xlu0 %5584
      %5586 = vrot.lane.b32.xlu0 %v5441, 16
      %v5587 = vpop.permute.xlu0 %5586
      %5588 = vrot.lane.b32.xlu0 %v5392, 16
      %v5589 = vpop.permute.xlu0 %5588
      %5590 = vrot.lane.b32.xlu0 %v5442, 16
      %v5591 = vpop.permute.xlu0 %5590
      %5592 = vrot.lane.b32.xlu0 %v5395, 16
      %v5593 = vpop.permute.xlu0 %5592
      %5594 = vrot.lane.b32.xlu0 %v5443, 16
      %v5595 = vpop.permute.xlu0 %5594
      %5596 = vrot.lane.b32.xlu0 %v5398, 16
      %v5597 = vpop.permute.xlu0 %5596
      %5598 = vrot.lane.b32.xlu0 %v5444, 16
      %v5599 = vpop.permute.xlu0 %5598
      %5600 = vrot.lane.b32.xlu0 %v5401, 16
      %v5601 = vpop.permute.xlu0 %5600
      %5602 = vrot.lane.b32.xlu0 %v5445, 16
      %v5603 = vpop.permute.xlu0 %5602
      %5604 = vrot.lane.b32.xlu0 %v5404, 16
      %v5605 = vpop.permute.xlu0 %5604
      %5606 = vrot.lane.b32.xlu0 %v5446, 16
      %v5607 = vpop.permute.xlu0 %5606
      %5608 = vrot.lane.b32.xlu0 %v5407, 16
      %v5609 = vpop.permute.xlu0 %5608
      %5610 = vrot.lane.b32.xlu0 %v5447, 16
      %v5611 = vpop.permute.xlu0 %5610
      %5612 = vrot.lane.b32.xlu0 %v5410, 16
      %v5613 = vpop.permute.xlu0 %5612
      %5614 = vrot.lane.b32.xlu0 %v5448, 16
      %v5615 = vpop.permute.xlu0 %5614
      %5616 = vrot.lane.b32.xlu0 %v5413, 16
      %v5617 = vpop.permute.xlu0 %5616
      %5618 = vrot.lane.b32.xlu0 %v5449, 16
      %v5619 = vpop.permute.xlu0 %5618
      %5620 = vrot.lane.b32.xlu0 %v5416, 16
      %v5621 = vpop.permute.xlu0 %5620
      %5622 = vrot.lane.b32.xlu0 %v5450, 16
      %v5623 = vpop.permute.xlu0 %5622
      %5624 = vrot.lane.b32.xlu0 %v5419, 16
      %v5625 = vpop.permute.xlu0 %5624
      %5626 = vrot.lane.b32.xlu0 %v5451, 16
      %v5627 = vpop.permute.xlu0 %5626
      %v5660 = vsel %vm1079, %v5356, %v5453
      %v5661 = vsel %vm1079, %v5278, %v5455
      %v5662 = vsel %vm1079, %v5357, %v5457
      %v5663 = vsel %vm1079, %v5281, %v5459
      %v5664 = vsel %vm1079, %v5358, %v5461
      %v5665 = vsel %vm1079, %v5284, %v5463
      %v5666 = vsel %vm1079, %v5359, %v5465
      %v5667 = vsel %vm1079, %v5287, %v5467
      %v5668 = vsel %vm1079, %v5360, %v5469
      %v5669 = vsel %vm1079, %v5290, %v5471
      %v5670 = vsel %vm1079, %v5361, %v5473
      %v5671 = vsel %vm1079, %v5293, %v5475
      %v5672 = vsel %vm1079, %v5362, %v5477
      %v5673 = vsel %vm1079, %v5296, %v5479
      %v5674 = vsel %vm1079, %v5363, %v5481
      %v5675 = vsel %vm1079, %v5299, %v5483
      %v5676 = vsel %vm1079, %v5364, %v5485
      %v5677 = vsel %vm1079, %v5302, %v5487
      %v5678 = vsel %vm1079, %v5365, %v5489
      %v5679 = vsel %vm1079, %v5305, %v5491
      %v5680 = vsel %vm1079, %v5366, %v5493
      %v5681 = vsel %vm1079, %v5308, %v5495
      %v5682 = vsel %vm1079, %v5367, %v5497
      %v5683 = vsel %vm1079, %v5311, %v5499
      %v5684 = vsel %vm1079, %v5368, %v5501
      %v5685 = vsel %vm1079, %v5314, %v5503
      %v5686 = vsel %vm1079, %v5369, %v5505
      %v5687 = vsel %vm1079, %v5317, %v5507
      %v5688 = vsel %vm1079, %v5370, %v5509
      %v5689 = vsel %vm1079, %v5320, %v5511
      %v5690 = vsel %vm1079, %v5371, %v5513
      %v5691 = vsel %vm1079, %v5323, %v5515
      %v5692 = vsel %vm1112, %v5660, %v5565
      %v5693 = vsel %vm1112, %v5661, %v5567
      %v5694 = vsel %vm1112, %v5662, %v5569
      %v5695 = vsel %vm1112, %v5663, %v5571
      %v5696 = vsel %vm1112, %v5664, %v5573
      %v5697 = vsel %vm1112, %v5665, %v5575
      %v5698 = vsel %vm1112, %v5666, %v5577
      %v5699 = vsel %vm1112, %v5667, %v5579
      %v5700 = vsel %vm1112, %v5668, %v5581
      %v5701 = vsel %vm1112, %v5669, %v5583
      %v5702 = vsel %vm1112, %v5670, %v5585
      %v5703 = vsel %vm1112, %v5671, %v5587
      %v5704 = vsel %vm1112, %v5672, %v5589
      %v5705 = vsel %vm1112, %v5673, %v5591
      %v5706 = vsel %vm1112, %v5674, %v5593
      %v5707 = vsel %vm1112, %v5675, %v5595
      %v5708 = vsel %vm1112, %v5676, %v5597
      %v5709 = vsel %vm1112, %v5677, %v5599
      %v5710 = vsel %vm1112, %v5678, %v5601
      %v5711 = vsel %vm1112, %v5679, %v5603
      %v5712 = vsel %vm1112, %v5680, %v5605
      %v5713 = vsel %vm1112, %v5681, %v5607
      %v5714 = vsel %vm1112, %v5682, %v5609
      %v5715 = vsel %vm1112, %v5683, %v5611
      %v5716 = vsel %vm1112, %v5684, %v5613
      %v5717 = vsel %vm1112, %v5685, %v5615
      %v5718 = vsel %vm1112, %v5686, %v5617
      %v5719 = vsel %vm1112, %v5687, %v5619
      %v5720 = vsel %vm1112, %v5688, %v5621
      %v5721 = vsel %vm1112, %v5689, %v5623
      %v5722 = vsel %vm1112, %v5690, %v5625
      %v5723 = vsel %vm1112, %v5691, %v5627
      %5756 = vrot.lane.b32.xlu0 %v5692, 24
      %v5757 = vpop.permute.xlu0 %5756
      %5758 = vrot.lane.b32.xlu0 %v5693, 24
      %v5759 = vpop.permute.xlu0 %5758
      %5760 = vrot.lane.b32.xlu0 %v5694, 24
      %v5761 = vpop.permute.xlu0 %5760
      %5762 = vrot.lane.b32.xlu0 %v5695, 24
      %v5763 = vpop.permute.xlu0 %5762
      %5764 = vrot.lane.b32.xlu0 %v5696, 24
      %v5765 = vpop.permute.xlu0 %5764
      %5766 = vrot.lane.b32.xlu0 %v5697, 24
      %v5767 = vpop.permute.xlu0 %5766
      %5768 = vrot.lane.b32.xlu0 %v5698, 24
      %v5769 = vpop.permute.xlu0 %5768
      %5770 = vrot.lane.b32.xlu0 %v5699, 24
      %v5771 = vpop.permute.xlu0 %5770
      %5772 = vrot.lane.b32.xlu0 %v5700, 24
      %v5773 = vpop.permute.xlu0 %5772
      %5774 = vrot.lane.b32.xlu0 %v5701, 24
      %v5775 = vpop.permute.xlu0 %5774
      %5776 = vrot.lane.b32.xlu0 %v5702, 24
      %v5777 = vpop.permute.xlu0 %5776
      %5778 = vrot.lane.b32.xlu0 %v5703, 24
      %v5779 = vpop.permute.xlu0 %5778
      %5780 = vrot.lane.b32.xlu0 %v5704, 24
      %v5781 = vpop.permute.xlu0 %5780
      %5782 = vrot.lane.b32.xlu0 %v5705, 24
      %v5783 = vpop.permute.xlu0 %5782
      %5784 = vrot.lane.b32.xlu0 %v5706, 24
      %v5785 = vpop.permute.xlu0 %5784
      %5786 = vrot.lane.b32.xlu0 %v5707, 24
      %v5787 = vpop.permute.xlu0 %5786
      %5788 = vrot.lane.b32.xlu0 %v5708, 24
      %v5789 = vpop.permute.xlu0 %5788
      %5790 = vrot.lane.b32.xlu0 %v5709, 24
      %v5791 = vpop.permute.xlu0 %5790
      %5792 = vrot.lane.b32.xlu0 %v5710, 24
      %v5793 = vpop.permute.xlu0 %5792
      %5794 = vrot.lane.b32.xlu0 %v5711, 24
      %v5795 = vpop.permute.xlu0 %5794
      %5796 = vrot.lane.b32.xlu0 %v5712, 24
      %v5797 = vpop.permute.xlu0 %5796
      %5798 = vrot.lane.b32.xlu0 %v5713, 24
      %v5799 = vpop.permute.xlu0 %5798
      %5800 = vrot.lane.b32.xlu0 %v5714, 24
      %v5801 = vpop.permute.xlu0 %5800
      %5802 = vrot.lane.b32.xlu0 %v5715, 24
      %v5803 = vpop.permute.xlu0 %5802
      %5804 = vrot.lane.b32.xlu0 %v5716, 24
      %v5805 = vpop.permute.xlu0 %5804
      %5806 = vrot.lane.b32.xlu0 %v5717, 24
      %v5807 = vpop.permute.xlu0 %5806
      %5808 = vrot.lane.b32.xlu0 %v5718, 24
      %v5809 = vpop.permute.xlu0 %5808
      %5810 = vrot.lane.b32.xlu0 %v5719, 24
      %v5811 = vpop.permute.xlu0 %5810
      %5812 = vrot.lane.b32.xlu0 %v5720, 24
      %v5813 = vpop.permute.xlu0 %5812
      %5814 = vrot.lane.b32.xlu0 %v5721, 24
      %v5815 = vpop.permute.xlu0 %5814
      %5816 = vrot.lane.b32.xlu0 %v5722, 24
      %v5817 = vpop.permute.xlu0 %5816
      %5818 = vrot.lane.b32.xlu0 %v5723, 24
      %v5819 = vpop.permute.xlu0 %5818
      %5852 = vrot.lane.b32.xlu0 %v5694, 48
      %v5853 = vpop.permute.xlu0 %5852
      %5854 = vrot.lane.b32.xlu0 %v5695, 48
      %v5855 = vpop.permute.xlu0 %5854
      %5856 = vrot.lane.b32.xlu0 %v5696, 48
      %v5857 = vpop.permute.xlu0 %5856
      %5858 = vrot.lane.b32.xlu0 %v5697, 48
      %v5859 = vpop.permute.xlu0 %5858
      %5860 = vrot.lane.b32.xlu0 %v5698, 48
      %v5861 = vpop.permute.xlu0 %5860
      %5862 = vrot.lane.b32.xlu0 %v5699, 48
      %v5863 = vpop.permute.xlu0 %5862
      %5864 = vrot.lane.b32.xlu0 %v5700, 48
      %v5865 = vpop.permute.xlu0 %5864
      %5866 = vrot.lane.b32.xlu0 %v5701, 48
      %v5867 = vpop.permute.xlu0 %5866
      %5868 = vrot.lane.b32.xlu0 %v5702, 48
      %v5869 = vpop.permute.xlu0 %5868
      %5870 = vrot.lane.b32.xlu0 %v5703, 48
      %v5871 = vpop.permute.xlu0 %5870
      %5872 = vrot.lane.b32.xlu0 %v5704, 48
      %v5873 = vpop.permute.xlu0 %5872
      %5874 = vrot.lane.b32.xlu0 %v5705, 48
      %v5875 = vpop.permute.xlu0 %5874
      %5876 = vrot.lane.b32.xlu0 %v5706, 48
      %v5877 = vpop.permute.xlu0 %5876
      %5878 = vrot.lane.b32.xlu0 %v5707, 48
      %v5879 = vpop.permute.xlu0 %5878
      %5880 = vrot.lane.b32.xlu0 %v5708, 48
      %v5881 = vpop.permute.xlu0 %5880
      %5882 = vrot.lane.b32.xlu0 %v5709, 48
      %v5883 = vpop.permute.xlu0 %5882
      %5884 = vrot.lane.b32.xlu0 %v5710, 48
      %v5885 = vpop.permute.xlu0 %5884
      %5886 = vrot.lane.b32.xlu0 %v5711, 48
      %v5887 = vpop.permute.xlu0 %5886
      %5888 = vrot.lane.b32.xlu0 %v5712, 48
      %v5889 = vpop.permute.xlu0 %5888
      %5890 = vrot.lane.b32.xlu0 %v5713, 48
      %v5891 = vpop.permute.xlu0 %5890
      %5892 = vrot.lane.b32.xlu0 %v5714, 48
      %v5893 = vpop.permute.xlu0 %5892
      %5894 = vrot.lane.b32.xlu0 %v5715, 48
      %v5895 = vpop.permute.xlu0 %5894
      %5896 = vrot.lane.b32.xlu0 %v5716, 48
      %v5897 = vpop.permute.xlu0 %5896
      %5898 = vrot.lane.b32.xlu0 %v5717, 48
      %v5899 = vpop.permute.xlu0 %5898
      %5900 = vrot.lane.b32.xlu0 %v5718, 48
      %v5901 = vpop.permute.xlu0 %5900
      %5902 = vrot.lane.b32.xlu0 %v5719, 48
      %v5903 = vpop.permute.xlu0 %5902
      %5904 = vrot.lane.b32.xlu0 %v5720, 48
      %v5905 = vpop.permute.xlu0 %5904
      %5906 = vrot.lane.b32.xlu0 %v5721, 48
      %v5907 = vpop.permute.xlu0 %5906
      %5908 = vrot.lane.b32.xlu0 %v5722, 48
      %v5909 = vpop.permute.xlu0 %5908
      %5910 = vrot.lane.b32.xlu0 %v5723, 48
      %v5911 = vpop.permute.xlu0 %5910
      %v5942 = vsel %vm1367, 0.0, %v5757
      %v5943 = vsel %vm1367, 0.0, %v5759
      %v5944 = vsel %vm1367, %v5692, %v5761
      %v5945 = vsel %vm1367, %v5693, %v5763
      %v5946 = vsel %vm1367, %v5694, %v5765
      %v5947 = vsel %vm1367, %v5695, %v5767
      %v5948 = vsel %vm1367, %v5696, %v5769
      %v5949 = vsel %vm1367, %v5697, %v5771
      %v5950 = vsel %vm1367, %v5698, %v5773
      %v5951 = vsel %vm1367, %v5699, %v5775
      %v5952 = vsel %vm1367, %v5700, %v5777
      %v5953 = vsel %vm1367, %v5701, %v5779
      %v5954 = vsel %vm1367, %v5702, %v5781
      %v5955 = vsel %vm1367, %v5703, %v5783
      %v5956 = vsel %vm1367, %v5704, %v5785
      %v5957 = vsel %vm1367, %v5705, %v5787
      %v5958 = vsel %vm1367, %v5706, %v5789
      %v5959 = vsel %vm1367, %v5707, %v5791
      %v5960 = vsel %vm1367, %v5708, %v5793
      %v5961 = vsel %vm1367, %v5709, %v5795
      %v5962 = vsel %vm1367, %v5710, %v5797
      %v5963 = vsel %vm1367, %v5711, %v5799
      %v5964 = vsel %vm1367, %v5712, %v5801
      %v5965 = vsel %vm1367, %v5713, %v5803
      %v5966 = vsel %vm1367, %v5714, %v5805
      %v5967 = vsel %vm1367, %v5715, %v5807
      %v5968 = vsel %vm1367, %v5716, %v5809
      %v5969 = vsel %vm1367, %v5717, %v5811
      %v5970 = vsel %vm1367, %v5718, %v5813
      %v5971 = vsel %vm1367, %v5719, %v5815
      %v5972 = vsel %vm1367, %v5720, %v5817
      %v5973 = vsel %vm1367, %v5721, %v5819
      %v5974 = vsel %vm1400, %v5942, %v5853
      %v5975 = vsel %vm1400, %v5943, %v5855
      %v5976 = vsel %vm1400, %v5944, %v5857
      %v5977 = vsel %vm1400, %v5945, %v5859
      %v5978 = vsel %vm1400, %v5946, %v5861
      %v5979 = vsel %vm1400, %v5947, %v5863
      %v5980 = vsel %vm1400, %v5948, %v5865
      %v5981 = vsel %vm1400, %v5949, %v5867
      %v5982 = vsel %vm1400, %v5950, %v5869
      %v5983 = vsel %vm1400, %v5951, %v5871
      %v5984 = vsel %vm1400, %v5952, %v5873
      %v5985 = vsel %vm1400, %v5953, %v5875
      %v5986 = vsel %vm1400, %v5954, %v5877
      %v5987 = vsel %vm1400, %v5955, %v5879
      %v5988 = vsel %vm1400, %v5956, %v5881
      %v5989 = vsel %vm1400, %v5957, %v5883
      %v5990 = vsel %vm1400, %v5958, %v5885
      %v5991 = vsel %vm1400, %v5959, %v5887
      %v5992 = vsel %vm1400, %v5960, %v5889
      %v5993 = vsel %vm1400, %v5961, %v5891
      %v5994 = vsel %vm1400, %v5962, %v5893
      %v5995 = vsel %vm1400, %v5963, %v5895
      %v5996 = vsel %vm1400, %v5964, %v5897
      %v5997 = vsel %vm1400, %v5965, %v5899
      %v5998 = vsel %vm1400, %v5966, %v5901
      %v5999 = vsel %vm1400, %v5967, %v5903
      %v6000 = vsel %vm1400, %v5968, %v5905
      %v6001 = vsel %vm1400, %v5969, %v5907
      %v6002 = vsel %vm1400, %v5970, %v5909
      %v6003 = vsel %vm1400, %v5971, %v5911
      %v6004 = vsel %vm1400, %v5972, %v1335
      %v6005 = vsel %vm1400, %v5973, %v1335
      %v6007 = vsel %vm1433, %v5974, 0
      %v6010 = vsel %vm1433, %v5975, 0
      %v6013 = vsel %vm1433, %v5976, 0
      %v6016 = vsel %vm1433, %v5977, 0
      %v6019 = vsel %vm1433, %v5978, 0
      %v6022 = vsel %vm1433, %v5979, 0
      %v6025 = vsel %vm1433, %v5980, 0
      %v6028 = vsel %vm1433, %v5981, 0
      %v6031 = vsel %vm1433, %v5982, 0
      %v6034 = vsel %vm1433, %v5983, 0
      %v6037 = vsel %vm1433, %v5984, 0
      %v6040 = vsel %vm1433, %v5985, 0
      %v6043 = vsel %vm1433, %v5986, 0
      %v6046 = vsel %vm1433, %v5987, 0
      %v6049 = vsel %vm1433, %v5988, 0
      %v6052 = vsel %vm1433, %v5989, 0
      %v6055 = vsel %vm1433, %v5990, 0
      %v6058 = vsel %vm1433, %v5991, 0
      %v6061 = vsel %vm1433, %v5992, 0
      %v6064 = vsel %vm1433, %v5993, 0
      %v6067 = vsel %vm1433, %v5994, 0
      %v6070 = vsel %vm1433, %v5995, 0
      %v6073 = vsel %vm1433, %v5996, 0
      %v6076 = vsel %vm1433, %v5997, 0
      %v6079 = vsel %vm1433, %v5998, 0
      %v6082 = vsel %vm1433, %v5999, 0
      %v6085 = vsel %vm1433, %v6000, 0
      %v6088 = vsel %vm1433, %v6001, 0
      %v6091 = vsel %vm1433, %v6002, 0
      %v6094 = vsel %vm1433, %v6003, 0
      %v6097 = vsel %vm1433, %v6004, 0
      %v6100 = vsel %vm1433, %v6005, 0
      %6102 = vmatprep.subr.mxu0 0.0
      %6103 = vmatpush1.msra.mxu0 %v4081
      %6104 = vmatprep.subr.mxu0 0.0
      %6105 = vmatpush1.msra.mxu0 %v4082
      %6106 = vmatprep.subr.mxu0 0.0
      %6107 = vmatpush1.msra.mxu0 %v4083
      %6108 = vmatprep.subr.mxu0 0.0
      %6109 = vmatpush1.msra.mxu0 %v4084
      %6110 = vmatprep.subr.mxu0 0.0
      %6111 = vmatpush1.msra.mxu0 %v4085
      %6112 = vmatprep.subr.mxu0 0.0
      %6113 = vmatpush1.msra.mxu0 %v4086
      %6114 = vmatprep.subr.mxu0 0.0
      %6115 = vmatpush1.msra.mxu0 %v4087
      %6116 = vmatprep.subr.mxu0 0.0
      %6117 = vmatpush1.msra.mxu0 %v4088
      %6118 = vmatprep.subr.mxu0 0.0
      %6119 = vmatpush1.msra.mxu0 %v4089
      %6120 = vmatprep.subr.mxu0 0.0
      %6121 = vmatpush1.msra.mxu0 0.0
      %6122 = vmatprep.subr.mxu0 0.0
      %6123 = vmatpush1.msra.mxu0 0.0
      %6124 = vmatprep.subr.mxu0 0.0
      %6125 = vmatpush1.msra.mxu0 0.0
      %6126 = vmatprep.subr.mxu0 0.0
      %6127 = vmatpush1.msra.mxu0 0.0
      %6128 = vmatprep.subr.mxu0 0.0
      %6129 = vmatpush1.msra.mxu0 0.0
      %6130 = vmatprep.subr.mxu0 0.0
      %6131 = vmatpush1.msra.mxu0 0.0
      %6132 = vmatprep.subr.mxu0 0.0
      %6133 = vmatpush1.msra.mxu0 0.0
      %6134 = vmatprep.subr.mxu0 0.0
      %6135 = vmatpush1.msra.mxu0 0.0
      %6136 = vmatprep.subr.mxu0 0.0
      %6137 = vmatpush1.msra.mxu0 0.0
      %6138 = vmatprep.subr.mxu0 0.0
      %6139 = vmatpush1.msra.mxu0 0.0
      %6140 = vmatprep.subr.mxu0 0.0
      %6141 = vmatpush1.msra.mxu0 0.0
      %6142 = vmatprep.subr.mxu0 0.0
      %6143 = vmatpush1.msra.mxu0 0.0
      %6144 = vmatprep.subr.mxu0 0.0
      %6145 = vmatpush1.msra.mxu0 0.0
      %6146 = vmatprep.subr.mxu0 0.0
      %6147 = vmatpush1.msra.mxu0 0.0
      %6148 = vmatprep.subr.mxu0 0.0
      %6149 = vmatpush1.msra.mxu0 0.0
      %6150 = vmatprep.subr.mxu0 0.0
      %6151 = vmatpush1.msra.mxu0 0.0
      %6152 = vmatprep.subr.mxu0 0.0
      %6153 = vmatpush1.msra.mxu0 0.0
      %6154 = vmatprep.subr.mxu0 0.0
      %6155 = vmatpush1.msra.mxu0 0.0
      %6156 = vmatprep.subr.mxu0 0.0
      %6157 = vmatpush1.msra.mxu0 0.0
      %6158 = vmatprep.subr.mxu0 0.0
      %6159 = vmatpush1.msra.mxu0 0.0
      %6160 = vmatprep.subr.mxu0 0.0
      %6161 = vmatpush1.msra.mxu0 0.0
      %6162 = vmatprep.subr.mxu0 0.0
      %6163 = vmatpush1.msra.mxu0 0.0
      %6164 = vmatprep.subr.mxu0 0.0
      %6165 = vmatpush1.msra.mxu0 0.0
      %6166 = vmatprep.mubr.f32.mxu0 0.0
      %6167 = vmatmul.mubr.f32.gmra.mrb[0].mxu0 %v6007
      %v6168 = vpop.f32.mrb[0].mxu0
      %v6169 = vadd.f32 %v4095, %v6168
      %v6170 = vpop.f32.mrb[0].mxu0
      %6171 = vmatprep.mubr.f32.mxu0 0.0
      %6172 = vmatmul.mubr.f32.gmra.mrb[0].mxu0 %v6010
      %v6173 = vpop.f32.mrb[0].mxu0
      %v6174 = vadd.f32 %v4095, %v6173
      %v6175 = vpop.f32.mrb[0].mxu0
      %6176 = vmatprep.mubr.f32.mxu0 0.0
      %6177 = vmatmul.mubr.f32.gmra.mrb[0].mxu0 %v6013
      %v6178 = vpop.f32.mrb[0].mxu0
      %v6179 = vadd.f32 %v4095, %v6178
      %v6180 = vpop.f32.mrb[0].mxu0
      %6181 = vmatprep.mubr.f32.mxu0 0.0
      %6182 = vmatmul.mubr.f32.gmra.mrb[0].mxu0 %v6016
      %v6183 = vpop.f32.mrb[0].mxu0
      %v6184 = vadd.f32 %v4095, %v6183
      %v6185 = vpop.f32.mrb[0].mxu0
      %6186 = vmatprep.mubr.f32.mxu0 0.0
      %6187 = vmatmul.mubr.f32.gmra.mrb[0].mxu0 %v6019
      %v6188 = vpop.f32.mrb[0].mxu0
      %v6189 = vadd.f32 %v4095, %v6188
      %v6190 = vpop.f32.mrb[0].mxu0
      %6191 = vmatprep.mubr.f32.mxu0 0.0
      %6192 = vmatmul.mubr.f32.gmra.mrb[0].mxu0 %v6022
      %v6193 = vpop.f32.mrb[0].mxu0
      %v6194 = vadd.f32 %v4095, %v6193
      %v6195 = vpop.f32.mrb[0].mxu0
      %6196 = vmatprep.mubr.f32.mxu0 0.0
      %6197 = vmatmul.mubr.f32.gmra.mrb[0].mxu0 %v6025
      %v6198 = vpop.f32.mrb[0].mxu0
      %v6199 = vadd.f32 %v4095, %v6198
      %v6200 = vpop.f32.mrb[0].mxu0
      %6201 = vmatprep.mubr.f32.mxu0 0.0
      %6202 = vmatmul.mubr.f32.gmra.mrb[0].mxu0 %v6028
      %v6203 = vpop.f32.mrb[0].mxu0
      %v6204 = vadd.f32 %v4095, %v6203
      %v6205 = vpop.f32.mrb[0].mxu0
      %6206 = vmatprep.mubr.f32.mxu0 0.0
      %6207 = vmatmul.mubr.f32.gmra.mrb[0].mxu0 %v6031
      %v6208 = vpop.f32.mrb[0].mxu0
      %v6209 = vadd.f32 %v4095, %v6208
      %v6210 = vpop.f32.mrb[0].mxu0
      %6211 = vmatprep.mubr.f32.mxu0 0.0
      %6212 = vmatmul.mubr.f32.gmra.mrb[0].mxu0 %v6034
      %v6213 = vpop.f32.mrb[0].mxu0
      %v6214 = vadd.f32 %v4095, %v6213
      %v6215 = vpop.f32.mrb[0].mxu0
      %6216 = vmatprep.mubr.f32.mxu0 0.0
      %6217 = vmatmul.mubr.f32.gmra.mrb[0].mxu0 %v6037
      %v6218 = vpop.f32.mrb[0].mxu0
      %v6219 = vadd.f32 %v4095, %v6218
      %v6220 = vpop.f32.mrb[0].mxu0
      %6221 = vmatprep.mubr.f32.mxu0 0.0
      %6222 = vmatmul.mubr.f32.gmra.mrb[0].mxu0 %v6040
      %v6223 = vpop.f32.mrb[0].mxu0
      %v6224 = vadd.f32 %v4095, %v6223
      %v6225 = vpop.f32.mrb[0].mxu0
      %6226 = vmatprep.mubr.f32.mxu0 0.0
      %6227 = vmatmul.mubr.f32.gmra.mrb[0].mxu0 %v6043
      %v6228 = vpop.f32.mrb[0].mxu0
      %v6229 = vadd.f32 %v4095, %v6228
      %v6230 = vpop.f32.mrb[0].mxu0
      %6231 = vmatprep.mubr.f32.mxu0 0.0
      %6232 = vmatmul.mubr.f32.gmra.mrb[0].mxu0 %v6046
      %v6233 = vpop.f32.mrb[0].mxu0
      %v6234 = vadd.f32 %v4095, %v6233
      %v6235 = vpop.f32.mrb[0].mxu0
      %6236 = vmatprep.mubr.f32.mxu0 0.0
      %6237 = vmatmul.mubr.f32.gmra.mrb[0].mxu0 %v6049
      %v6238 = vpop.f32.mrb[0].mxu0
      %v6239 = vadd.f32 %v4095, %v6238
      %v6240 = vpop.f32.mrb[0].mxu0
      %6241 = vmatprep.mubr.f32.mxu0 0.0
      %6242 = vmatmul.mubr.f32.gmra.mrb[0].mxu0 %v6052
      %v6243 = vpop.f32.mrb[0].mxu0
      %v6244 = vadd.f32 %v4095, %v6243
      %v6245 = vpop.f32.mrb[0].mxu0
      %6246 = vmatprep.mubr.f32.mxu0 0.0
      %6247 = vmatmul.mubr.f32.gmra.mrb[0].mxu0 %v6055
      %v6248 = vpop.f32.mrb[0].mxu0
      %v6249 = vadd.f32 %v4095, %v6248
      %v6250 = vpop.f32.mrb[0].mxu0
      %6251 = vmatprep.mubr.f32.mxu0 0.0
      %6252 = vmatmul.mubr.f32.gmra.mrb[0].mxu0 %v6058
      %v6253 = vpop.f32.mrb[0].mxu0
      %v6254 = vadd.f32 %v4095, %v6253
      %v6255 = vpop.f32.mrb[0].mxu0
      %6256 = vmatprep.mubr.f32.mxu0 0.0
      %6257 = vmatmul.mubr.f32.gmra.mrb[0].mxu0 %v6061
      %v6258 = vpop.f32.mrb[0].mxu0
      %v6259 = vadd.f32 %v4095, %v6258
      %v6260 = vpop.f32.mrb[0].mxu0
      %6261 = vmatprep.mubr.f32.mxu0 0.0
      %6262 = vmatmul.mubr.f32.gmra.mrb[0].mxu0 %v6064
      %v6263 = vpop.f32.mrb[0].mxu0
      %v6264 = vadd.f32 %v4095, %v6263
      %v6265 = vpop.f32.mrb[0].mxu0
      %6266 = vmatprep.mubr.f32.mxu0 0.0
      %6267 = vmatmul.mubr.f32.gmra.mrb[0].mxu0 %v6067
      %v6268 = vpop.f32.mrb[0].mxu0
      %v6269 = vadd.f32 %v4095, %v6268
      %v6270 = vpop.f32.mrb[0].mxu0
      %6271 = vmatprep.mubr.f32.mxu0 0.0
      %6272 = vmatmul.mubr.f32.gmra.mrb[0].mxu0 %v6070
      %v6273 = vpop.f32.mrb[0].mxu0
      %v6274 = vadd.f32 %v4095, %v6273
      %v6275 = vpop.f32.mrb[0].mxu0
      %6276 = vmatprep.mubr.f32.mxu0 0.0
      %6277 = vmatmul.mubr.f32.gmra.mrb[0].mxu0 %v6073
      %v6278 = vpop.f32.mrb[0].mxu0
      %v6279 = vadd.f32 %v4095, %v6278
      %v6280 = vpop.f32.mrb[0].mxu0
      %6281 = vmatprep.mubr.f32.mxu0 0.0
      %6282 = vmatmul.mubr.f32.gmra.mrb[0].mxu0 %v6076
      %v6283 = vpop.f32.mrb[0].mxu0
      %v6284 = vadd.f32 %v4095, %v6283
      %v6285 = vpop.f32.mrb[0].mxu0
      %6286 = vmatprep.mubr.f32.mxu0 0.0
      %6287 = vmatmul.mubr.f32.gmra.mrb[0].mxu0 %v6079
      %v6288 = vpop.f32.mrb[0].mxu0
      %v6289 = vadd.f32 %v4095, %v6288
      %v6290 = vpop.f32.mrb[0].mxu0
      %6291 = vmatprep.mubr.f32.mxu0 0.0
      %6292 = vmatmul.mubr.f32.gmra.mrb[0].mxu0 %v6082
      %v6293 = vpop.f32.mrb[0].mxu0
      %v6294 = vadd.f32 %v4095, %v6293
      %v6295 = vpop.f32.mrb[0].mxu0
      %6296 = vmatprep.mubr.f32.mxu0 0.0
      %6297 = vmatmul.mubr.f32.gmra.mrb[0].mxu0 %v6085
      %v6298 = vpop.f32.mrb[0].mxu0
      %v6299 = vadd.f32 %v4095, %v6298
      %v6300 = vpop.f32.mrb[0].mxu0
      %6301 = vmatprep.mubr.f32.mxu0 0.0
      %6302 = vmatmul.mubr.f32.gmra.mrb[0].mxu0 %v6088
      %v6303 = vpop.f32.mrb[0].mxu0
      %v6304 = vadd.f32 %v4095, %v6303
      %v6305 = vpop.f32.mrb[0].mxu0
      %6306 = vmatprep.mubr.f32.mxu0 0.0
      %6307 = vmatmul.mubr.f32.gmra.mrb[0].mxu0 %v6091
      %v6308 = vpop.f32.mrb[0].mxu0
      %v6309 = vadd.f32 %v4095, %v6308
      %v6310 = vpop.f32.mrb[0].mxu0
      %6311 = vmatprep.mubr.f32.mxu0 0.0
      %6312 = vmatmul.mubr.f32.gmra.mrb[0].mxu0 %v6094
      %v6313 = vpop.f32.mrb[0].mxu0
      %v6314 = vadd.f32 %v4095, %v6313
      %v6315 = vpop.f32.mrb[0].mxu0
      %6316 = vmatprep.mubr.f32.mxu0 0.0
      %6317 = vmatmul.mubr.f32.gmra.mrb[0].mxu0 %v6097
      %v6318 = vpop.f32.mrb[0].mxu0
      %v6319 = vadd.f32 %v4095, %v6318
      %v6320 = vpop.f32.mrb[0].mxu0
      %6321 = vmatprep.mubr.f32.mxu0 0.0
      %6322 = vmatmul.mubr.f32.gmra.mrb[0].mxu0 %v6100
      %v6323 = vpop.f32.mrb[0].mxu0
      %v6324 = vadd.f32 %v4095, %v6323
      %v6325 = vpop.f32.mrb[0].mxu0
      %6326 = vdwg.mxu0
      %v6327 = vmax.f32 %v6169, 0.0
      %v6328 = vmax.f32 %v6174, 0.0
      %v6329 = vmax.f32 %v6179, 0.0
      %v6330 = vmax.f32 %v6184, 0.0
      %v6331 = vmax.f32 %v6189, 0.0
      %v6332 = vmax.f32 %v6194, 0.0
      %v6333 = vmax.f32 %v6199, 0.0
      %v6334 = vmax.f32 %v6204, 0.0
      %v6335 = vmax.f32 %v6209, 0.0
      %v6336 = vmax.f32 %v6214, 0.0
      %v6337 = vmax.f32 %v6219, 0.0
      %v6338 = vmax.f32 %v6224, 0.0
      %v6339 = vmax.f32 %v6229, 0.0
      %v6340 = vmax.f32 %v6234, 0.0
      %v6341 = vmax.f32 %v6239, 0.0
      %v6342 = vmax.f32 %v6244, 0.0
      %v6343 = vmax.f32 %v6249, 0.0
      %v6344 = vmax.f32 %v6254, 0.0
      %v6345 = vmax.f32 %v6259, 0.0
      %v6346 = vmax.f32 %v6264, 0.0
      %v6347 = vmax.f32 %v6269, 0.0
      %v6348 = vmax.f32 %v6274, 0.0
      %v6349 = vmax.f32 %v6279, 0.0
      %v6350 = vmax.f32 %v6284, 0.0
      %v6351 = vmax.f32 %v6289, 0.0
      %v6352 = vmax.f32 %v6294, 0.0
      %v6353 = vmax.f32 %v6299, 0.0
      %v6354 = vmax.f32 %v6304, 0.0
      %v6355 = vmax.f32 %v6309, 0.0
      %v6356 = vmax.f32 %v6314, 0.0
      %v6357 = vmax.f32 %v6319, 0.0
      %v6358 = vmax.f32 %v6324, 0.0
      %v6359 = vadd.f32 %v4049, %v6327
      %v6360 = vadd.f32 %v4050, %v6328
      %v6361 = vadd.f32 %v4051, %v6329
      %v6362 = vadd.f32 %v4052, %v6330
      %v6363 = vadd.f32 %v4053, %v6331
      %v6364 = vadd.f32 %v4054, %v6332
      %v6365 = vadd.f32 %v4055, %v6333
      %v6366 = vadd.f32 %v4056, %v6334
      %v6367 = vadd.f32 %v4057, %v6335
      %v6368 = vadd.f32 %v4058, %v6336
      %v6369 = vadd.f32 %v4059, %v6337
      %v6370 = vadd.f32 %v4060, %v6338
      %v6371 = vadd.f32 %v4061, %v6339
      %v6372 = vadd.f32 %v4062, %v6340
      %v6373 = vadd.f32 %v4063, %v6341
      %v6374 = vadd.f32 %v4064, %v6342
      %v6375 = vadd.f32 %v4065, %v6343
      %v6376 = vadd.f32 %v4066, %v6344
      %v6377 = vadd.f32 %v4067, %v6345
      %v6378 = vadd.f32 %v4068, %v6346
      %v6379 = vadd.f32 %v4069, %v6347
      %v6380 = vadd.f32 %v4070, %v6348
      %v6381 = vadd.f32 %v4071, %v6349
      %v6382 = vadd.f32 %v4072, %v6350
      %v6383 = vadd.f32 %v4073, %v6351
      %v6384 = vadd.f32 %v4074, %v6352
      %v6385 = vadd.f32 %v4075, %v6353
      %v6386 = vadd.f32 %v4076, %v6354
      %v6387 = vadd.f32 %v4077, %v6355
      %v6388 = vadd.f32 %v4078, %v6356
      %v6389 = vadd.f32 %v4079, %v6357
      %v6390 = vadd.f32 %v4080, %v6358
      %v6423 = vrot.slane %v6359, 7
      %v6424 = vrot.slane %v6360, 7
      %v6425 = vsel %vm693, %v6423, %v6424
      %v6426 = vrot.slane %v6361, 7
      %v6427 = vrot.slane %v6362, 7
      %v6428 = vsel %vm693, %v6426, %v6427
      %v6429 = vrot.slane %v6363, 7
      %v6430 = vrot.slane %v6364, 7
      %v6431 = vsel %vm693, %v6429, %v6430
      %v6432 = vrot.slane %v6365, 7
      %v6433 = vrot.slane %v6366, 7
      %v6434 = vsel %vm693, %v6432, %v6433
      %v6435 = vrot.slane %v6367, 7
      %v6436 = vrot.slane %v6368, 7
      %v6437 = vsel %vm693, %v6435, %v6436
      %v6438 = vrot.slane %v6369, 7
      %v6439 = vrot.slane %v6370, 7
      %v6440 = vsel %vm693, %v6438, %v6439
      %v6441 = vrot.slane %v6371, 7
      %v6442 = vrot.slane %v6372, 7
      %v6443 = vsel %vm693, %v6441, %v6442
      %v6444 = vrot.slane %v6373, 7
      %v6445 = vrot.slane %v6374, 7
      %v6446 = vsel %vm693, %v6444, %v6445
      %v6447 = vrot.slane %v6375, 7
      %v6448 = vrot.slane %v6376, 7
      %v6449 = vsel %vm693, %v6447, %v6448
      %v6450 = vrot.slane %v6377, 7
      %v6451 = vrot.slane %v6378, 7
      %v6452 = vsel %vm693, %v6450, %v6451
      %v6453 = vrot.slane %v6379, 7
      %v6454 = vrot.slane %v6380, 7
      %v6455 = vsel %vm693, %v6453, %v6454
      %v6456 = vrot.slane %v6381, 7
      %v6457 = vrot.slane %v6382, 7
      %v6458 = vsel %vm693, %v6456, %v6457
      %v6459 = vrot.slane %v6383, 7
      %v6460 = vrot.slane %v6384, 7
      %v6461 = vsel %vm693, %v6459, %v6460
      %v6462 = vrot.slane %v6385, 7
      %v6463 = vrot.slane %v6386, 7
      %v6464 = vsel %vm693, %v6462, %v6463
      %v6465 = vrot.slane %v6387, 7
      %v6466 = vrot.slane %v6388, 7
      %v6467 = vsel %vm693, %v6465, %v6466
      %v6468 = vrot.slane %v6389, 7
      %v6469 = vrot.slane %v6390, 7
      %v6470 = vsel %vm693, %v6468, %v6469
      %v6503 = vsel %vm693, 0.0, %v6423
      %v6504 = vsel %vm693, 0.0, %v6426
      %v6505 = vsel %vm693, 0.0, %v6429
      %v6506 = vsel %vm693, 0.0, %v6432
      %v6507 = vsel %vm693, 0.0, %v6435
      %v6508 = vsel %vm693, 0.0, %v6438
      %v6509 = vsel %vm693, 0.0, %v6441
      %v6510 = vsel %vm693, 0.0, %v6444
      %v6511 = vsel %vm693, 0.0, %v6447
      %v6512 = vsel %vm693, 0.0, %v6450
      %v6513 = vsel %vm693, 0.0, %v6453
      %v6514 = vsel %vm693, 0.0, %v6456
      %v6515 = vsel %vm693, 0.0, %v6459
      %v6516 = vsel %vm693, 0.0, %v6462
      %v6517 = vsel %vm693, 0.0, %v6465
      %v6518 = vsel %vm693, 0.0, %v6468
      %v6519 = vrot.slane %v6359, 1
      %v6520 = vrot.slane %v6360, 1
      %v6521 = vsel %vm790, %v6519, %v6520
      %v6522 = vrot.slane %v6361, 1
      %v6523 = vrot.slane %v6362, 1
      %v6524 = vsel %vm790, %v6522, %v6523
      %v6525 = vrot.slane %v6363, 1
      %v6526 = vrot.slane %v6364, 1
      %v6527 = vsel %vm790, %v6525, %v6526
      %v6528 = vrot.slane %v6365, 1
      %v6529 = vrot.slane %v6366, 1
      %v6530 = vsel %vm790, %v6528, %v6529
      %v6531 = vrot.slane %v6367, 1
      %v6532 = vrot.slane %v6368, 1
      %v6533 = vsel %vm790, %v6531, %v6532
      %v6534 = vrot.slane %v6369, 1
      %v6535 = vrot.slane %v6370, 1
      %v6536 = vsel %vm790, %v6534, %v6535
      %v6537 = vrot.slane %v6371, 1
      %v6538 = vrot.slane %v6372, 1
      %v6539 = vsel %vm790, %v6537, %v6538
      %v6540 = vrot.slane %v6373, 1
      %v6541 = vrot.slane %v6374, 1
      %v6542 = vsel %vm790, %v6540, %v6541
      %v6543 = vrot.slane %v6375, 1
      %v6544 = vrot.slane %v6376, 1
      %v6545 = vsel %vm790, %v6543, %v6544
      %v6546 = vrot.slane %v6377, 1
      %v6547 = vrot.slane %v6378, 1
      %v6548 = vsel %vm790, %v6546, %v6547
      %v6549 = vrot.slane %v6379, 1
      %v6550 = vrot.slane %v6380, 1
      %v6551 = vsel %vm790, %v6549, %v6550
      %v6552 = vrot.slane %v6381, 1
      %v6553 = vrot.slane %v6382, 1
      %v6554 = vsel %vm790, %v6552, %v6553
      %v6555 = vrot.slane %v6383, 1
      %v6556 = vrot.slane %v6384, 1
      %v6557 = vsel %vm790, %v6555, %v6556
      %v6558 = vrot.slane %v6385, 1
      %v6559 = vrot.slane %v6386, 1
      %v6560 = vsel %vm790, %v6558, %v6559
      %v6561 = vrot.slane %v6387, 1
      %v6562 = vrot.slane %v6388, 1
      %v6563 = vsel %vm790, %v6561, %v6562
      %v6564 = vrot.slane %v6389, 1
      %v6565 = vrot.slane %v6390, 1
      %v6566 = vsel %vm790, %v6564, %v6565
      %v6583 = vsel %vm790, %v6520, 0.0
      %v6584 = vsel %vm790, %v6523, 0.0
      %v6585 = vsel %vm790, %v6526, 0.0
      %v6586 = vsel %vm790, %v6529, 0.0
      %v6587 = vsel %vm790, %v6532, 0.0
      %v6588 = vsel %vm790, %v6535, 0.0
      %v6589 = vsel %vm790, %v6538, 0.0
      %v6590 = vsel %vm790, %v6541, 0.0
      %v6591 = vsel %vm790, %v6544, 0.0
      %v6592 = vsel %vm790, %v6547, 0.0
      %v6593 = vsel %vm790, %v6550, 0.0
      %v6594 = vsel %vm790, %v6553, 0.0
      %v6595 = vsel %vm790, %v6556, 0.0
      %v6596 = vsel %vm790, %v6559, 0.0
      %v6597 = vsel %vm790, %v6562, 0.0
      %v6598 = vsel %vm790, %v6565, 0.0
      %6599 = vrot.lane.b32.xlu0 %v6359, 8
      %v6600 = vpop.permute.xlu0 %6599
      %6601 = vrot.lane.b32.xlu0 %v6360, 8
      %v6602 = vpop.permute.xlu0 %6601
      %6603 = vrot.lane.b32.xlu0 %v6361, 8
      %v6604 = vpop.permute.xlu0 %6603
      %6605 = vrot.lane.b32.xlu0 %v6362, 8
      %v6606 = vpop.permute.xlu0 %6605
      %6607 = vrot.lane.b32.xlu0 %v6363, 8
      %v6608 = vpop.permute.xlu0 %6607
      %6609 = vrot.lane.b32.xlu0 %v6364, 8
      %v6610 = vpop.permute.xlu0 %6609
      %6611 = vrot.lane.b32.xlu0 %v6365, 8
      %v6612 = vpop.permute.xlu0 %6611
      %6613 = vrot.lane.b32.xlu0 %v6366, 8
      %v6614 = vpop.permute.xlu0 %6613
      %6615 = vrot.lane.b32.xlu0 %v6367, 8
      %v6616 = vpop.permute.xlu0 %6615
      %6617 = vrot.lane.b32.xlu0 %v6368, 8
      %v6618 = vpop.permute.xlu0 %6617
      %6619 = vrot.lane.b32.xlu0 %v6369, 8
      %v6620 = vpop.permute.xlu0 %6619
      %6621 = vrot.lane.b32.xlu0 %v6370, 8
      %v6622 = vpop.permute.xlu0 %6621
      %6623 = vrot.lane.b32.xlu0 %v6371, 8
      %v6624 = vpop.permute.xlu0 %6623
      %6625 = vrot.lane.b32.xlu0 %v6372, 8
      %v6626 = vpop.permute.xlu0 %6625
      %6627 = vrot.lane.b32.xlu0 %v6373, 8
      %v6628 = vpop.permute.xlu0 %6627
      %6629 = vrot.lane.b32.xlu0 %v6374, 8
      %v6630 = vpop.permute.xlu0 %6629
      %6631 = vrot.lane.b32.xlu0 %v6375, 8
      %v6632 = vpop.permute.xlu0 %6631
      %6633 = vrot.lane.b32.xlu0 %v6376, 8
      %v6634 = vpop.permute.xlu0 %6633
      %6635 = vrot.lane.b32.xlu0 %v6377, 8
      %v6636 = vpop.permute.xlu0 %6635
      %6637 = vrot.lane.b32.xlu0 %v6378, 8
      %v6638 = vpop.permute.xlu0 %6637
      %6639 = vrot.lane.b32.xlu0 %v6379, 8
      %v6640 = vpop.permute.xlu0 %6639
      %6641 = vrot.lane.b32.xlu0 %v6380, 8
      %v6642 = vpop.permute.xlu0 %6641
      %6643 = vrot.lane.b32.xlu0 %v6381, 8
      %v6644 = vpop.permute.xlu0 %6643
      %6645 = vrot.lane.b32.xlu0 %v6382, 8
      %v6646 = vpop.permute.xlu0 %6645
      %6647 = vrot.lane.b32.xlu0 %v6383, 8
      %v6648 = vpop.permute.xlu0 %6647
      %6649 = vrot.lane.b32.xlu0 %v6384, 8
      %v6650 = vpop.permute.xlu0 %6649
      %6651 = vrot.lane.b32.xlu0 %v6385, 8
      %v6652 = vpop.permute.xlu0 %6651
      %6653 = vrot.lane.b32.xlu0 %v6386, 8
      %v6654 = vpop.permute.xlu0 %6653
      %6655 = vrot.lane.b32.xlu0 %v6387, 8
      %v6656 = vpop.permute.xlu0 %6655
      %6657 = vrot.lane.b32.xlu0 %v6388, 8
      %v6658 = vpop.permute.xlu0 %6657
      %6659 = vrot.lane.b32.xlu0 %v6389, 8
      %v6660 = vpop.permute.xlu0 %6659
      %6661 = vrot.lane.b32.xlu0 %v6390, 8
      %v6662 = vpop.permute.xlu0 %6661
      %6711 = vrot.lane.b32.xlu0 %v6521, 16
      %v6712 = vpop.permute.xlu0 %6711
      %6713 = vrot.lane.b32.xlu0 %v6583, 16
      %v6714 = vpop.permute.xlu0 %6713
      %6715 = vrot.lane.b32.xlu0 %v6524, 16
      %v6716 = vpop.permute.xlu0 %6715
      %6717 = vrot.lane.b32.xlu0 %v6584, 16
      %v6718 = vpop.permute.xlu0 %6717
      %6719 = vrot.lane.b32.xlu0 %v6527, 16
      %v6720 = vpop.permute.xlu0 %6719
      %6721 = vrot.lane.b32.xlu0 %v6585, 16
      %v6722 = vpop.permute.xlu0 %6721
      %6723 = vrot.lane.b32.xlu0 %v6530, 16
      %v6724 = vpop.permute.xlu0 %6723
      %6725 = vrot.lane.b32.xlu0 %v6586, 16
      %v6726 = vpop.permute.xlu0 %6725
      %6727 = vrot.lane.b32.xlu0 %v6533, 16
      %v6728 = vpop.permute.xlu0 %6727
      %6729 = vrot.lane.b32.xlu0 %v6587, 16
      %v6730 = vpop.permute.xlu0 %6729
      %6731 = vrot.lane.b32.xlu0 %v6536, 16
      %v6732 = vpop.permute.xlu0 %6731
      %6733 = vrot.lane.b32.xlu0 %v6588, 16
      %v6734 = vpop.permute.xlu0 %6733
      %6735 = vrot.lane.b32.xlu0 %v6539, 16
      %v6736 = vpop.permute.xlu0 %6735
      %6737 = vrot.lane.b32.xlu0 %v6589, 16
      %v6738 = vpop.permute.xlu0 %6737
      %6739 = vrot.lane.b32.xlu0 %v6542, 16
      %v6740 = vpop.permute.xlu0 %6739
      %6741 = vrot.lane.b32.xlu0 %v6590, 16
      %v6742 = vpop.permute.xlu0 %6741
      %6743 = vrot.lane.b32.xlu0 %v6545, 16
      %v6744 = vpop.permute.xlu0 %6743
      %6745 = vrot.lane.b32.xlu0 %v6591, 16
      %v6746 = vpop.permute.xlu0 %6745
      %6747 = vrot.lane.b32.xlu0 %v6548, 16
      %v6748 = vpop.permute.xlu0 %6747
      %6749 = vrot.lane.b32.xlu0 %v6592, 16
      %v6750 = vpop.permute.xlu0 %6749
      %6751 = vrot.lane.b32.xlu0 %v6551, 16
      %v6752 = vpop.permute.xlu0 %6751
      %6753 = vrot.lane.b32.xlu0 %v6593, 16
      %v6754 = vpop.permute.xlu0 %6753
      %6755 = vrot.lane.b32.xlu0 %v6554, 16
      %v6756 = vpop.permute.xlu0 %6755
      %6757 = vrot.lane.b32.xlu0 %v6594, 16
      %v6758 = vpop.permute.xlu0 %6757
      %6759 = vrot.lane.b32.xlu0 %v6557, 16
      %v6760 = vpop.permute.xlu0 %6759
      %6761 = vrot.lane.b32.xlu0 %v6595, 16
      %v6762 = vpop.permute.xlu0 %6761
      %6763 = vrot.lane.b32.xlu0 %v6560, 16
      %v6764 = vpop.permute.xlu0 %6763
      %6765 = vrot.lane.b32.xlu0 %v6596, 16
      %v6766 = vpop.permute.xlu0 %6765
      %6767 = vrot.lane.b32.xlu0 %v6563, 16
      %v6768 = vpop.permute.xlu0 %6767
      %6769 = vrot.lane.b32.xlu0 %v6597, 16
      %v6770 = vpop.permute.xlu0 %6769
      %6771 = vrot.lane.b32.xlu0 %v6566, 16
      %v6772 = vpop.permute.xlu0 %6771
      %6773 = vrot.lane.b32.xlu0 %v6598, 16
      %v6774 = vpop.permute.xlu0 %6773
      %v6807 = vsel %vm1079, %v6503, %v6600
      %v6808 = vsel %vm1079, %v6425, %v6602
      %v6809 = vsel %vm1079, %v6504, %v6604
      %v6810 = vsel %vm1079, %v6428, %v6606
      %v6811 = vsel %vm1079, %v6505, %v6608
      %v6812 = vsel %vm1079, %v6431, %v6610
      %v6813 = vsel %vm1079, %v6506, %v6612
      %v6814 = vsel %vm1079, %v6434, %v6614
      %v6815 = vsel %vm1079, %v6507, %v6616
      %v6816 = vsel %vm1079, %v6437, %v6618
      %v6817 = vsel %vm1079, %v6508, %v6620
      %v6818 = vsel %vm1079, %v6440, %v6622
      %v6819 = vsel %vm1079, %v6509, %v6624
      %v6820 = vsel %vm1079, %v6443, %v6626
      %v6821 = vsel %vm1079, %v6510, %v6628
      %v6822 = vsel %vm1079, %v6446, %v6630
      %v6823 = vsel %vm1079, %v6511, %v6632
      %v6824 = vsel %vm1079, %v6449, %v6634
      %v6825 = vsel %vm1079, %v6512, %v6636
      %v6826 = vsel %vm1079, %v6452, %v6638
      %v6827 = vsel %vm1079, %v6513, %v6640
      %v6828 = vsel %vm1079, %v6455, %v6642
      %v6829 = vsel %vm1079, %v6514, %v6644
      %v6830 = vsel %vm1079, %v6458, %v6646
      %v6831 = vsel %vm1079, %v6515, %v6648
      %v6832 = vsel %vm1079, %v6461, %v6650
      %v6833 = vsel %vm1079, %v6516, %v6652
      %v6834 = vsel %vm1079, %v6464, %v6654
      %v6835 = vsel %vm1079, %v6517, %v6656
      %v6836 = vsel %vm1079, %v6467, %v6658
      %v6837 = vsel %vm1079, %v6518, %v6660
      %v6838 = vsel %vm1079, %v6470, %v6662
      %v6839 = vsel %vm1112, %v6807, %v6712
      %v6840 = vsel %vm1112, %v6808, %v6714
      %v6841 = vsel %vm1112, %v6809, %v6716
      %v6842 = vsel %vm1112, %v6810, %v6718
      %v6843 = vsel %vm1112, %v6811, %v6720
      %v6844 = vsel %vm1112, %v6812, %v6722
      %v6845 = vsel %vm1112, %v6813, %v6724
      %v6846 = vsel %vm1112, %v6814, %v6726
      %v6847 = vsel %vm1112, %v6815, %v6728
      %v6848 = vsel %vm1112, %v6816, %v6730
      %v6849 = vsel %vm1112, %v6817, %v6732
      %v6850 = vsel %vm1112, %v6818, %v6734
      %v6851 = vsel %vm1112, %v6819, %v6736
      %v6852 = vsel %vm1112, %v6820, %v6738
      %v6853 = vsel %vm1112, %v6821, %v6740
      %v6854 = vsel %vm1112, %v6822, %v6742
      %v6855 = vsel %vm1112, %v6823, %v6744
      %v6856 = vsel %vm1112, %v6824, %v6746
      %v6857 = vsel %vm1112, %v6825, %v6748
      %v6858 = vsel %vm1112, %v6826, %v6750
      %v6859 = vsel %vm1112, %v6827, %v6752
      %v6860 = vsel %vm1112, %v6828, %v6754
      %v6861 = vsel %vm1112, %v6829, %v6756
      %v6862 = vsel %vm1112, %v6830, %v6758
      %v6863 = vsel %vm1112, %v6831, %v6760
      %v6864 = vsel %vm1112, %v6832, %v6762
      %v6865 = vsel %vm1112, %v6833, %v6764
      %v6866 = vsel %vm1112, %v6834, %v6766
      %v6867 = vsel %vm1112, %v6835, %v6768
      %v6868 = vsel %vm1112, %v6836, %v6770
      %v6869 = vsel %vm1112, %v6837, %v6772
      %v6870 = vsel %vm1112, %v6838, %v6774
      %6903 = vrot.lane.b32.xlu0 %v6839, 24
      %v6904 = vpop.permute.xlu0 %6903
      %6905 = vrot.lane.b32.xlu0 %v6840, 24
      %v6906 = vpop.permute.xlu0 %6905
      %6907 = vrot.lane.b32.xlu0 %v6841, 24
      %v6908 = vpop.permute.xlu0 %6907
      %6909 = vrot.lane.b32.xlu0 %v6842, 24
      %v6910 = vpop.permute.xlu0 %6909
      %6911 = vrot.lane.b32.xlu0 %v6843, 24
      %v6912 = vpop.permute.xlu0 %6911
      %6913 = vrot.lane.b32.xlu0 %v6844, 24
      %v6914 = vpop.permute.xlu0 %6913
      %6915 = vrot.lane.b32.xlu0 %v6845, 24
      %v6916 = vpop.permute.xlu0 %6915
      %6917 = vrot.lane.b32.xlu0 %v6846, 24
      %v6918 = vpop.permute.xlu0 %6917
      %6919 = vrot.lane.b32.xlu0 %v6847, 24
      %v6920 = vpop.permute.xlu0 %6919
      %6921 = vrot.lane.b32.xlu0 %v6848, 24
      %v6922 = vpop.permute.xlu0 %6921
      %6923 = vrot.lane.b32.xlu0 %v6849, 24
      %v6924 = vpop.permute.xlu0 %6923
      %6925 = vrot.lane.b32.xlu0 %v6850, 24
      %v6926 = vpop.permute.xlu0 %6925
      %6927 = vrot.lane.b32.xlu0 %v6851, 24
      %v6928 = vpop.permute.xlu0 %6927
      %6929 = vrot.lane.b32.xlu0 %v6852, 24
      %v6930 = vpop.permute.xlu0 %6929
      %6931 = vrot.lane.b32.xlu0 %v6853, 24
      %v6932 = vpop.permute.xlu0 %6931
      %6933 = vrot.lane.b32.xlu0 %v6854, 24
      %v6934 = vpop.permute.xlu0 %6933
      %6935 = vrot.lane.b32.xlu0 %v6855, 24
      %v6936 = vpop.permute.xlu0 %6935
      %6937 = vrot.lane.b32.xlu0 %v6856, 24
      %v6938 = vpop.permute.xlu0 %6937
      %6939 = vrot.lane.b32.xlu0 %v6857, 24
      %v6940 = vpop.permute.xlu0 %6939
      %6941 = vrot.lane.b32.xlu0 %v6858, 24
      %v6942 = vpop.permute.xlu0 %6941
      %6943 = vrot.lane.b32.xlu0 %v6859, 24
      %v6944 = vpop.permute.xlu0 %6943
      %6945 = vrot.lane.b32.xlu0 %v6860, 24
      %v6946 = vpop.permute.xlu0 %6945
      %6947 = vrot.lane.b32.xlu0 %v6861, 24
      %v6948 = vpop.permute.xlu0 %6947
      %6949 = vrot.lane.b32.xlu0 %v6862, 24
      %v6950 = vpop.permute.xlu0 %6949
      %6951 = vrot.lane.b32.xlu0 %v6863, 24
      %v6952 = vpop.permute.xlu0 %6951
      %6953 = vrot.lane.b32.xlu0 %v6864, 24
      %v6954 = vpop.permute.xlu0 %6953
      %6955 = vrot.lane.b32.xlu0 %v6865, 24
      %v6956 = vpop.permute.xlu0 %6955
      %6957 = vrot.lane.b32.xlu0 %v6866, 24
      %v6958 = vpop.permute.xlu0 %6957
      %6959 = vrot.lane.b32.xlu0 %v6867, 24
      %v6960 = vpop.permute.xlu0 %6959
      %6961 = vrot.lane.b32.xlu0 %v6868, 24
      %v6962 = vpop.permute.xlu0 %6961
      %6963 = vrot.lane.b32.xlu0 %v6869, 24
      %v6964 = vpop.permute.xlu0 %6963
      %6965 = vrot.lane.b32.xlu0 %v6870, 24
      %v6966 = vpop.permute.xlu0 %6965
      %6999 = vrot.lane.b32.xlu0 %v6841, 48
      %v7000 = vpop.permute.xlu0 %6999
      %7001 = vrot.lane.b32.xlu0 %v6842, 48
      %v7002 = vpop.permute.xlu0 %7001
      %7003 = vrot.lane.b32.xlu0 %v6843, 48
      %v7004 = vpop.permute.xlu0 %7003
      %7005 = vrot.lane.b32.xlu0 %v6844, 48
      %v7006 = vpop.permute.xlu0 %7005
      %7007 = vrot.lane.b32.xlu0 %v6845, 48
      %v7008 = vpop.permute.xlu0 %7007
      %7009 = vrot.lane.b32.xlu0 %v6846, 48
      %v7010 = vpop.permute.xlu0 %7009
      %7011 = vrot.lane.b32.xlu0 %v6847, 48
      %v7012 = vpop.permute.xlu0 %7011
      %7013 = vrot.lane.b32.xlu0 %v6848, 48
      %v7014 = vpop.permute.xlu0 %7013
      %7015 = vrot.lane.b32.xlu0 %v6849, 48
      %v7016 = vpop.permute.xlu0 %7015
      %7017 = vrot.lane.b32.xlu0 %v6850, 48
      %v7018 = vpop.permute.xlu0 %7017
      %7019 = vrot.lane.b32.xlu0 %v6851, 48
      %v7020 = vpop.permute.xlu0 %7019
      %7021 = vrot.lane.b32.xlu0 %v6852, 48
      %v7022 = vpop.permute.xlu0 %7021
      %7023 = vrot.lane.b32.xlu0 %v6853, 48
      %v7024 = vpop.permute.xlu0 %7023
      %7025 = vrot.lane.b32.xlu0 %v6854, 48
      %v7026 = vpop.permute.xlu0 %7025
      %7027 = vrot.lane.b32.xlu0 %v6855, 48
      %v7028 = vpop.permute.xlu0 %7027
      %7029 = vrot.lane.b32.xlu0 %v6856, 48
      %v7030 = vpop.permute.xlu0 %7029
      %7031 = vrot.lane.b32.xlu0 %v6857, 48
      %v7032 = vpop.permute.xlu0 %7031
      %7033 = vrot.lane.b32.xlu0 %v6858, 48
      %v7034 = vpop.permute.xlu0 %7033
      %7035 = vrot.lane.b32.xlu0 %v6859, 48
      %v7036 = vpop.permute.xlu0 %7035
      %7037 = vrot.lane.b32.xlu0 %v6860, 48
      %v7038 = vpop.permute.xlu0 %7037
      %7039 = vrot.lane.b32.xlu0 %v6861, 48
      %v7040 = vpop.permute.xlu0 %7039
      %7041 = vrot.lane.b32.xlu0 %v6862, 48
      %v7042 = vpop.permute.xlu0 %7041
      %7043 = vrot.lane.b32.xlu0 %v6863, 48
      %v7044 = vpop.permute.xlu0 %7043
      %7045 = vrot.lane.b32.xlu0 %v6864, 48
      %v7046 = vpop.permute.xlu0 %7045
      %7047 = vrot.lane.b32.xlu0 %v6865, 48
      %v7048 = vpop.permute.xlu0 %7047
      %7049 = vrot.lane.b32.xlu0 %v6866, 48
      %v7050 = vpop.permute.xlu0 %7049
      %7051 = vrot.lane.b32.xlu0 %v6867, 48
      %v7052 = vpop.permute.xlu0 %7051
      %7053 = vrot.lane.b32.xlu0 %v6868, 48
      %v7054 = vpop.permute.xlu0 %7053
      %7055 = vrot.lane.b32.xlu0 %v6869, 48
      %v7056 = vpop.permute.xlu0 %7055
      %7057 = vrot.lane.b32.xlu0 %v6870, 48
      %v7058 = vpop.permute.xlu0 %7057
      %v7089 = vsel %vm1367, 0.0, %v6904
      %v7090 = vsel %vm1367, 0.0, %v6906
      %v7091 = vsel %vm1367, %v6839, %v6908
      %v7092 = vsel %vm1367, %v6840, %v6910
      %v7093 = vsel %vm1367, %v6841, %v6912
      %v7094 = vsel %vm1367, %v6842, %v6914
      %v7095 = vsel %vm1367, %v6843, %v6916
      %v7096 = vsel %vm1367, %v6844, %v6918
      %v7097 = vsel %vm1367, %v6845, %v6920
      %v7098 = vsel %vm1367, %v6846, %v6922
      %v7099 = vsel %vm1367, %v6847, %v6924
      %v7100 = vsel %vm1367, %v6848, %v6926
      %v7101 = vsel %vm1367, %v6849, %v6928
      %v7102 = vsel %vm1367, %v6850, %v6930
      %v7103 = vsel %vm1367, %v6851, %v6932
      %v7104 = vsel %vm1367, %v6852, %v6934
      %v7105 = vsel %vm1367, %v6853, %v6936
      %v7106 = vsel %vm1367, %v6854, %v6938
      %v7107 = vsel %vm1367, %v6855, %v6940
      %v7108 = vsel %vm1367, %v6856, %v6942
      %v7109 = vsel %vm1367, %v6857, %v6944
      %v7110 = vsel %vm1367, %v6858, %v6946
      %v7111 = vsel %vm1367, %v6859, %v6948
      %v7112 = vsel %vm1367, %v6860, %v6950
      %v7113 = vsel %vm1367, %v6861, %v6952
      %v7114 = vsel %vm1367, %v6862, %v6954
      %v7115 = vsel %vm1367, %v6863, %v6956
      %v7116 = vsel %vm1367, %v6864, %v6958
      %v7117 = vsel %vm1367, %v6865, %v6960
      %v7118 = vsel %vm1367, %v6866, %v6962
      %v7119 = vsel %vm1367, %v6867, %v6964
      %v7120 = vsel %vm1367, %v6868, %v6966
      %v7121 = vsel %vm1400, %v7089, %v7000
      %v7122 = vsel %vm1400, %v7090, %v7002
      %v7123 = vsel %vm1400, %v7091, %v7004
      %v7124 = vsel %vm1400, %v7092, %v7006
      %v7125 = vsel %vm1400, %v7093, %v7008
      %v7126 = vsel %vm1400, %v7094, %v7010
      %v7127 = vsel %vm1400, %v7095, %v7012
      %v7128 = vsel %vm1400, %v7096, %v7014
      %v7129 = vsel %vm1400, %v7097, %v7016
      %v7130 = vsel %vm1400, %v7098, %v7018
      %v7131 = vsel %vm1400, %v7099, %v7020
      %v7132 = vsel %vm1400, %v7100, %v7022
      %v7133 = vsel %vm1400, %v7101, %v7024
      %v7134 = vsel %vm1400, %v7102, %v7026
      %v7135 = vsel %vm1400, %v7103, %v7028
      %v7136 = vsel %vm1400, %v7104, %v7030
      %v7137 = vsel %vm1400, %v7105, %v7032
      %v7138 = vsel %vm1400, %v7106, %v7034
      %v7139 = vsel %vm1400, %v7107, %v7036
      %v7140 = vsel %vm1400, %v7108, %v7038
      %v7141 = vsel %vm1400, %v7109, %v7040
      %v7142 = vsel %vm1400, %v7110, %v7042
      %v7143 = vsel %vm1400, %v7111, %v7044
      %v7144 = vsel %vm1400, %v7112, %v7046
      %v7145 = vsel %vm1400, %v7113, %v7048
      %v7146 = vsel %vm1400, %v7114, %v7050
      %v7147 = vsel %vm1400, %v7115, %v7052
      %v7148 = vsel %vm1400, %v7116, %v7054
      %v7149 = vsel %vm1400, %v7117, %v7056
      %v7150 = vsel %vm1400, %v7118, %v7058
      %v7151 = vsel %vm1400, %v7119, %v1335
      %v7152 = vsel %vm1400, %v7120, %v1335
      %v7154 = vsel %vm1433, %v7121, 0
      %v7157 = vsel %vm1433, %v7122, 0
      %v7160 = vsel %vm1433, %v7123, 0
      %v7163 = vsel %vm1433, %v7124, 0
      %v7166 = vsel %vm1433, %v7125, 0
      %v7169 = vsel %vm1433, %v7126, 0
      %v7172 = vsel %vm1433, %v7127, 0
      %v7175 = vsel %vm1433, %v7128, 0
      %v7178 = vsel %vm1433, %v7129, 0
      %v7181 = vsel %vm1433, %v7130, 0
      %v7184 = vsel %vm1433, %v7131, 0
      %v7187 = vsel %vm1433, %v7132, 0
      %v7190 = vsel %vm1433, %v7133, 0
      %v7193 = vsel %vm1433, %v7134, 0
      %v7196 = vsel %vm1433, %v7135, 0
      %v7199 = vsel %vm1433, %v7136, 0
      %v7202 = vsel %vm1433, %v7137, 0
      %v7205 = vsel %vm1433, %v7138, 0
      %v7208 = vsel %vm1433, %v7139, 0
      %v7211 = vsel %vm1433, %v7140, 0
      %v7214 = vsel %vm1433, %v7141, 0
      %v7217 = vsel %vm1433, %v7142, 0
      %v7220 = vsel %vm1433, %v7143, 0
      %v7223 = vsel %vm1433, %v7144, 0
      %v7226 = vsel %vm1433, %v7145, 0
      %v7229 = vsel %vm1433, %v7146, 0
      %v7232 = vsel %vm1433, %v7147, 0
      %v7235 = vsel %vm1433, %v7148, 0
      %v7238 = vsel %vm1433, %v7149, 0
      %v7241 = vsel %vm1433, %v7150, 0
      %v7244 = vsel %vm1433, %v7151, 0
      %v7247 = vsel %vm1433, %v7152, 0
      %7249 = vmatprep.subr.mxu0 0.0
      %7250 = vmatpush1.msra.mxu0 %v4081
      %7251 = vmatprep.subr.mxu0 0.0
      %7252 = vmatpush1.msra.mxu0 %v4082
      %7253 = vmatprep.subr.mxu0 0.0
      %7254 = vmatpush1.msra.mxu0 %v4083
      %7255 = vmatprep.subr.mxu0 0.0
      %7256 = vmatpush1.msra.mxu0 %v4084
      %7257 = vmatprep.subr.mxu0 0.0
      %7258 = vmatpush1.msra.mxu0 %v4085
      %7259 = vmatprep.subr.mxu0 0.0
      %7260 = vmatpush1.msra.mxu0 %v4086
      %7261 = vmatprep.subr.mxu0 0.0
      %7262 = vmatpush1.msra.mxu0 %v4087
      %7263 = vmatprep.subr.mxu0 0.0
      %7264 = vmatpush1.msra.mxu0 %v4088
      %7265 = vmatprep.subr.mxu0 0.0
      %7266 = vmatpush1.msra.mxu0 %v4089
      %7267 = vmatprep.subr.mxu0 0.0
      %7268 = vmatpush1.msra.mxu0 0.0
      %7269 = vmatprep.subr.mxu0 0.0
      %7270 = vmatpush1.msra.mxu0 0.0
      %7271 = vmatprep.subr.mxu0 0.0
      %7272 = vmatpush1.msra.mxu0 0.0
      %7273 = vmatprep.subr.mxu0 0.0
      %7274 = vmatpush1.msra.mxu0 0.0
      %7275 = vmatprep.subr.mxu0 0.0
      %7276 = vmatpush1.msra.mxu0 0.0
      %7277 = vmatprep.subr.mxu0 0.0
      %7278 = vmatpush1.msra.mxu0 0.0
      %7279 = vmatprep.subr.mxu0 0.0
      %7280 = vmatpush1.msra.mxu0 0.0
      %7281 = vmatprep.subr.mxu0 0.0
      %7282 = vmatpush1.msra.mxu0 0.0
      %7283 = vmatprep.subr.mxu0 0.0
      %7284 = vmatpush1.msra.mxu0 0.0
      %7285 = vmatprep.subr.mxu0 0.0
      %7286 = vmatpush1.msra.mxu0 0.0
      %7287 = vmatprep.subr.mxu0 0.0
      %7288 = vmatpush1.msra.mxu0 0.0
      %7289 = vmatprep.subr.mxu0 0.0
      %7290 = vmatpush1.msra.mxu0 0.0
      %7291 = vmatprep.subr.mxu0 0.0
      %7292 = vmatpush1.msra.mxu0 0.0
      %7293 = vmatprep.subr.mxu0 0.0
      %7294 = vmatpush1.msra.mxu0 0.0
      %7295 = vmatprep.subr.mxu0 0.0
      %7296 = vmatpush1.msra.mxu0 0.0
      %7297 = vmatprep.subr.mxu0 0.0
      %7298 = vmatpush1.msra.mxu0 0.0
      %7299 = vmatprep.subr.mxu0 0.0
      %7300 = vmatpush1.msra.mxu0 0.0
      %7301 = vmatprep.subr.mxu0 0.0
      %7302 = vmatpush1.msra.mxu0 0.0
      %7303 = vmatprep.subr.mxu0 0.0
      %7304 = vmatpush1.msra.mxu0 0.0
      %7305 = vmatprep.subr.mxu0 0.0
      %7306 = vmatpush1.msra.mxu0 0.0
      %7307 = vmatprep.subr.mxu0 0.0
      %7308 = vmatpush1.msra.mxu0 0.0
      %7309 = vmatprep.subr.mxu0 0.0
      %7310 = vmatpush1.msra.mxu0 0.0
      %7311 = vmatprep.subr.mxu0 0.0
      %7312 = vmatpush1.msra.mxu0 0.0
      %7313 = vmatprep.mubr.f32.mxu0 0.0
      %7314 = vmatmul.mubr.f32.gmra.mrb[0].mxu0 %v7154
      %v7315 = vpop.f32.mrb[0].mxu0
      %v7316 = vadd.f32 %v4095, %v7315
      %v7317 = vpop.f32.mrb[0].mxu0
      %7318 = vmatprep.mubr.f32.mxu0 0.0
      %7319 = vmatmul.mubr.f32.gmra.mrb[0].mxu0 %v7157
      %v7320 = vpop.f32.mrb[0].mxu0
      %v7321 = vadd.f32 %v4095, %v7320
      %v7322 = vpop.f32.mrb[0].mxu0
      %7323 = vmatprep.mubr.f32.mxu0 0.0
      %7324 = vmatmul.mubr.f32.gmra.mrb[0].mxu0 %v7160
      %v7325 = vpop.f32.mrb[0].mxu0
      %v7326 = vadd.f32 %v4095, %v7325
      %v7327 = vpop.f32.mrb[0].mxu0
      %7328 = vmatprep.mubr.f32.mxu0 0.0
      %7329 = vmatmul.mubr.f32.gmra.mrb[0].mxu0 %v7163
      %v7330 = vpop.f32.mrb[0].mxu0
      %v7331 = vadd.f32 %v4095, %v7330
      %v7332 = vpop.f32.mrb[0].mxu0
      %7333 = vmatprep.mubr.f32.mxu0 0.0
      %7334 = vmatmul.mubr.f32.gmra.mrb[0].mxu0 %v7166
      %v7335 = vpop.f32.mrb[0].mxu0
      %v7336 = vadd.f32 %v4095, %v7335
      %v7337 = vpop.f32.mrb[0].mxu0
      %7338 = vmatprep.mubr.f32.mxu0 0.0
      %7339 = vmatmul.mubr.f32.gmra.mrb[0].mxu0 %v7169
      %v7340 = vpop.f32.mrb[0].mxu0
      %v7341 = vadd.f32 %v4095, %v7340
      %v7342 = vpop.f32.mrb[0].mxu0
      %7343 = vmatprep.mubr.f32.mxu0 0.0
      %7344 = vmatmul.mubr.f32.gmra.mrb[0].mxu0 %v7172
      %v7345 = vpop.f32.mrb[0].mxu0
      %v7346 = vadd.f32 %v4095, %v7345
      %v7347 = vpop.f32.mrb[0].mxu0
      %7348 = vmatprep.mubr.f32.mxu0 0.0
      %7349 = vmatmul.mubr.f32.gmra.mrb[0].mxu0 %v7175
      %v7350 = vpop.f32.mrb[0].mxu0
      %v7351 = vadd.f32 %v4095, %v7350
      %v7352 = vpop.f32.mrb[0].mxu0
      %7353 = vmatprep.mubr.f32.mxu0 0.0
      %7354 = vmatmul.mubr.f32.gmra.mrb[0].mxu0 %v7178
      %v7355 = vpop.f32.mrb[0].mxu0
      %v7356 = vadd.f32 %v4095, %v7355
      %v7357 = vpop.f32.mrb[0].mxu0
      %7358 = vmatprep.mubr.f32.mxu0 0.0
      %7359 = vmatmul.mubr.f32.gmra.mrb[0].mxu0 %v7181
      %v7360 = vpop.f32.mrb[0].mxu0
      %v7361 = vadd.f32 %v4095, %v7360
      %v7362 = vpop.f32.mrb[0].mxu0
      %7363 = vmatprep.mubr.f32.mxu0 0.0
      %7364 = vmatmul.mubr.f32.gmra.mrb[0].mxu0 %v7184
      %v7365 = vpop.f32.mrb[0].mxu0
      %v7366 = vadd.f32 %v4095, %v7365
      %v7367 = vpop.f32.mrb[0].mxu0
      %7368 = vmatprep.mubr.f32.mxu0 0.0
      %7369 = vmatmul.mubr.f32.gmra.mrb[0].mxu0 %v7187
      %v7370 = vpop.f32.mrb[0].mxu0
      %v7371 = vadd.f32 %v4095, %v7370
      %v7372 = vpop.f32.mrb[0].mxu0
      %7373 = vmatprep.mubr.f32.mxu0 0.0
      %7374 = vmatmul.mubr.f32.gmra.mrb[0].mxu0 %v7190
      %v7375 = vpop.f32.mrb[0].mxu0
      %v7376 = vadd.f32 %v4095, %v7375
      %v7377 = vpop.f32.mrb[0].mxu0
      %7378 = vmatprep.mubr.f32.mxu0 0.0
      %7379 = vmatmul.mubr.f32.gmra.mrb[0].mxu0 %v7193
      %v7380 = vpop.f32.mrb[0].mxu0
      %v7381 = vadd.f32 %v4095, %v7380
      %v7382 = vpop.f32.mrb[0].mxu0
      %7383 = vmatprep.mubr.f32.mxu0 0.0
      %7384 = vmatmul.mubr.f32.gmra.mrb[0].mxu0 %v7196
      %v7385 = vpop.f32.mrb[0].mxu0
      %v7386 = vadd.f32 %v4095, %v7385
      %v7387 = vpop.f32.mrb[0].mxu0
      %7388 = vmatprep.mubr.f32.mxu0 0.0
      %7389 = vmatmul.mubr.f32.gmra.mrb[0].mxu0 %v7199
      %v7390 = vpop.f32.mrb[0].mxu0
      %v7391 = vadd.f32 %v4095, %v7390
      %v7392 = vpop.f32.mrb[0].mxu0
      %7393 = vmatprep.mubr.f32.mxu0 0.0
      %7394 = vmatmul.mubr.f32.gmra.mrb[0].mxu0 %v7202
      %v7395 = vpop.f32.mrb[0].mxu0
      %v7396 = vadd.f32 %v4095, %v7395
      %v7397 = vpop.f32.mrb[0].mxu0
      %7398 = vmatprep.mubr.f32.mxu0 0.0
      %7399 = vmatmul.mubr.f32.gmra.mrb[0].mxu0 %v7205
      %v7400 = vpop.f32.mrb[0].mxu0
      %v7401 = vadd.f32 %v4095, %v7400
      %v7402 = vpop.f32.mrb[0].mxu0
      %7403 = vmatprep.mubr.f32.mxu0 0.0
      %7404 = vmatmul.mubr.f32.gmra.mrb[0].mxu0 %v7208
      %v7405 = vpop.f32.mrb[0].mxu0
      %v7406 = vadd.f32 %v4095, %v7405
      %v7407 = vpop.f32.mrb[0].mxu0
      %7408 = vmatprep.mubr.f32.mxu0 0.0
      %7409 = vmatmul.mubr.f32.gmra.mrb[0].mxu0 %v7211
      %v7410 = vpop.f32.mrb[0].mxu0
      %v7411 = vadd.f32 %v4095, %v7410
      %v7412 = vpop.f32.mrb[0].mxu0
      %7413 = vmatprep.mubr.f32.mxu0 0.0
      %7414 = vmatmul.mubr.f32.gmra.mrb[0].mxu0 %v7214
      %v7415 = vpop.f32.mrb[0].mxu0
      %v7416 = vadd.f32 %v4095, %v7415
      %v7417 = vpop.f32.mrb[0].mxu0
      %7418 = vmatprep.mubr.f32.mxu0 0.0
      %7419 = vmatmul.mubr.f32.gmra.mrb[0].mxu0 %v7217
      %v7420 = vpop.f32.mrb[0].mxu0
      %v7421 = vadd.f32 %v4095, %v7420
      %v7422 = vpop.f32.mrb[0].mxu0
      %7423 = vmatprep.mubr.f32.mxu0 0.0
      %7424 = vmatmul.mubr.f32.gmra.mrb[0].mxu0 %v7220
      %v7425 = vpop.f32.mrb[0].mxu0
      %v7426 = vadd.f32 %v4095, %v7425
      %v7427 = vpop.f32.mrb[0].mxu0
      %7428 = vmatprep.mubr.f32.mxu0 0.0
      %7429 = vmatmul.mubr.f32.gmra.mrb[0].mxu0 %v7223
      %v7430 = vpop.f32.mrb[0].mxu0
      %v7431 = vadd.f32 %v4095, %v7430
      %v7432 = vpop.f32.mrb[0].mxu0
      %7433 = vmatprep.mubr.f32.mxu0 0.0
      %7434 = vmatmul.mubr.f32.gmra.mrb[0].mxu0 %v7226
      %v7435 = vpop.f32.mrb[0].mxu0
      %v7436 = vadd.f32 %v4095, %v7435
      %v7437 = vpop.f32.mrb[0].mxu0
      %7438 = vmatprep.mubr.f32.mxu0 0.0
      %7439 = vmatmul.mubr.f32.gmra.mrb[0].mxu0 %v7229
      %v7440 = vpop.f32.mrb[0].mxu0
      %v7441 = vadd.f32 %v4095, %v7440
      %v7442 = vpop.f32.mrb[0].mxu0
      %7443 = vmatprep.mubr.f32.mxu0 0.0
      %7444 = vmatmul.mubr.f32.gmra.mrb[0].mxu0 %v7232
      %v7445 = vpop.f32.mrb[0].mxu0
      %v7446 = vadd.f32 %v4095, %v7445
      %v7447 = vpop.f32.mrb[0].mxu0
      %7448 = vmatprep.mubr.f32.mxu0 0.0
      %7449 = vmatmul.mubr.f32.gmra.mrb[0].mxu0 %v7235
      %v7450 = vpop.f32.mrb[0].mxu0
      %v7451 = vadd.f32 %v4095, %v7450
      %v7452 = vpop.f32.mrb[0].mxu0
      %7453 = vmatprep.mubr.f32.mxu0 0.0
      %7454 = vmatmul.mubr.f32.gmra.mrb[0].mxu0 %v7238
      %v7455 = vpop.f32.mrb[0].mxu0
      %v7456 = vadd.f32 %v4095, %v7455
      %v7457 = vpop.f32.mrb[0].mxu0
      %7458 = vmatprep.mubr.f32.mxu0 0.0
      %7459 = vmatmul.mubr.f32.gmra.mrb[0].mxu0 %v7241
      %v7460 = vpop.f32.mrb[0].mxu0
      %v7461 = vadd.f32 %v4095, %v7460
      %v7462 = vpop.f32.mrb[0].mxu0
      %7463 = vmatprep.mubr.f32.mxu0 0.0
      %7464 = vmatmul.mubr.f32.gmra.mrb[0].mxu0 %v7244
      %v7465 = vpop.f32.mrb[0].mxu0
      %v7466 = vadd.f32 %v4095, %v7465
      %v7467 = vpop.f32.mrb[0].mxu0
      %7468 = vmatprep.mubr.f32.mxu0 0.0
      %7469 = vmatmul.mubr.f32.gmra.mrb[0].mxu0 %v7247
      %v7470 = vpop.f32.mrb[0].mxu0
      %v7471 = vadd.f32 %v4095, %v7470
      %v7472 = vpop.f32.mrb[0].mxu0
      %7473 = vdwg.mxu0
      %v7474 = vmax.f32 %v7316, 0.0
      %v7475 = vmax.f32 %v7321, 0.0
      %v7476 = vmax.f32 %v7326, 0.0
      %v7477 = vmax.f32 %v7331, 0.0
      %v7478 = vmax.f32 %v7336, 0.0
      %v7479 = vmax.f32 %v7341, 0.0
      %v7480 = vmax.f32 %v7346, 0.0
      %v7481 = vmax.f32 %v7351, 0.0
      %v7482 = vmax.f32 %v7356, 0.0
      %v7483 = vmax.f32 %v7361, 0.0
      %v7484 = vmax.f32 %v7366, 0.0
      %v7485 = vmax.f32 %v7371, 0.0
      %v7486 = vmax.f32 %v7376, 0.0
      %v7487 = vmax.f32 %v7381, 0.0
      %v7488 = vmax.f32 %v7386, 0.0
      %v7489 = vmax.f32 %v7391, 0.0
      %v7490 = vmax.f32 %v7396, 0.0
      %v7491 = vmax.f32 %v7401, 0.0
      %v7492 = vmax.f32 %v7406, 0.0
      %v7493 = vmax.f32 %v7411, 0.0
      %v7494 = vmax.f32 %v7416, 0.0
      %v7495 = vmax.f32 %v7421, 0.0
      %v7496 = vmax.f32 %v7426, 0.0
      %v7497 = vmax.f32 %v7431, 0.0
      %v7498 = vmax.f32 %v7436, 0.0
      %v7499 = vmax.f32 %v7441, 0.0
      %v7500 = vmax.f32 %v7446, 0.0
      %v7501 = vmax.f32 %v7451, 0.0
      %v7502 = vmax.f32 %v7456, 0.0
      %v7503 = vmax.f32 %v7461, 0.0
      %v7504 = vmax.f32 %v7466, 0.0
      %v7505 = vmax.f32 %v7471, 0.0
      %v7506 = vadd.f32 %v487, %v7474
      %v7507 = vadd.f32 %v492, %v7475
      %v7508 = vadd.f32 %v497, %v7476
      %v7509 = vadd.f32 %v502, %v7477
      %v7510 = vadd.f32 %v507, %v7478
      %v7511 = vadd.f32 %v512, %v7479
      %v7512 = vadd.f32 %v517, %v7480
      %v7513 = vadd.f32 %v522, %v7481
      %v7514 = vadd.f32 %v527, %v7482
      %v7515 = vadd.f32 %v532, %v7483
      %v7516 = vadd.f32 %v537, %v7484
      %v7517 = vadd.f32 %v542, %v7485
      %v7518 = vadd.f32 %v547, %v7486
      %v7519 = vadd.f32 %v552, %v7487
      %v7520 = vadd.f32 %v557, %v7488
      %v7521 = vadd.f32 %v562, %v7489
      %v7522 = vadd.f32 %v567, %v7490
      %v7523 = vadd.f32 %v572, %v7491
      %v7524 = vadd.f32 %v577, %v7492
      %v7525 = vadd.f32 %v582, %v7493
      %v7526 = vadd.f32 %v587, %v7494
      %v7527 = vadd.f32 %v592, %v7495
      %v7528 = vadd.f32 %v597, %v7496
      %v7529 = vadd.f32 %v602, %v7497
      %v7530 = vadd.f32 %v607, %v7498
      %v7531 = vadd.f32 %v612, %v7499
      %v7532 = vadd.f32 %v617, %v7500
      %v7533 = vadd.f32 %v622, %v7501
      %v7534 = vadd.f32 %v627, %v7502
      %v7535 = vadd.f32 %v632, %v7503
      %v7536 = vadd.f32 %v637, %v7504
      %v7537 = vadd.f32 %v642, %v7505
      %7538 = vst.msk [vmem:[%s278] sm:$0xff] %vm1079, %v7506
      %7539 = vst.msk [vmem:[%s278 + $0x8] sm:$0xff] %vm1079, %v7507
      %7540 = vst.msk [vmem:[%s278 + $0x10] sm:$0xff] %vm1079, %v7508
      %7541 = vst.msk [vmem:[%s278 + $0x18] sm:$0xff] %vm1079, %v7509
      %7542 = vst.msk [vmem:[%s278 + $0x20] sm:$0xff] %vm1079, %v7510
      %7543 = vst.msk [vmem:[%s278 + $0x28] sm:$0xff] %vm1079, %v7511
      %7544 = vst.msk [vmem:[%s278 + $0x30] sm:$0xff] %vm1079, %v7512
      %7545 = vst.msk [vmem:[%s278 + $0x38] sm:$0xff] %vm1079, %v7513
      %7546 = vst.msk [vmem:[%s278 + $0x40] sm:$0xff] %vm1079, %v7514
      %7547 = vst.msk [vmem:[%s278 + $0x48] sm:$0xff] %vm1079, %v7515
      %7548 = vst.msk [vmem:[%s278 + $0x50] sm:$0xff] %vm1079, %v7516
      %7549 = vst.msk [vmem:[%s278 + $0x58] sm:$0xff] %vm1079, %v7517
      %7550 = vst.msk [vmem:[%s278 + $0x60] sm:$0xff] %vm1079, %v7518
      %7551 = vst.msk [vmem:[%s278 + $0x68] sm:$0xff] %vm1079, %v7519
      %7552 = vst.msk [vmem:[%s278 + $0x70] sm:$0xff] %vm1079, %v7520
      %7553 = vst.msk [vmem:[%s278 + $0x78] sm:$0xff] %vm1079, %v7521
      %7554 = vst.msk [vmem:[%s278 + $0x80] sm:$0xff] %vm1079, %v7522
      %7555 = vst.msk [vmem:[%s278 + $0x88] sm:$0xff] %vm1079, %v7523
      %7556 = vst.msk [vmem:[%s278 + $0x90] sm:$0xff] %vm1079, %v7524
      %7557 = vst.msk [vmem:[%s278 + $0x98] sm:$0xff] %vm1079, %v7525
      %7558 = vst.msk [vmem:[%s278 + $0xa0] sm:$0xff] %vm1079, %v7526
      %7559 = vst.msk [vmem:[%s278 + $0xa8] sm:$0xff] %vm1079, %v7527
      %7560 = vst.msk [vmem:[%s278 + $0xb0] sm:$0xff] %vm1079, %v7528
      %7561 = vst.msk [vmem:[%s278 + $0xb8] sm:$0xff] %vm1079, %v7529
      %7562 = vst.msk [vmem:[%s278 + $0xc0] sm:$0xff] %vm1079, %v7530
      %7563 = vst.msk [vmem:[%s278 + $0xc8] sm:$0xff] %vm1079, %v7531
      %7564 = vst.msk [vmem:[%s278 + $0xd0] sm:$0xff] %vm1079, %v7532
      %7565 = vst.msk [vmem:[%s278 + $0xd8] sm:$0xff] %vm1079, %v7533
      %7566 = vst.msk [vmem:[%s278 + $0xe0] sm:$0xff] %vm1079, %v7534
      %7567 = vst.msk [vmem:[%s278 + $0xe8] sm:$0xff] %vm1079, %v7535
      %7568 = vst.msk [vmem:[%s278 + $0xf0] sm:$0xff] %vm1079, %v7536
      %7569 = vst.msk [vmem:[%s278 + $0xf8] sm:$0xff] %vm1079, %v7537
      %p7570 = scmp.lt.s32.totalorder %s18, 1
      %s7571 = scalar_select %p7570, %s18, 1
      %s7572 = smul.addr %s7571, 32
      %s7573 = smul.addr %s7572, 8
      %s7574 = scalar_lea.vmem %s7, %s7573
      // Predicated region
      $region49: #{tpu_custom_call.1} parent=47 // pred_check
        %p7575 = pneg %p188
      $region50: #{tpu_custom_call.1} parent=47 // pred_check_branch
        %7577 = sbr.rel (%p7575) target = $region52
      $region51: #{tpu_custom_call.1} parent=47 // pred_region
        _
      $region52: #{tpu_custom_call.1} parent=47 // pred_fallthru
        _
    $region48: #{tpu_custom_call.1} parent=5 // pred_fallthru
      _
    %p7578 = scmp.le.s32.totalorder 2, %s13
    // Predicated region
    $region53: #{tpu_custom_call.1} parent=5 // pred_check
      %p7579 = pneg %p7578
    $region54: #{tpu_custom_call.1} parent=5 // pred_check_branch
      %7581 = sbr.rel (%p7579) target = $region56
    $region55: #{tpu_custom_call.1} parent=5 // pred_region
      %s7582 = ssub.s32 %s13, 2
      // Predicated region
      $region57: #{tpu_custom_call.1} parent=55 // pred_check
        %p7583 = pneg %p194
      $region58: #{tpu_custom_call.1} parent=55 // pred_check_branch
        %7585 = sbr.rel (%p7583) target = $region60
      $region59: #{tpu_custom_call.1} parent=55 // pred_region
        %p7586 = scmp.lt.s32.totalorder %s19, 1
        %s7587 = scalar_select %p7586, %s19, 1
        %s7588 = smul.addr %s7587, 32
        %s7589 = smul.addr %s7588, 8
        %s7590 = scalar_lea.vmem %s7, %s7589
      $region60: #{tpu_custom_call.1} parent=55 // pred_fallthru
        _
    $region56: #{tpu_custom_call.1} parent=5 // pred_fallthru
      _
  $region6: #{tpu_custom_call.1} parent=0 // loop_footer
    %s17 = sadd.s32 1, %s13
  $region7: #{tpu_custom_call.1} parent=0 // loop_footer_branch
    %12 = sbr.rel target = $region3
  $region8: #{tpu_custom_call.1} parent=0 // loop_exit
    _

</llo_original>
